<compile_context>
chip_gen: v5e
topology: v5e:2x2
jax: 0.10.0
libtpu: 0.0.40
codegen_flags: <defaults>
</compile_context>

<pallas_src>
import functools

import jax
import jax.numpy as jnp
from jax.experimental import pallas as pl
from jax.experimental.pallas import tpu as pltpu

# ------------------------- config -------------------------
VOCAB = 100
MAX_POS = 64
HIDDEN = 128          # distilbert hidden (768) scaled down
HEADS = 4
HEAD_DIM = HIDDEN // HEADS
FFN_DIM = 256         # distilbert ffn (3072) scaled down
LAYERS = 2            # distilbert layers (6) scaled down
DENSE_OUT = 256       # FFN head dense_output (1024) scaled down
NUM_CLASSES = 21
CLS_PAD = 128         # classifier output padded to a lane-dense 128
LN_EPS = 1e-12

B = 2
S = 8


# ------------------------- fused Pallas kernel -------------------------
def _hint_kernel(x_ref, bias_ref, eg_ref, eb_ref,
                 qkvw_ref, qkvb_ref, ow_ref, ob_ref, g1_ref, b1_ref,
                 f1w_ref, f1b_ref, f2w_ref, f2b_ref, g2_ref, b2_ref,
                 dw_ref, db_ref, cw_ref, cb_ref, out_ref, *, seq):
    """One grid step = one batch-block; batch collapsed into matmul rows."""
    x = x_ref[0]                  # (R, H) f32: word_emb + pos_emb, R = bb*seq
    bias = bias_ref[0]            # (R, R) f32: block-diag batch mask + key padding
    rows = x.shape[0]
    bb = rows // seq

    def mm(a, w):                 # bf16 MXU matmul, f32 accumulation
        return jnp.dot(a.astype(jnp.bfloat16), w.astype(jnp.bfloat16),
                       preferred_element_type=jnp.float32)

    def layernorm(y, g, b):       # f32 statistics
        mu = jnp.mean(y, axis=-1, keepdims=True)
        var = jnp.mean(jnp.square(y - mu), axis=-1, keepdims=True)
        return (y - mu) * jax.lax.rsqrt(var + LN_EPS) * g + b

    def heads_t(y):               # (R, H) -> (HEADS, R, Dh): one reshape+transpose
        return jnp.swapaxes(y.reshape(rows, HEADS, HEAD_DIM), 0, 1)

    h = layernorm(x, eg_ref[...], eb_ref[...])     # embedding LayerNorm
    # embedding dropout: identity at eval.

    for li in range(LAYERS):
        # fused QKV projection (1/sqrt(head_dim) folded into Q weights/bias)
        qkv = mm(h, qkvw_ref[li]) + qkvb_ref[li]                 # (R, 3H) f32
        # 128-lane-aligned slices only; head split is a single relayout per operand.
        q3 = heads_t(qkv[:, :HIDDEN]).astype(jnp.bfloat16)               # (HEADS,R,Dh)
        k3 = heads_t(qkv[:, HIDDEN:2 * HIDDEN]).astype(jnp.bfloat16)
        v3 = heads_t(qkv[:, 2 * HIDDEN:]).astype(jnp.bfloat16)

        # head-batched scores; bias add stays in f32 so -1e30 is safe
        s = jnp.einsum('hqd,hkd->hqk', q3, k3,
                       preferred_element_type=jnp.float32)               # (HEADS,R,R)
        s = s + bias
        # single batched softmax across all heads / whole batch-block
        s = s - jnp.max(s, axis=-1, keepdims=True)
        p = jnp.exp(s)
        p = p * pl.reciprocal(jnp.sum(p, axis=-1, keepdims=True), approx=True)
        ctx = jnp.einsum('hqk,hkd->hqd', p.astype(jnp.bfloat16), v3,
                         preferred_element_type=jnp.float32)             # (HEADS,R,Dh)
        ctx = jnp.swapaxes(ctx, 0, 1).reshape(rows, HIDDEN)              # (R, H)
        attn = mm(ctx, ow_ref[li]) + ob_ref[li]                          # ONE o-proj
        h1 = layernorm(attn + h, g1_ref[li], b1_ref[li])

        ff = mm(h1, f1w_ref[li]) + f1b_ref[li]
        # TODO(synk): DistilBERT uses exact erf-GELU; tanh approximation used here.
        cg = 0.7978845608028654
        ff = 0.5 * ff * (1.0 + jnp.tanh(cg * (ff + 0.044715 * ff * ff * ff)))
        ff2 = mm(ff, f2w_ref[li]) + f2b_ref[li]
        h = layernorm(ff2 + h1, g2_ref[li], b2_ref[li])

    # CLS token (position 0) of every sample in this block, then FFN head
    cls = h.reshape(bb, seq, HIDDEN)[:, 0, :]                     # (bb, H)
    d = jnp.maximum(mm(cls, dw_ref[...]) + db_ref[...], 0.0)      # (bb, DENSE_OUT)
    # TODO(synk): nn.Dropout(0.5) is identity at inference (eval mode).
    out_ref[0] = mm(d, cw_ref[...]) + cb_ref[...]                 # (bb, CLS_PAD) lane-dense


def _const_spec(shape):
    """Full-array block with a constant index map (DMA'd once, reused each step)."""
    # TODO(synk): add pipeline_mode=pl.Buffered(1) once weights are large enough
    # for the double-buffered copy of constant blocks to matter for VMEM.
    if len(shape) == 2:
        return pl.BlockSpec(shape, lambda i: (0, 0))
    return pl.BlockSpec(shape, lambda i: (0, 0, 0))


def _num_batch_blocks(batch):
    """1 grid step on single-TC chips (v5e/v6e); 2-wide parallel axis on dual-TC v7x."""
    try:
        kind = jax.devices()[0].device_kind.lower()
    except Exception:
        kind = ""
    if ("v7" in kind or "7x" in kind) and batch >= 2 and batch % 2 == 0:
        return 2
    return 1


def hint_forward(prep, input_ids, attention_mask):
    batch, seq = input_ids.shape
    nb = _num_batch_blocks(batch)
    bb = batch // nb
    rows = bb * seq

    # embedding gather + positional add stay as cheap XLA glue (no jnp.tile)
    we = jnp.take(prep["word_emb"], input_ids.reshape(-1), axis=0)
    x = we.reshape(batch, seq, HIDDEN) + prep["pos_emb"][None, :seq, :]
    x = x.reshape(nb, rows, HIDDEN)

    # block-diagonal (per-sample) + key-padding additive bias for the collapsed
    # batch attention: 0 where query/key are in the same sample and key is a real
    # token, -1e30 otherwise.  (Fine at toy size; for long sequences keep batch as
    # a batched einsum dim instead of widening the key axis.)
    valid = attention_mask.astype(jnp.float32).reshape(nb, bb, seq)
    same = jnp.eye(bb, dtype=jnp.float32)
    allowed = same[None, :, None, :, None] * valid[:, None, None, :, :]
    allowed = jnp.broadcast_to(allowed, (nb, bb, seq, bb, seq)).reshape(nb, rows, rows)
    attn_bias = (allowed - 1.0) * 1e30

    kernel = functools.partial(_hint_kernel, seq=seq)

    in_specs = [
        pl.BlockSpec((1, rows, HIDDEN), lambda i: (i, 0, 0)),   # x_emb block
        pl.BlockSpec((1, rows, rows), lambda i: (i, 0, 0)),     # attn_bias block
        _const_spec(prep["emb_ln_g"].shape),
        _const_spec(prep["emb_ln_b"].shape),
        _const_spec(prep["qkv_w"].shape),
        _const_spec(prep["qkv_b"].shape),
        _const_spec(prep["o_w"].shape),
        _const_spec(prep["o_b"].shape),
        _const_spec(prep["ln1_g"].shape),
        _const_spec(prep["ln1_b"].shape),
        _const_spec(prep["f1_w"].shape),
        _const_spec(prep["f1_b"].shape),
        _const_spec(prep["f2_w"].shape),
        _const_spec(prep["f2_b"].shape),
        _const_spec(prep["ln2_g"].shape),
        _const_spec(prep["ln2_b"].shape),
        _const_spec(prep["d_w"].shape),
        _const_spec(prep["d_b"].shape),
        _const_spec(prep["c_w"].shape),
        _const_spec(prep["c_b"].shape),
    ]

    out = pl.pallas_call(
        kernel,
        grid=(nb,),
        in_specs=in_specs,
        out_specs=pl.BlockSpec((1, bb, CLS_PAD), lambda i: (i, 0, 0)),
        out_shape=jax.ShapeDtypeStruct((nb, bb, CLS_PAD), jnp.float32),
        compiler_params=pltpu.CompilerParams(
            dimension_semantics=("parallel",),
            vmem_limit_bytes=32 * 1024 * 1024),
    )(x, attn_bias,
      prep["emb_ln_g"], prep["emb_ln_b"],
      prep["qkv_w"], prep["qkv_b"], prep["o_w"], prep["o_b"],
      prep["ln1_g"], prep["ln1_b"],
      prep["f1_w"], prep["f1_b"], prep["f2_w"], prep["f2_b"],
      prep["ln2_g"], prep["ln2_b"],
      prep["d_w"], prep["d_b"], prep["c_w"], prep["c_b"])

    return out.reshape(batch, CLS_PAD)[:, :NUM_CLASSES]          # (B, 21)


# ------------------------- parameter init / prep -------------------------
def init_params(key):
    """Parameters in the 'original' (per-layer, f32) layout."""
    def nrm(k, shape, scale=0.02):
        return scale * jax.random.normal(k, shape, dtype=jnp.float32)

    keys = jax.random.split(key, 8 + LAYERS)
    params = {
        "word_emb": nrm(keys[0], (VOCAB, HIDDEN)),
        "pos_emb": nrm(keys[1], (MAX_POS, HIDDEN)),
        "emb_ln_g": jnp.ones((HIDDEN,), jnp.float32),
        "emb_ln_b": jnp.zeros((HIDDEN,), jnp.float32),
        "d_w": nrm(keys[2], (HIDDEN, DENSE_OUT)),
        "d_b": jnp.zeros((DENSE_OUT,), jnp.float32),
        "c_w": nrm(keys[3], (DENSE_OUT, NUM_CLASSES)),
        "c_b": jnp.zeros((NUM_CLASSES,), jnp.float32),
        "layers": [],
    }
    for li in range(LAYERS):
        lk = jax.random.split(keys[8 + li], 6)
        params["layers"].append({
            "q_w": nrm(lk[0], (HIDDEN, HIDDEN)), "q_b": jnp.zeros((HIDDEN,), jnp.float32),
            "k_w": nrm(lk[1], (HIDDEN, HIDDEN)), "k_b": jnp.zeros((HIDDEN,), jnp.float32),
            "v_w": nrm(lk[2], (HIDDEN, HIDDEN)), "v_b": jnp.zeros((HIDDEN,), jnp.float32),
            "o_w": nrm(lk[3], (HIDDEN, HIDDEN)), "o_b": jnp.zeros((HIDDEN,), jnp.float32),
            "ln1_g": jnp.ones((HIDDEN,), jnp.float32), "ln1_b": jnp.zeros((HIDDEN,), jnp.float32),
            "f1_w": nrm(lk[4], (HIDDEN, FFN_DIM)), "f1_b": jnp.zeros((FFN_DIM,), jnp.float32),
            "f2_w": nrm(lk[5], (FFN_DIM, HIDDEN)), "f2_b": jnp.zeros((HIDDEN,), jnp.float32),
            "ln2_g": jnp.ones((HIDDEN,), jnp.float32), "ln2_b": jnp.zeros((HIDDEN,), jnp.float32),
        })
    return params


def prepare_params(p):
    """Fuse QKV (scale folded), stack layers, cast matmul weights to bf16, pad classifier."""
    scale = 1.0 / (HEAD_DIM ** 0.5)
    bf = lambda a: a.astype(jnp.bfloat16)

    def stack(name):
        return jnp.stack([lp[name] for lp in p["layers"]], axis=0)

    qkv_w = jnp.stack(
        [jnp.concatenate([lp["q_w"] * scale, lp["k_w"], lp["v_w"]], axis=1)
         for lp in p["layers"]], axis=0)                               # [L, H, 3H]
    qkv_b = jnp.stack(
        [jnp.concatenate([lp["q_b"] * scale, lp["k_b"], lp["v_b"]])
         for lp in p["layers"]], axis=0)[:, None, :]                   # [L, 1, 3H]

    c_w_pad = jnp.zeros((DENSE_OUT, CLS_PAD), jnp.float32).at[:, :NUM_CLASSES].set(p["c_w"])
    c_b_pad = jnp.zeros((CLS_PAD,), jnp.float32).at[:NUM_CLASSES].set(p["c_b"])

    return {
        "word_emb": p["word_emb"], "pos_emb": p["pos_emb"],
        "emb_ln_g": p["emb_ln_g"][None, :], "emb_ln_b": p["emb_ln_b"][None, :],
        "qkv_w": bf(qkv_w), "qkv_b": qkv_b,
        "o_w": bf(stack("o_w")), "o_b": stack("o_b")[:, None, :],
        "ln1_g": stack("ln1_g")[:, None, :], "ln1_b": stack("ln1_b")[:, None, :],
        "f1_w": bf(stack("f1_w")), "f1_b": stack("f1_b")[:, None, :],
        "f2_w": bf(stack("f2_w")), "f2_b": stack("f2_b")[:, None, :],
        "ln2_g": stack("ln2_g")[:, None, :], "ln2_b": stack("ln2_b")[:, None, :],
        "d_w": bf(p["d_w"]), "d_b": p["d_b"][None, :],
        "c_w": bf(c_w_pad), "c_b": c_b_pad[None, :],
    }


# ------------------------- pure-JAX reference (same prepped weights) -------------------------
def reference_forward(prep, input_ids, attention_mask):
    batch, seq = input_ids.shape
    f32 = lambda a: a.astype(jnp.float32)
    we = jnp.take(prep["word_emb"], input_ids.reshape(-1), axis=0).reshape(batch, seq, HIDDEN)
    x = we + prep["pos_emb"][None, :seq, :]
    bias = ((attention_mask.astype(jnp.float32) - 1.0) * 1e30)[:, None, None, :]

    def ln(y, g, b):
        mu = jnp.mean(y, axis=-1, keepdims=True)
        var = jnp.mean(jnp.square(y - mu), axis=-1, keepdims=True)
        return (y - mu) * jax.lax.rsqrt(var + LN_EPS) * g + b

    h = ln(x, prep["emb_ln_g"][0], prep["emb_ln_b"][0])
    for li in range(LAYERS):
        qkv = h @ f32(prep["qkv_w"][li]) + prep["qkv_b"][li]
        q, k, v = jnp.split(qkv, 3, axis=-1)
        sh = lambda t: t.reshape(batch, seq, HEADS, HEAD_DIM).transpose(0, 2, 1, 3)
        s = jnp.einsum("bhqd,bhkd->bhqk", sh(q), sh(k)) + bias
        p = jax.nn.softmax(s, axis=-1)
        ctx = jnp.einsum("bhqk,bhkd->bhqd", p, sh(v)).transpose(0, 2, 1, 3).reshape(batch, seq, HIDDEN)
        attn = ctx @ f32(prep["o_w"][li]) + prep["o_b"][li]
        h1 = ln(attn + h, prep["ln1_g"][li], prep["ln1_b"][li])
        ff = h1 @ f32(prep["f1_w"][li]) + prep["f1_b"][li]
        cg = 0.7978845608028654
        ff = 0.5 * ff * (1.0 + jnp.tanh(cg * (ff + 0.044715 * ff ** 3)))
        ff2 = ff @ f32(prep["f2_w"][li]) + prep["f2_b"][li]
        h = ln(ff2 + h1, prep["ln2_g"][li], prep["ln2_b"][li])
    cls = h[:, 0, :]
    d = jnp.maximum(cls @ f32(prep["d_w"]) + prep["d_b"], 0.0)
    logits = d @ f32(prep["c_w"]) + prep["c_b"]
    return logits[:, :NUM_CLASSES]


# ------------------------- main -------------------------
if __name__ == "__main__":
    key = jax.random.PRNGKey(0)
    pkey, ikey = jax.random.split(key)
    params = init_params(pkey)
    prep = prepare_params(params)

    input_ids = jax.random.randint(ikey, (B, S), 0, VOCAB, dtype=jnp.int32)
    attention_mask = jnp.array(
        [[1] * S,                       # sample 0: no padding
         [1] * (S - 3) + [0] * 3],      # sample 1: last 3 tokens padded
        dtype=jnp.int32)

    fwd = jax.jit(hint_forward)
    logits = fwd(prep, input_ids, attention_mask)
    jax.block_until_ready(logits)

    ref = jax.jit(reference_forward)(prep, input_ids, attention_mask)
    jax.block_until_ready(ref)

    assert logits.shape == (B, NUM_CLASSES), logits.shape
    assert bool(jnp.all(jnp.isfinite(logits)))
    err = float(jnp.max(jnp.abs(logits - ref)))
    assert err < 5e-2, f"pallas vs reference max abs diff = {err}"
    print("KERNEL_OK")
</pallas_src>

<mosaic_0001>
module attributes {stable_mosaic.version = 11 : i64} {
  func.func @_hint_kernel(%arg0: i32, %arg1: memref<1x16x128xf32, #tpu.memory_space<vmem>>, %arg2: memref<1x16x16xf32, #tpu.memory_space<vmem>>, %arg3: memref<1x128xf32, #tpu.memory_space<vmem>>, %arg4: memref<1x128xf32, #tpu.memory_space<vmem>>, %arg5: memref<2x128x384xbf16, #tpu.memory_space<vmem>>, %arg6: memref<2x1x384xf32, #tpu.memory_space<vmem>>, %arg7: memref<2x128x128xbf16, #tpu.memory_space<vmem>>, %arg8: memref<2x1x128xf32, #tpu.memory_space<vmem>>, %arg9: memref<2x1x128xf32, #tpu.memory_space<vmem>>, %arg10: memref<2x1x128xf32, #tpu.memory_space<vmem>>, %arg11: memref<2x128x256xbf16, #tpu.memory_space<vmem>>, %arg12: memref<2x1x256xf32, #tpu.memory_space<vmem>>, %arg13: memref<2x256x128xbf16, #tpu.memory_space<vmem>>, %arg14: memref<2x1x128xf32, #tpu.memory_space<vmem>>, %arg15: memref<2x1x128xf32, #tpu.memory_space<vmem>>, %arg16: memref<2x1x128xf32, #tpu.memory_space<vmem>>, %arg17: memref<128x256xbf16, #tpu.memory_space<vmem>>, %arg18: memref<1x256xf32, #tpu.memory_space<vmem>>, %arg19: memref<256x128xbf16, #tpu.memory_space<vmem>>, %arg20: memref<1x128xf32, #tpu.memory_space<vmem>>, %arg21: memref<1x2x128xf32, #tpu.memory_space<vmem>>) attributes {dimension_semantics = [#tpu.dimension_semantics<parallel>], iteration_bounds = array<i64: 1>, scalar_prefetch = 0 : i64, scratch_operands = 0 : i64, tpu.core_type = #tpu.core_type<tc>, window_params = [{transform_indices = @transform_0, window_bounds = array<i64: 1, 16, 128>}, {transform_indices = @transform_1, window_bounds = array<i64: 1, 16, 16>}, {pipeline_mode = #tpu.pipeline_mode<synchronous>, transform_indices = @transform_2, window_bounds = array<i64: 1, 128>}, {pipeline_mode = #tpu.pipeline_mode<synchronous>, transform_indices = @transform_3, window_bounds = array<i64: 1, 128>}, {pipeline_mode = #tpu.pipeline_mode<synchronous>, transform_indices = @transform_4, window_bounds = array<i64: 2, 128, 384>}, {pipeline_mode = #tpu.pipeline_mode<synchronous>, transform_indices = @transform_5, window_bounds = array<i64: 2, 1, 384>}, {pipeline_mode = #tpu.pipeline_mode<synchronous>, transform_indices = @transform_6, window_bounds = array<i64: 2, 128, 128>}, {pipeline_mode = #tpu.pipeline_mode<synchronous>, transform_indices = @transform_7, window_bounds = array<i64: 2, 1, 128>}, {pipeline_mode = #tpu.pipeline_mode<synchronous>, transform_indices = @transform_8, window_bounds = array<i64: 2, 1, 128>}, {pipeline_mode = #tpu.pipeline_mode<synchronous>, transform_indices = @transform_9, window_bounds = array<i64: 2, 1, 128>}, {pipeline_mode = #tpu.pipeline_mode<synchronous>, transform_indices = @transform_10, window_bounds = array<i64: 2, 128, 256>}, {pipeline_mode = #tpu.pipeline_mode<synchronous>, transform_indices = @transform_11, window_bounds = array<i64: 2, 1, 256>}, {pipeline_mode = #tpu.pipeline_mode<synchronous>, transform_indices = @transform_12, window_bounds = array<i64: 2, 256, 128>}, {pipeline_mode = #tpu.pipeline_mode<synchronous>, transform_indices = @transform_13, window_bounds = array<i64: 2, 1, 128>}, {pipeline_mode = #tpu.pipeline_mode<synchronous>, transform_indices = @transform_14, window_bounds = array<i64: 2, 1, 128>}, {pipeline_mode = #tpu.pipeline_mode<synchronous>, transform_indices = @transform_15, window_bounds = array<i64: 2, 1, 128>}, {pipeline_mode = #tpu.pipeline_mode<synchronous>, transform_indices = @transform_16, window_bounds = array<i64: 128, 256>}, {pipeline_mode = #tpu.pipeline_mode<synchronous>, transform_indices = @transform_17, window_bounds = array<i64: 1, 256>}, {pipeline_mode = #tpu.pipeline_mode<synchronous>, transform_indices = @transform_18, window_bounds = array<i64: 256, 128>}, {pipeline_mode = #tpu.pipeline_mode<synchronous>, transform_indices = @transform_19, window_bounds = array<i64: 1, 128>}, {transform_indices = @transform_20, window_bounds = array<i64: 1, 2, 128>}]} {
    %c0 = arith.constant 0 : index
    %c0_0 = arith.constant 0 : index
    %c0_1 = arith.constant 0 : index
    %0 = vector.load %arg1[%c0, %c0_0, %c0_1] : memref<1x16x128xf32, #tpu.memory_space<vmem>>, vector<1x16x128xf32>
    %1 = vector.shape_cast %0 : vector<1x16x128xf32> to vector<16x128xf32>
    %c0_2 = arith.constant 0 : index
    %c0_3 = arith.constant 0 : index
    %c0_4 = arith.constant 0 : index
    %2 = vector.load %arg2[%c0_2, %c0_3, %c0_4] : memref<1x16x16xf32, #tpu.memory_space<vmem>>, vector<1x16x16xf32>
    %3 = vector.shape_cast %2 : vector<1x16x16xf32> to vector<16x16xf32>
    %c0_5 = arith.constant 0 : index
    %c0_6 = arith.constant 0 : index
    %4 = vector.load %arg3[%c0_5, %c0_6] : memref<1x128xf32, #tpu.memory_space<vmem>>, vector<1x128xf32>
    %c0_7 = arith.constant 0 : index
    %c0_8 = arith.constant 0 : index
    %5 = vector.load %arg4[%c0_7, %c0_8] : memref<1x128xf32, #tpu.memory_space<vmem>>, vector<1x128xf32>
    %cst = arith.constant dense<0.000000e+00> : vector<16xf32>
    %6 = vector.multi_reduction <add>, %1, %cst [1] : vector<16x128xf32> to vector<16xf32>
    %7 = vector.shape_cast %6 : vector<16xf32> to vector<16x1xf32>
    %cst_9 = arith.constant 1.280000e+02 : f32
    %8 = vector.broadcast %cst_9 : f32 to vector<16x1xf32>
    %9 = arith.divf %7, %8 : vector<16x1xf32>
    %10 = vector.broadcast %9 : vector<16x1xf32> to vector<16x128xf32>
    %11 = arith.subf %1, %10 : vector<16x128xf32>
    %12 = arith.mulf %11, %11 : vector<16x128xf32>
    %cst_10 = arith.constant dense<0.000000e+00> : vector<16xf32>
    %13 = vector.multi_reduction <add>, %12, %cst_10 [1] : vector<16x128xf32> to vector<16xf32>
    %14 = vector.shape_cast %13 : vector<16xf32> to vector<16x1xf32>
    %cst_11 = arith.constant 1.280000e+02 : f32
    %15 = vector.broadcast %cst_11 : f32 to vector<16x1xf32>
    %16 = arith.divf %14, %15 : vector<16x1xf32>
    %17 = vector.broadcast %9 : vector<16x1xf32> to vector<16x128xf32>
    %18 = arith.subf %1, %17 : vector<16x128xf32>
    %cst_12 = arith.constant 9.99999996E-13 : f32
    %19 = vector.broadcast %cst_12 : f32 to vector<16x1xf32>
    %20 = arith.addf %16, %19 : vector<16x1xf32>
    %21 = math.rsqrt %20 : vector<16x1xf32>
    %22 = vector.broadcast %21 : vector<16x1xf32> to vector<16x128xf32>
    %23 = arith.mulf %18, %22 : vector<16x128xf32>
    %24 = vector.broadcast %4 : vector<1x128xf32> to vector<16x128xf32>
    %25 = arith.mulf %23, %24 : vector<16x128xf32>
    %26 = vector.broadcast %5 : vector<1x128xf32> to vector<16x128xf32>
    %27 = arith.addf %25, %26 : vector<16x128xf32>
    %c0_13 = arith.constant 0 : index
    %c0_14 = arith.constant 0 : index
    %c0_15 = arith.constant 0 : index
    %28 = vector.load %arg5[%c0_13, %c0_14, %c0_15] : memref<2x128x384xbf16, #tpu.memory_space<vmem>>, vector<1x128x384xbf16>
    %29 = vector.shape_cast %28 : vector<1x128x384xbf16> to vector<128x384xbf16>
    %30 = arith.truncf %27 : vector<16x128xf32> to vector<16x128xbf16>
    %cst_16 = arith.constant dense<0.000000e+00> : vector<16x384xf32>
    %31 = tpu.matmul %30, %29, %cst_16 {dimension_numbers = #tpu.dot_dimension_numbers<[1], [0], [0], [1], [0, 0, 1, 1], [], []>} : vector<16x128xbf16>, vector<128x384xbf16>, vector<16x384xf32> -> vector<16x384xf32>
    %c0_17 = arith.constant 0 : index
    %c0_18 = arith.constant 0 : index
    %c0_19 = arith.constant 0 : index
    %32 = vector.load %arg6[%c0_17, %c0_18, %c0_19] : memref<2x1x384xf32, #tpu.memory_space<vmem>>, vector<1x1x384xf32>
    %33 = vector.shape_cast %32 : vector<1x1x384xf32> to vector<1x384xf32>
    %34 = vector.broadcast %33 : vector<1x384xf32> to vector<16x384xf32>
    %35 = arith.addf %31, %34 : vector<16x384xf32>
    %36 = vector.extract_strided_slice %35 {offsets = [0, 0], sizes = [16, 128], strides = [1, 1]} : vector<16x384xf32> to vector<16x128xf32>
    %37 = vector.shape_cast %36 : vector<16x128xf32> to vector<16x4x32xf32>
    %38 = tpu.transpose %37, [1, 0, 2] : vector<16x4x32xf32> -> vector<4x16x32xf32>
    %39 = arith.truncf %38 : vector<4x16x32xf32> to vector<4x16x32xbf16>
    %40 = vector.extract_strided_slice %35 {offsets = [0, 128], sizes = [16, 128], strides = [1, 1]} : vector<16x384xf32> to vector<16x128xf32>
    %41 = vector.shape_cast %40 : vector<16x128xf32> to vector<16x4x32xf32>
    %42 = tpu.transpose %41, [1, 0, 2] : vector<16x4x32xf32> -> vector<4x16x32xf32>
    %43 = arith.truncf %42 : vector<4x16x32xf32> to vector<4x16x32xbf16>
    %44 = vector.extract_strided_slice %35 {offsets = [0, 256], sizes = [16, 128], strides = [1, 1]} : vector<16x384xf32> to vector<16x128xf32>
    %45 = vector.shape_cast %44 : vector<16x128xf32> to vector<16x4x32xf32>
    %46 = tpu.transpose %45, [1, 0, 2] : vector<16x4x32xf32> -> vector<4x16x32xf32>
    %47 = arith.truncf %46 : vector<4x16x32xf32> to vector<4x16x32xbf16>
    "tpu.trace_start"() <{level = 10 : i32, message = "hqd,hkd->hqk"}> : () -> ()
    %cst_20 = arith.constant dense<0.000000e+00> : vector<4x16x16xf32>
    %48 = tpu.matmul %39, %43, %cst_20 {dimension_numbers = #tpu.dot_dimension_numbers<[2], [2], [1], [1], [0, 0, 0, 1, 1, 1], [0], [0]>} : vector<4x16x32xbf16>, vector<4x16x32xbf16>, vector<4x16x16xf32> -> vector<4x16x16xf32>
    "tpu.trace_stop"() : () -> ()
    %49 = vector.shape_cast %3 : vector<16x16xf32> to vector<1x16x16xf32>
    %50 = vector.broadcast %49 : vector<1x16x16xf32> to vector<4x16x16xf32>
    %51 = arith.addf %48, %50 : vector<4x16x16xf32>
    %cst_21 = arith.constant dense<0xFF800000> : vector<4x16xf32>
    %52 = vector.multi_reduction <maximumf>, %51, %cst_21 [2] : vector<4x16x16xf32> to vector<4x16xf32>
    %53 = vector.shape_cast %52 : vector<4x16xf32> to vector<4x16x1xf32>
    %54 = vector.broadcast %53 : vector<4x16x1xf32> to vector<4x16x16xf32>
    %55 = arith.subf %51, %54 : vector<4x16x16xf32>
    %56 = math.exp %55 : vector<4x16x16xf32>
    %cst_22 = arith.constant dense<0.000000e+00> : vector<4x16xf32>
    %57 = vector.multi_reduction <add>, %56, %cst_22 [2] : vector<4x16x16xf32> to vector<4x16xf32>
    %58 = vector.shape_cast %57 : vector<4x16xf32> to vector<4x16x1xf32>
    %59 = tpu.reciprocal %58 {approx = true} : vector<4x16x1xf32> -> vector<4x16x1xf32>
    %60 = vector.broadcast %59 : vector<4x16x1xf32> to vector<4x16x16xf32>
    %61 = arith.mulf %56, %60 : vector<4x16x16xf32>
    %62 = arith.truncf %61 : vector<4x16x16xf32> to vector<4x16x16xbf16>
    "tpu.trace_start"() <{level = 10 : i32, message = "hqk,hkd->hqd"}> : () -> ()
    %cst_23 = arith.constant dense<0.000000e+00> : vector<4x16x32xf32>
    %63 = tpu.matmul %62, %47, %cst_23 {dimension_numbers = #tpu.dot_dimension_numbers<[2], [1], [1], [2], [0, 0, 0, 1, 1, 2], [0], [0]>} : vector<4x16x16xbf16>, vector<4x16x32xbf16>, vector<4x16x32xf32> -> vector<4x16x32xf32>
    "tpu.trace_stop"() : () -> ()
    %64 = tpu.transpose %63, [1, 0, 2] : vector<4x16x32xf32> -> vector<16x4x32xf32>
    %65 = vector.shape_cast %64 : vector<16x4x32xf32> to vector<16x128xf32>
    %c0_24 = arith.constant 0 : index
    %c0_25 = arith.constant 0 : index
    %c0_26 = arith.constant 0 : index
    %66 = vector.load %arg7[%c0_24, %c0_25, %c0_26] : memref<2x128x128xbf16, #tpu.memory_space<vmem>>, vector<1x128x128xbf16>
    %67 = vector.shape_cast %66 : vector<1x128x128xbf16> to vector<128x128xbf16>
    %68 = arith.truncf %65 : vector<16x128xf32> to vector<16x128xbf16>
    %cst_27 = arith.constant dense<0.000000e+00> : vector<16x128xf32>
    %69 = tpu.matmul %68, %67, %cst_27 {dimension_numbers = #tpu.dot_dimension_numbers<[1], [0], [0], [1], [0, 0, 1, 1], [], []>} : vector<16x128xbf16>, vector<128x128xbf16>, vector<16x128xf32> -> vector<16x128xf32>
    %c0_28 = arith.constant 0 : index
    %c0_29 = arith.constant 0 : index
    %c0_30 = arith.constant 0 : index
    %70 = vector.load %arg8[%c0_28, %c0_29, %c0_30] : memref<2x1x128xf32, #tpu.memory_space<vmem>>, vector<1x1x128xf32>
    %71 = vector.shape_cast %70 : vector<1x1x128xf32> to vector<1x128xf32>
    %72 = vector.broadcast %71 : vector<1x128xf32> to vector<16x128xf32>
    %73 = arith.addf %69, %72 : vector<16x128xf32>
    %74 = arith.addf %73, %27 : vector<16x128xf32>
    %c0_31 = arith.constant 0 : index
    %c0_32 = arith.constant 0 : index
    %c0_33 = arith.constant 0 : index
    %75 = vector.load %arg9[%c0_31, %c0_32, %c0_33] : memref<2x1x128xf32, #tpu.memory_space<vmem>>, vector<1x1x128xf32>
    %76 = vector.shape_cast %75 : vector<1x1x128xf32> to vector<1x128xf32>
    %c0_34 = arith.constant 0 : index
    %c0_35 = arith.constant 0 : index
    %c0_36 = arith.constant 0 : index
    %77 = vector.load %arg10[%c0_34, %c0_35, %c0_36] : memref<2x1x128xf32, #tpu.memory_space<vmem>>, vector<1x1x128xf32>
    %78 = vector.shape_cast %77 : vector<1x1x128xf32> to vector<1x128xf32>
    %cst_37 = arith.constant dense<0.000000e+00> : vector<16xf32>
    %79 = vector.multi_reduction <add>, %74, %cst_37 [1] : vector<16x128xf32> to vector<16xf32>
    %80 = vector.shape_cast %79 : vector<16xf32> to vector<16x1xf32>
    %cst_38 = arith.constant 1.280000e+02 : f32
    %81 = vector.broadcast %cst_38 : f32 to vector<16x1xf32>
    %82 = arith.divf %80, %81 : vector<16x1xf32>
    %83 = vector.broadcast %82 : vector<16x1xf32> to vector<16x128xf32>
    %84 = arith.subf %74, %83 : vector<16x128xf32>
    %85 = arith.mulf %84, %84 : vector<16x128xf32>
    %cst_39 = arith.constant dense<0.000000e+00> : vector<16xf32>
    %86 = vector.multi_reduction <add>, %85, %cst_39 [1] : vector<16x128xf32> to vector<16xf32>
    %87 = vector.shape_cast %86 : vector<16xf32> to vector<16x1xf32>
    %cst_40 = arith.constant 1.280000e+02 : f32
    %88 = vector.broadcast %cst_40 : f32 to vector<16x1xf32>
    %89 = arith.divf %87, %88 : vector<16x1xf32>
    %90 = vector.broadcast %82 : vector<16x1xf32> to vector<16x128xf32>
    %91 = arith.subf %74, %90 : vector<16x128xf32>
    %cst_41 = arith.constant 9.99999996E-13 : f32
    %92 = vector.broadcast %cst_41 : f32 to vector<16x1xf32>
    %93 = arith.addf %89, %92 : vector<16x1xf32>
    %94 = math.rsqrt %93 : vector<16x1xf32>
    %95 = vector.broadcast %94 : vector<16x1xf32> to vector<16x128xf32>
    %96 = arith.mulf %91, %95 : vector<16x128xf32>
    %97 = vector.broadcast %76 : vector<1x128xf32> to vector<16x128xf32>
    %98 = arith.mulf %96, %97 : vector<16x128xf32>
    %99 = vector.broadcast %78 : vector<1x128xf32> to vector<16x128xf32>
    %100 = arith.addf %98, %99 : vector<16x128xf32>
    %c0_42 = arith.constant 0 : index
    %c0_43 = arith.constant 0 : index
    %c0_44 = arith.constant 0 : index
    %101 = vector.load %arg11[%c0_42, %c0_43, %c0_44] : memref<2x128x256xbf16, #tpu.memory_space<vmem>>, vector<1x128x256xbf16>
    %102 = vector.shape_cast %101 : vector<1x128x256xbf16> to vector<128x256xbf16>
    %103 = arith.truncf %100 : vector<16x128xf32> to vector<16x128xbf16>
    %cst_45 = arith.constant dense<0.000000e+00> : vector<16x256xf32>
    %104 = tpu.matmul %103, %102, %cst_45 {dimension_numbers = #tpu.dot_dimension_numbers<[1], [0], [0], [1], [0, 0, 1, 1], [], []>} : vector<16x128xbf16>, vector<128x256xbf16>, vector<16x256xf32> -> vector<16x256xf32>
    %c0_46 = arith.constant 0 : index
    %c0_47 = arith.constant 0 : index
    %c0_48 = arith.constant 0 : index
    %105 = vector.load %arg12[%c0_46, %c0_47, %c0_48] : memref<2x1x256xf32, #tpu.memory_space<vmem>>, vector<1x1x256xf32>
    %106 = vector.shape_cast %105 : vector<1x1x256xf32> to vector<1x256xf32>
    %107 = vector.broadcast %106 : vector<1x256xf32> to vector<16x256xf32>
    %108 = arith.addf %104, %107 : vector<16x256xf32>
    %cst_49 = arith.constant 5.000000e-01 : f32
    %109 = vector.broadcast %cst_49 : f32 to vector<16x256xf32>
    %110 = arith.mulf %109, %108 : vector<16x256xf32>
    %cst_50 = arith.constant 4.471500e-02 : f32
    %111 = vector.broadcast %cst_50 : f32 to vector<16x256xf32>
    %112 = arith.mulf %111, %108 : vector<16x256xf32>
    %113 = arith.mulf %112, %108 : vector<16x256xf32>
    %114 = arith.mulf %113, %108 : vector<16x256xf32>
    %115 = arith.addf %108, %114 : vector<16x256xf32>
    %cst_51 = arith.constant 0.797884583 : f32
    %116 = vector.broadcast %cst_51 : f32 to vector<16x256xf32>
    %117 = arith.mulf %116, %115 : vector<16x256xf32>
    %118 = math.tanh %117 : vector<16x256xf32>
    %cst_52 = arith.constant 1.000000e+00 : f32
    %119 = vector.broadcast %cst_52 : f32 to vector<16x256xf32>
    %120 = arith.addf %119, %118 : vector<16x256xf32>
    %121 = arith.mulf %110, %120 : vector<16x256xf32>
    %c0_53 = arith.constant 0 : index
    %c0_54 = arith.constant 0 : index
    %c0_55 = arith.constant 0 : index
    %122 = vector.load %arg13[%c0_53, %c0_54, %c0_55] : memref<2x256x128xbf16, #tpu.memory_space<vmem>>, vector<1x256x128xbf16>
    %123 = vector.shape_cast %122 : vector<1x256x128xbf16> to vector<256x128xbf16>
    %124 = arith.truncf %121 : vector<16x256xf32> to vector<16x256xbf16>
    %cst_56 = arith.constant dense<0.000000e+00> : vector<16x128xf32>
    %125 = tpu.matmul %124, %123, %cst_56 {dimension_numbers = #tpu.dot_dimension_numbers<[1], [0], [0], [1], [0, 0, 1, 1], [], []>} : vector<16x256xbf16>, vector<256x128xbf16>, vector<16x128xf32> -> vector<16x128xf32>
    %c0_57 = arith.constant 0 : index
    %c0_58 = arith.constant 0 : index
    %c0_59 = arith.constant 0 : index
    %126 = vector.load %arg14[%c0_57, %c0_58, %c0_59] : memref<2x1x128xf32, #tpu.memory_space<vmem>>, vector<1x1x128xf32>
    %127 = vector.shape_cast %126 : vector<1x1x128xf32> to vector<1x128xf32>
    %128 = vector.broadcast %127 : vector<1x128xf32> to vector<16x128xf32>
    %129 = arith.addf %125, %128 : vector<16x128xf32>
    %130 = arith.addf %129, %100 : vector<16x128xf32>
    %c0_60 = arith.constant 0 : index
    %c0_61 = arith.constant 0 : index
    %c0_62 = arith.constant 0 : index
    %131 = vector.load %arg15[%c0_60, %c0_61, %c0_62] : memref<2x1x128xf32, #tpu.memory_space<vmem>>, vector<1x1x128xf32>
    %132 = vector.shape_cast %131 : vector<1x1x128xf32> to vector<1x128xf32>
    %c0_63 = arith.constant 0 : index
    %c0_64 = arith.constant 0 : index
    %c0_65 = arith.constant 0 : index
    %133 = vector.load %arg16[%c0_63, %c0_64, %c0_65] : memref<2x1x128xf32, #tpu.memory_space<vmem>>, vector<1x1x128xf32>
    %134 = vector.shape_cast %133 : vector<1x1x128xf32> to vector<1x128xf32>
    %cst_66 = arith.constant dense<0.000000e+00> : vector<16xf32>
    %135 = vector.multi_reduction <add>, %130, %cst_66 [1] : vector<16x128xf32> to vector<16xf32>
    %136 = vector.shape_cast %135 : vector<16xf32> to vector<16x1xf32>
    %cst_67 = arith.constant 1.280000e+02 : f32
    %137 = vector.broadcast %cst_67 : f32 to vector<16x1xf32>
    %138 = arith.divf %136, %137 : vector<16x1xf32>
    %139 = vector.broadcast %138 : vector<16x1xf32> to vector<16x128xf32>
    %140 = arith.subf %130, %139 : vector<16x128xf32>
    %141 = arith.mulf %140, %140 : vector<16x128xf32>
    %cst_68 = arith.constant dense<0.000000e+00> : vector<16xf32>
    %142 = vector.multi_reduction <add>, %141, %cst_68 [1] : vector<16x128xf32> to vector<16xf32>
    %143 = vector.shape_cast %142 : vector<16xf32> to vector<16x1xf32>
    %cst_69 = arith.constant 1.280000e+02 : f32
    %144 = vector.broadcast %cst_69 : f32 to vector<16x1xf32>
    %145 = arith.divf %143, %144 : vector<16x1xf32>
    %146 = vector.broadcast %138 : vector<16x1xf32> to vector<16x128xf32>
    %147 = arith.subf %130, %146 : vector<16x128xf32>
    %cst_70 = arith.constant 9.99999996E-13 : f32
    %148 = vector.broadcast %cst_70 : f32 to vector<16x1xf32>
    %149 = arith.addf %145, %148 : vector<16x1xf32>
    %150 = math.rsqrt %149 : vector<16x1xf32>
    %151 = vector.broadcast %150 : vector<16x1xf32> to vector<16x128xf32>
    %152 = arith.mulf %147, %151 : vector<16x128xf32>
    %153 = vector.broadcast %132 : vector<1x128xf32> to vector<16x128xf32>
    %154 = arith.mulf %152, %153 : vector<16x128xf32>
    %155 = vector.broadcast %134 : vector<1x128xf32> to vector<16x128xf32>
    %156 = arith.addf %154, %155 : vector<16x128xf32>
    %c1 = arith.constant 1 : index
    %c0_71 = arith.constant 0 : index
    %c0_72 = arith.constant 0 : index
    %157 = vector.load %arg5[%c1, %c0_71, %c0_72] : memref<2x128x384xbf16, #tpu.memory_space<vmem>>, vector<1x128x384xbf16>
    %158 = vector.shape_cast %157 : vector<1x128x384xbf16> to vector<128x384xbf16>
    %159 = arith.truncf %156 : vector<16x128xf32> to vector<16x128xbf16>
    %cst_73 = arith.constant dense<0.000000e+00> : vector<16x384xf32>
    %160 = tpu.matmul %159, %158, %cst_73 {dimension_numbers = #tpu.dot_dimension_numbers<[1], [0], [0], [1], [0, 0, 1, 1], [], []>} : vector<16x128xbf16>, vector<128x384xbf16>, vector<16x384xf32> -> vector<16x384xf32>
    %c1_74 = arith.constant 1 : index
    %c0_75 = arith.constant 0 : index
    %c0_76 = arith.constant 0 : index
    %161 = vector.load %arg6[%c1_74, %c0_75, %c0_76] : memref<2x1x384xf32, #tpu.memory_space<vmem>>, vector<1x1x384xf32>
    %162 = vector.shape_cast %161 : vector<1x1x384xf32> to vector<1x384xf32>
    %163 = vector.broadcast %162 : vector<1x384xf32> to vector<16x384xf32>
    %164 = arith.addf %160, %163 : vector<16x384xf32>
    %165 = vector.extract_strided_slice %164 {offsets = [0, 0], sizes = [16, 128], strides = [1, 1]} : vector<16x384xf32> to vector<16x128xf32>
    %166 = vector.shape_cast %165 : vector<16x128xf32> to vector<16x4x32xf32>
    %167 = tpu.transpose %166, [1, 0, 2] : vector<16x4x32xf32> -> vector<4x16x32xf32>
    %168 = arith.truncf %167 : vector<4x16x32xf32> to vector<4x16x32xbf16>
    %169 = vector.extract_strided_slice %164 {offsets = [0, 128], sizes = [16, 128], strides = [1, 1]} : vector<16x384xf32> to vector<16x128xf32>
    %170 = vector.shape_cast %169 : vector<16x128xf32> to vector<16x4x32xf32>
    %171 = tpu.transpose %170, [1, 0, 2] : vector<16x4x32xf32> -> vector<4x16x32xf32>
    %172 = arith.truncf %171 : vector<4x16x32xf32> to vector<4x16x32xbf16>
    %173 = vector.extract_strided_slice %164 {offsets = [0, 256], sizes = [16, 128], strides = [1, 1]} : vector<16x384xf32> to vector<16x128xf32>
    %174 = vector.shape_cast %173 : vector<16x128xf32> to vector<16x4x32xf32>
    %175 = tpu.transpose %174, [1, 0, 2] : vector<16x4x32xf32> -> vector<4x16x32xf32>
    %176 = arith.truncf %175 : vector<4x16x32xf32> to vector<4x16x32xbf16>
    "tpu.trace_start"() <{level = 10 : i32, message = "hqd,hkd->hqk"}> : () -> ()
    %cst_77 = arith.constant dense<0.000000e+00> : vector<4x16x16xf32>
    %177 = tpu.matmul %168, %172, %cst_77 {dimension_numbers = #tpu.dot_dimension_numbers<[2], [2], [1], [1], [0, 0, 0, 1, 1, 1], [0], [0]>} : vector<4x16x32xbf16>, vector<4x16x32xbf16>, vector<4x16x16xf32> -> vector<4x16x16xf32>
    "tpu.trace_stop"() : () -> ()
    %178 = vector.shape_cast %3 : vector<16x16xf32> to vector<1x16x16xf32>
    %179 = vector.broadcast %178 : vector<1x16x16xf32> to vector<4x16x16xf32>
    %180 = arith.addf %177, %179 : vector<4x16x16xf32>
    %cst_78 = arith.constant dense<0xFF800000> : vector<4x16xf32>
    %181 = vector.multi_reduction <maximumf>, %180, %cst_78 [2] : vector<4x16x16xf32> to vector<4x16xf32>
    %182 = vector.shape_cast %181 : vector<4x16xf32> to vector<4x16x1xf32>
    %183 = vector.broadcast %182 : vector<4x16x1xf32> to vector<4x16x16xf32>
    %184 = arith.subf %180, %183 : vector<4x16x16xf32>
    %185 = math.exp %184 : vector<4x16x16xf32>
    %cst_79 = arith.constant dense<0.000000e+00> : vector<4x16xf32>
    %186 = vector.multi_reduction <add>, %185, %cst_79 [2] : vector<4x16x16xf32> to vector<4x16xf32>
    %187 = vector.shape_cast %186 : vector<4x16xf32> to vector<4x16x1xf32>
    %188 = tpu.reciprocal %187 {approx = true} : vector<4x16x1xf32> -> vector<4x16x1xf32>
    %189 = vector.broadcast %188 : vector<4x16x1xf32> to vector<4x16x16xf32>
    %190 = arith.mulf %185, %189 : vector<4x16x16xf32>
    %191 = arith.truncf %190 : vector<4x16x16xf32> to vector<4x16x16xbf16>
    "tpu.trace_start"() <{level = 10 : i32, message = "hqk,hkd->hqd"}> : () -> ()
    %cst_80 = arith.constant dense<0.000000e+00> : vector<4x16x32xf32>
    %192 = tpu.matmul %191, %176, %cst_80 {dimension_numbers = #tpu.dot_dimension_numbers<[2], [1], [1], [2], [0, 0, 0, 1, 1, 2], [0], [0]>} : vector<4x16x16xbf16>, vector<4x16x32xbf16>, vector<4x16x32xf32> -> vector<4x16x32xf32>
    "tpu.trace_stop"() : () -> ()
    %193 = tpu.transpose %192, [1, 0, 2] : vector<4x16x32xf32> -> vector<16x4x32xf32>
    %194 = vector.shape_cast %193 : vector<16x4x32xf32> to vector<16x128xf32>
    %c1_81 = arith.constant 1 : index
    %c0_82 = arith.constant 0 : index
    %c0_83 = arith.constant 0 : index
    %195 = vector.load %arg7[%c1_81, %c0_82, %c0_83] : memref<2x128x128xbf16, #tpu.memory_space<vmem>>, vector<1x128x128xbf16>
    %196 = vector.shape_cast %195 : vector<1x128x128xbf16> to vector<128x128xbf16>
    %197 = arith.truncf %194 : vector<16x128xf32> to vector<16x128xbf16>
    %cst_84 = arith.constant dense<0.000000e+00> : vector<16x128xf32>
    %198 = tpu.matmul %197, %196, %cst_84 {dimension_numbers = #tpu.dot_dimension_numbers<[1], [0], [0], [1], [0, 0, 1, 1], [], []>} : vector<16x128xbf16>, vector<128x128xbf16>, vector<16x128xf32> -> vector<16x128xf32>
    %c1_85 = arith.constant 1 : index
    %c0_86 = arith.constant 0 : index
    %c0_87 = arith.constant 0 : index
    %199 = vector.load %arg8[%c1_85, %c0_86, %c0_87] : memref<2x1x128xf32, #tpu.memory_space<vmem>>, vector<1x1x128xf32>
    %200 = vector.shape_cast %199 : vector<1x1x128xf32> to vector<1x128xf32>
    %201 = vector.broadcast %200 : vector<1x128xf32> to vector<16x128xf32>
    %202 = arith.addf %198, %201 : vector<16x128xf32>
    %203 = arith.addf %202, %156 : vector<16x128xf32>
    %c1_88 = arith.constant 1 : index
    %c0_89 = arith.constant 0 : index
    %c0_90 = arith.constant 0 : index
    %204 = vector.load %arg9[%c1_88, %c0_89, %c0_90] : memref<2x1x128xf32, #tpu.memory_space<vmem>>, vector<1x1x128xf32>
    %205 = vector.shape_cast %204 : vector<1x1x128xf32> to vector<1x128xf32>
    %c1_91 = arith.constant 1 : index
    %c0_92 = arith.constant 0 : index
    %c0_93 = arith.constant 0 : index
    %206 = vector.load %arg10[%c1_91, %c0_92, %c0_93] : memref<2x1x128xf32, #tpu.memory_space<vmem>>, vector<1x1x128xf32>
    %207 = vector.shape_cast %206 : vector<1x1x128xf32> to vector<1x128xf32>
    %cst_94 = arith.constant dense<0.000000e+00> : vector<16xf32>
    %208 = vector.multi_reduction <add>, %203, %cst_94 [1] : vector<16x128xf32> to vector<16xf32>
    %209 = vector.shape_cast %208 : vector<16xf32> to vector<16x1xf32>
    %cst_95 = arith.constant 1.280000e+02 : f32
    %210 = vector.broadcast %cst_95 : f32 to vector<16x1xf32>
    %211 = arith.divf %209, %210 : vector<16x1xf32>
    %212 = vector.broadcast %211 : vector<16x1xf32> to vector<16x128xf32>
    %213 = arith.subf %203, %212 : vector<16x128xf32>
    %214 = arith.mulf %213, %213 : vector<16x128xf32>
    %cst_96 = arith.constant dense<0.000000e+00> : vector<16xf32>
    %215 = vector.multi_reduction <add>, %214, %cst_96 [1] : vector<16x128xf32> to vector<16xf32>
    %216 = vector.shape_cast %215 : vector<16xf32> to vector<16x1xf32>
    %cst_97 = arith.constant 1.280000e+02 : f32
    %217 = vector.broadcast %cst_97 : f32 to vector<16x1xf32>
    %218 = arith.divf %216, %217 : vector<16x1xf32>
    %219 = vector.broadcast %211 : vector<16x1xf32> to vector<16x128xf32>
    %220 = arith.subf %203, %219 : vector<16x128xf32>
    %cst_98 = arith.constant 9.99999996E-13 : f32
    %221 = vector.broadcast %cst_98 : f32 to vector<16x1xf32>
    %222 = arith.addf %218, %221 : vector<16x1xf32>
    %223 = math.rsqrt %222 : vector<16x1xf32>
    %224 = vector.broadcast %223 : vector<16x1xf32> to vector<16x128xf32>
    %225 = arith.mulf %220, %224 : vector<16x128xf32>
    %226 = vector.broadcast %205 : vector<1x128xf32> to vector<16x128xf32>
    %227 = arith.mulf %225, %226 : vector<16x128xf32>
    %228 = vector.broadcast %207 : vector<1x128xf32> to vector<16x128xf32>
    %229 = arith.addf %227, %228 : vector<16x128xf32>
    %c1_99 = arith.constant 1 : index
    %c0_100 = arith.constant 0 : index
    %c0_101 = arith.constant 0 : index
    %230 = vector.load %arg11[%c1_99, %c0_100, %c0_101] : memref<2x128x256xbf16, #tpu.memory_space<vmem>>, vector<1x128x256xbf16>
    %231 = vector.shape_cast %230 : vector<1x128x256xbf16> to vector<128x256xbf16>
    %232 = arith.truncf %229 : vector<16x128xf32> to vector<16x128xbf16>
    %cst_102 = arith.constant dense<0.000000e+00> : vector<16x256xf32>
    %233 = tpu.matmul %232, %231, %cst_102 {dimension_numbers = #tpu.dot_dimension_numbers<[1], [0], [0], [1], [0, 0, 1, 1], [], []>} : vector<16x128xbf16>, vector<128x256xbf16>, vector<16x256xf32> -> vector<16x256xf32>
    %c1_103 = arith.constant 1 : index
    %c0_104 = arith.constant 0 : index
    %c0_105 = arith.constant 0 : index
    %234 = vector.load %arg12[%c1_103, %c0_104, %c0_105] : memref<2x1x256xf32, #tpu.memory_space<vmem>>, vector<1x1x256xf32>
    %235 = vector.shape_cast %234 : vector<1x1x256xf32> to vector<1x256xf32>
    %236 = vector.broadcast %235 : vector<1x256xf32> to vector<16x256xf32>
    %237 = arith.addf %233, %236 : vector<16x256xf32>
    %cst_106 = arith.constant 5.000000e-01 : f32
    %238 = vector.broadcast %cst_106 : f32 to vector<16x256xf32>
    %239 = arith.mulf %238, %237 : vector<16x256xf32>
    %cst_107 = arith.constant 4.471500e-02 : f32
    %240 = vector.broadcast %cst_107 : f32 to vector<16x256xf32>
    %241 = arith.mulf %240, %237 : vector<16x256xf32>
    %242 = arith.mulf %241, %237 : vector<16x256xf32>
    %243 = arith.mulf %242, %237 : vector<16x256xf32>
    %244 = arith.addf %237, %243 : vector<16x256xf32>
    %cst_108 = arith.constant 0.797884583 : f32
    %245 = vector.broadcast %cst_108 : f32 to vector<16x256xf32>
    %246 = arith.mulf %245, %244 : vector<16x256xf32>
    %247 = math.tanh %246 : vector<16x256xf32>
    %cst_109 = arith.constant 1.000000e+00 : f32
    %248 = vector.broadcast %cst_109 : f32 to vector<16x256xf32>
    %249 = arith.addf %248, %247 : vector<16x256xf32>
    %250 = arith.mulf %239, %249 : vector<16x256xf32>
    %c1_110 = arith.constant 1 : index
    %c0_111 = arith.constant 0 : index
    %c0_112 = arith.constant 0 : index
    %251 = vector.load %arg13[%c1_110, %c0_111, %c0_112] : memref<2x256x128xbf16, #tpu.memory_space<vmem>>, vector<1x256x128xbf16>
    %252 = vector.shape_cast %251 : vector<1x256x128xbf16> to vector<256x128xbf16>
    %253 = arith.truncf %250 : vector<16x256xf32> to vector<16x256xbf16>
    %cst_113 = arith.constant dense<0.000000e+00> : vector<16x128xf32>
    %254 = tpu.matmul %253, %252, %cst_113 {dimension_numbers = #tpu.dot_dimension_numbers<[1], [0], [0], [1], [0, 0, 1, 1], [], []>} : vector<16x256xbf16>, vector<256x128xbf16>, vector<16x128xf32> -> vector<16x128xf32>
    %c1_114 = arith.constant 1 : index
    %c0_115 = arith.constant 0 : index
    %c0_116 = arith.constant 0 : index
    %255 = vector.load %arg14[%c1_114, %c0_115, %c0_116] : memref<2x1x128xf32, #tpu.memory_space<vmem>>, vector<1x1x128xf32>
    %256 = vector.shape_cast %255 : vector<1x1x128xf32> to vector<1x128xf32>
    %257 = vector.broadcast %256 : vector<1x128xf32> to vector<16x128xf32>
    %258 = arith.addf %254, %257 : vector<16x128xf32>
    %259 = arith.addf %258, %229 : vector<16x128xf32>
    %c1_117 = arith.constant 1 : index
    %c0_118 = arith.constant 0 : index
    %c0_119 = arith.constant 0 : index
    %260 = vector.load %arg15[%c1_117, %c0_118, %c0_119] : memref<2x1x128xf32, #tpu.memory_space<vmem>>, vector<1x1x128xf32>
    %261 = vector.shape_cast %260 : vector<1x1x128xf32> to vector<1x128xf32>
    %c1_120 = arith.constant 1 : index
    %c0_121 = arith.constant 0 : index
    %c0_122 = arith.constant 0 : index
    %262 = vector.load %arg16[%c1_120, %c0_121, %c0_122] : memref<2x1x128xf32, #tpu.memory_space<vmem>>, vector<1x1x128xf32>
    %263 = vector.shape_cast %262 : vector<1x1x128xf32> to vector<1x128xf32>
    %cst_123 = arith.constant dense<0.000000e+00> : vector<16xf32>
    %264 = vector.multi_reduction <add>, %259, %cst_123 [1] : vector<16x128xf32> to vector<16xf32>
    %265 = vector.shape_cast %264 : vector<16xf32> to vector<16x1xf32>
    %cst_124 = arith.constant 1.280000e+02 : f32
    %266 = vector.broadcast %cst_124 : f32 to vector<16x1xf32>
    %267 = arith.divf %265, %266 : vector<16x1xf32>
    %268 = vector.broadcast %267 : vector<16x1xf32> to vector<16x128xf32>
    %269 = arith.subf %259, %268 : vector<16x128xf32>
    %270 = arith.mulf %269, %269 : vector<16x128xf32>
    %cst_125 = arith.constant dense<0.000000e+00> : vector<16xf32>
    %271 = vector.multi_reduction <add>, %270, %cst_125 [1] : vector<16x128xf32> to vector<16xf32>
    %272 = vector.shape_cast %271 : vector<16xf32> to vector<16x1xf32>
    %cst_126 = arith.constant 1.280000e+02 : f32
    %273 = vector.broadcast %cst_126 : f32 to vector<16x1xf32>
    %274 = arith.divf %272, %273 : vector<16x1xf32>
    %275 = vector.broadcast %267 : vector<16x1xf32> to vector<16x128xf32>
    %276 = arith.subf %259, %275 : vector<16x128xf32>
    %cst_127 = arith.constant 9.99999996E-13 : f32
    %277 = vector.broadcast %cst_127 : f32 to vector<16x1xf32>
    %278 = arith.addf %274, %277 : vector<16x1xf32>
    %279 = math.rsqrt %278 : vector<16x1xf32>
    %280 = vector.broadcast %279 : vector<16x1xf32> to vector<16x128xf32>
    %281 = arith.mulf %276, %280 : vector<16x128xf32>
    %282 = vector.broadcast %261 : vector<1x128xf32> to vector<16x128xf32>
    %283 = arith.mulf %281, %282 : vector<16x128xf32>
    %284 = vector.broadcast %263 : vector<1x128xf32> to vector<16x128xf32>
    %285 = arith.addf %283, %284 : vector<16x128xf32>
    %286 = vector.shape_cast %285 : vector<16x128xf32> to vector<2x8x128xf32>
    %287 = vector.extract_strided_slice %286 {offsets = [0, 0, 0], sizes = [2, 1, 128], strides = [1, 1, 1]} : vector<2x8x128xf32> to vector<2x1x128xf32>
    %288 = vector.shape_cast %287 : vector<2x1x128xf32> to vector<2x128xf32>
    %c0_128 = arith.constant 0 : index
    %c0_129 = arith.constant 0 : index
    %289 = vector.load %arg17[%c0_128, %c0_129] : memref<128x256xbf16, #tpu.memory_space<vmem>>, vector<128x256xbf16>
    %290 = arith.truncf %288 : vector<2x128xf32> to vector<2x128xbf16>
    %cst_130 = arith.constant dense<0.000000e+00> : vector<2x256xf32>
    %291 = tpu.matmul %290, %289, %cst_130 {dimension_numbers = #tpu.dot_dimension_numbers<[1], [0], [0], [1], [0, 0, 1, 1], [], []>} : vector<2x128xbf16>, vector<128x256xbf16>, vector<2x256xf32> -> vector<2x256xf32>
    %c0_131 = arith.constant 0 : index
    %c0_132 = arith.constant 0 : index
    %292 = vector.load %arg18[%c0_131, %c0_132] : memref<1x256xf32, #tpu.memory_space<vmem>>, vector<1x256xf32>
    %293 = vector.broadcast %292 : vector<1x256xf32> to vector<2x256xf32>
    %294 = arith.addf %291, %293 : vector<2x256xf32>
    %cst_133 = arith.constant 0.000000e+00 : f32
    %295 = vector.broadcast %cst_133 : f32 to vector<2x256xf32>
    %296 = arith.maximumf %294, %295 : vector<2x256xf32>
    %c0_134 = arith.constant 0 : index
    %c0_135 = arith.constant 0 : index
    %297 = vector.load %arg19[%c0_134, %c0_135] : memref<256x128xbf16, #tpu.memory_space<vmem>>, vector<256x128xbf16>
    %298 = arith.truncf %296 : vector<2x256xf32> to vector<2x256xbf16>
    %cst_136 = arith.constant dense<0.000000e+00> : vector<2x128xf32>
    %299 = tpu.matmul %298, %297, %cst_136 {dimension_numbers = #tpu.dot_dimension_numbers<[1], [0], [0], [1], [0, 0, 1, 1], [], []>} : vector<2x256xbf16>, vector<256x128xbf16>, vector<2x128xf32> -> vector<2x128xf32>
    %c0_137 = arith.constant 0 : index
    %c0_138 = arith.constant 0 : index
    %300 = vector.load %arg20[%c0_137, %c0_138] : memref<1x128xf32, #tpu.memory_space<vmem>>, vector<1x128xf32>
    %301 = vector.broadcast %300 : vector<1x128xf32> to vector<2x128xf32>
    %302 = arith.addf %299, %301 : vector<2x128xf32>
    %c0_139 = arith.constant 0 : index
    %c0_140 = arith.constant 0 : index
    %c0_141 = arith.constant 0 : index
    %303 = vector.load %arg21[%c0_139, %c0_140, %c0_141] : memref<1x2x128xf32, #tpu.memory_space<vmem>>, vector<1x2x128xf32>
    %304 = vector.shape_cast %303 : vector<1x2x128xf32> to vector<2x128xf32>
    %305 = vector.shape_cast %302 : vector<2x128xf32> to vector<1x2x128xf32>
    tpu.vector_store %arg21[%c0_139, %c0_140, %c0_141], %305 {strides = array<i32>} : memref<1x2x128xf32, #tpu.memory_space<vmem>>, vector<1x2x128xf32>,
    return
  }
  func.func @transform_0(%arg0: i32) -> (i32, i32, i32) {
    %c0_i32 = arith.constant 0 : i32
    %c0_i32_0 = arith.constant 0 : i32
    %c0_i32_1 = arith.constant 0 : i32
    return %arg0, %c0_i32, %c0_i32_0 : i32, i32, i32
  }
  func.func @transform_1(%arg0: i32) -> (i32, i32, i32) {
    %c0_i32 = arith.constant 0 : i32
    %c0_i32_0 = arith.constant 0 : i32
    %c0_i32_1 = arith.constant 0 : i32
    return %arg0, %c0_i32, %c0_i32_0 : i32, i32, i32
  }
  func.func @transform_2(%arg0: i32) -> (i32, i32) {
    %c0_i32 = arith.constant 0 : i32
    %c0_i32_0 = arith.constant 0 : i32
    %c0_i32_1 = arith.constant 0 : i32
    return %c0_i32, %c0_i32_0 : i32, i32
  }
  func.func @transform_3(%arg0: i32) -> (i32, i32) {
    %c0_i32 = arith.constant 0 : i32
    %c0_i32_0 = arith.constant 0 : i32
    %c0_i32_1 = arith.constant 0 : i32
    return %c0_i32, %c0_i32_0 : i32, i32
  }
  func.func @transform_4(%arg0: i32) -> (i32, i32, i32) {
    %c0_i32 = arith.constant 0 : i32
    %c0_i32_0 = arith.constant 0 : i32
    %c0_i32_1 = arith.constant 0 : i32
    %c0_i32_2 = arith.constant 0 : i32
    return %c0_i32, %c0_i32_0, %c0_i32_1 : i32, i32, i32
  }
  func.func @transform_5(%arg0: i32) -> (i32, i32, i32) {
    %c0_i32 = arith.constant 0 : i32
    %c0_i32_0 = arith.constant 0 : i32
    %c0_i32_1 = arith.constant 0 : i32
    %c0_i32_2 = arith.constant 0 : i32
    return %c0_i32, %c0_i32_0, %c0_i32_1 : i32, i32, i32
  }
  func.func @transform_6(%arg0: i32) -> (i32, i32, i32) {
    %c0_i32 = arith.constant 0 : i32
    %c0_i32_0 = arith.constant 0 : i32
    %c0_i32_1 = arith.constant 0 : i32
    %c0_i32_2 = arith.constant 0 : i32
    return %c0_i32, %c0_i32_0, %c0_i32_1 : i32, i32, i32
  }
  func.func @transform_7(%arg0: i32) -> (i32, i32, i32) {
    %c0_i32 = arith.constant 0 : i32
    %c0_i32_0 = arith.constant 0 : i32
    %c0_i32_1 = arith.constant 0 : i32
    %c0_i32_2 = arith.constant 0 : i32
    return %c0_i32, %c0_i32_0, %c0_i32_1 : i32, i32, i32
  }
  func.func @transform_8(%arg0: i32) -> (i32, i32, i32) {
    %c0_i32 = arith.constant 0 : i32
    %c0_i32_0 = arith.constant 0 : i32
    %c0_i32_1 = arith.constant 0 : i32
    %c0_i32_2 = arith.constant 0 : i32
    return %c0_i32, %c0_i32_0, %c0_i32_1 : i32, i32, i32
  }
  func.func @transform_9(%arg0: i32) -> (i32, i32, i32) {
    %c0_i32 = arith.constant 0 : i32
    %c0_i32_0 = arith.constant 0 : i32
    %c0_i32_1 = arith.constant 0 : i32
    %c0_i32_2 = arith.constant 0 : i32
    return %c0_i32, %c0_i32_0, %c0_i32_1 : i32, i32, i32
  }
  func.func @transform_10(%arg0: i32) -> (i32, i32, i32) {
    %c0_i32 = arith.constant 0 : i32
    %c0_i32_0 = arith.constant 0 : i32
    %c0_i32_1 = arith.constant 0 : i32
    %c0_i32_2 = arith.constant 0 : i32
    return %c0_i32, %c0_i32_0, %c0_i32_1 : i32, i32, i32
  }
  func.func @transform_11(%arg0: i32) -> (i32, i32, i32) {
    %c0_i32 = arith.constant 0 : i32
    %c0_i32_0 = arith.constant 0 : i32
    %c0_i32_1 = arith.constant 0 : i32
    %c0_i32_2 = arith.constant 0 : i32
    return %c0_i32, %c0_i32_0, %c0_i32_1 : i32, i32, i32
  }
  func.func @transform_12(%arg0: i32) -> (i32, i32, i32) {
    %c0_i32 = arith.constant 0 : i32
    %c0_i32_0 = arith.constant 0 : i32
    %c0_i32_1 = arith.constant 0 : i32
    %c0_i32_2 = arith.constant 0 : i32
    return %c0_i32, %c0_i32_0, %c0_i32_1 : i32, i32, i32
  }
  func.func @transform_13(%arg0: i32) -> (i32, i32, i32) {
    %c0_i32 = arith.constant 0 : i32
    %c0_i32_0 = arith.constant 0 : i32
    %c0_i32_1 = arith.constant 0 : i32
    %c0_i32_2 = arith.constant 0 : i32
    return %c0_i32, %c0_i32_0, %c0_i32_1 : i32, i32, i32
  }
  func.func @transform_14(%arg0: i32) -> (i32, i32, i32) {
    %c0_i32 = arith.constant 0 : i32
    %c0_i32_0 = arith.constant 0 : i32
    %c0_i32_1 = arith.constant 0 : i32
    %c0_i32_2 = arith.constant 0 : i32
    return %c0_i32, %c0_i32_0, %c0_i32_1 : i32, i32, i32
  }
  func.func @transform_15(%arg0: i32) -> (i32, i32, i32) {
    %c0_i32 = arith.constant 0 : i32
    %c0_i32_0 = arith.constant 0 : i32
    %c0_i32_1 = arith.constant 0 : i32
    %c0_i32_2 = arith.constant 0 : i32
    return %c0_i32, %c0_i32_0, %c0_i32_1 : i32, i32, i32
  }
  func.func @transform_16(%arg0: i32) -> (i32, i32) {
    %c0_i32 = arith.constant 0 : i32
    %c0_i32_0 = arith.constant 0 : i32
    %c0_i32_1 = arith.constant 0 : i32
    return %c0_i32, %c0_i32_0 : i32, i32
  }
  func.func @transform_17(%arg0: i32) -> (i32, i32) {
    %c0_i32 = arith.constant 0 : i32
    %c0_i32_0 = arith.constant 0 : i32
    %c0_i32_1 = arith.constant 0 : i32
    return %c0_i32, %c0_i32_0 : i32, i32
  }
  func.func @transform_18(%arg0: i32) -> (i32, i32) {
    %c0_i32 = arith.constant 0 : i32
    %c0_i32_0 = arith.constant 0 : i32
    %c0_i32_1 = arith.constant 0 : i32
    return %c0_i32, %c0_i32_0 : i32, i32
  }
  func.func @transform_19(%arg0: i32) -> (i32, i32) {
    %c0_i32 = arith.constant 0 : i32
    %c0_i32_0 = arith.constant 0 : i32
    %c0_i32_1 = arith.constant 0 : i32
    return %c0_i32, %c0_i32_0 : i32, i32
  }
  func.func @transform_20(%arg0: i32) -> (i32, i32, i32) {
    %c0_i32 = arith.constant 0 : i32
    %c0_i32_0 = arith.constant 0 : i32
    %c0_i32_1 = arith.constant 0 : i32
    return %arg0, %c0_i32, %c0_i32_0 : i32, i32, i32
  }
}

</mosaic_0001>

<llo_original>
// kernel: hint_forward.1
$region0: #{hint_forward.1}
  #allocation0 [shape = 'u32[]', space=smem, size = 0x4, offset = 0x4, fixed_abs, tag = 'smem constant byte address 0x4 - core index']
  #allocation1 [shape = 'u32[72,128]{1,0:T(1,128)}', space=vmem, size = 0x9000, scoped, tag = 'internal scratch']
  %s0 = inlined_call_operand.vmem [shape: f32[1,16,128], index: 0, kind: input, shape index: {}]
  %s1 = inlined_call_operand.vmem [shape: f32[1,16,16], index: 1, kind: input, shape index: {}]
  %s2 = inlined_call_operand.vmem [shape: f32[1,128], index: 2, kind: input, shape index: {}]
  %s3 = inlined_call_operand.vmem [shape: f32[1,128], index: 3, kind: input, shape index: {}]
  %s4 = inlined_call_operand.hbm [shape: bf16[2,128,384], index: 4, kind: input, shape index: {}]
  %s5 = inlined_call_operand.vmem [shape: f32[2,1,384], index: 5, kind: input, shape index: {}]
  %s6 = inlined_call_operand.vmem [shape: bf16[2,128,128], index: 6, kind: input, shape index: {}]
  %s7 = inlined_call_operand.vmem [shape: f32[2,1,128], index: 7, kind: input, shape index: {}]
  %s8 = inlined_call_operand.vmem [shape: f32[2,1,128], index: 8, kind: input, shape index: {}]
  %s9 = inlined_call_operand.vmem [shape: f32[2,1,128], index: 9, kind: input, shape index: {}]
  %s10 = inlined_call_operand.hbm [shape: bf16[2,128,256], index: 10, kind: input, shape index: {}]
  %s11 = inlined_call_operand.vmem [shape: f32[2,1,256], index: 11, kind: input, shape index: {}]
  %s12 = inlined_call_operand.hbm [shape: bf16[2,256,128], index: 12, kind: input, shape index: {}]
  %s13 = inlined_call_operand.vmem [shape: f32[2,1,128], index: 13, kind: input, shape index: {}]
  %s14 = inlined_call_operand.vmem [shape: f32[2,1,128], index: 14, kind: input, shape index: {}]
  %s15 = inlined_call_operand.vmem [shape: f32[2,1,128], index: 15, kind: input, shape index: {}]
  %s16 = inlined_call_operand.hbm [shape: bf16[128,256], index: 16, kind: input, shape index: {}]
  %s17 = inlined_call_operand.vmem [shape: f32[1,256], index: 17, kind: input, shape index: {}]
  %s18 = inlined_call_operand.hbm [shape: bf16[256,128], index: 18, kind: input, shape index: {}]
  %s19 = inlined_call_operand.vmem [shape: f32[1,128], index: 19, kind: input, shape index: {}]
  %s20 = inlined_call_operand.hbm [shape: f32[1,2,128], index: 20, kind: output, shape index: {}]
  %s21 = sld [smem:[#allocation0]]
  $region110: #{hint_forward.1} parent=0
    _
  %s23 = ssub.s32 1, %s21
  %s24 = scalar_select 0, %s23, %s21
  $region1: #{hint_forward.1} parent=0
    #allocation2 [shape = 'u8[196608]{0}', space=vmem, size = 0x30000, scoped, tag = 'input window, operand 4, single buffered']
    #allocation3 [shape = 's32[1]{0}', space=sflag, size = 0x4, scoped, tag = 'scoped memory for hint_forward.1']
    #allocation4 [shape = 's32[1]{0}', space=sflag, size = 0x4, scoped, tag = 'scoped memory for hint_forward.1']
    #allocation5 [shape = 'u8[131072]{0}', space=vmem, size = 0x20000, scoped, tag = 'input window, operand 10, single buffered']
    #allocation6 [shape = 's32[1]{0}', space=sflag, size = 0x4, scoped, tag = 'scoped memory for hint_forward.1']
    #allocation7 [shape = 'u8[131072]{0}', space=vmem, size = 0x20000, scoped, tag = 'input window, operand 12, single buffered']
    #allocation8 [shape = 'u8[65536]{0}', space=vmem, size = 0x10000, scoped, tag = 'input window, operand 16, single buffered']
    #allocation9 [shape = 's32[1]{0}', space=sflag, size = 0x4, scoped, tag = 'scoped memory for hint_forward.1']
    #allocation10 [shape = 'u8[65536]{0}', space=vmem, size = 0x10000, scoped, tag = 'input window, operand 18, single buffered']
    #allocation11 [shape = 'u8[1024]{0}', space=vmem, size = 0x400, scoped, tag = 'output window, operand 0, single buffered']
    %25 = vsyncpa [#allocation3], 0
    %26 = vsyncpa [#allocation6], 0
    %27 = vsyncpa [#allocation9], 0
    %28 = vsyncpa [#allocation4], 0
    // Predicated region
    $region2: #{hint_forward.1} parent=1 // pred_check
      _
    $region3: #{hint_forward.1} parent=1 // pred_check_branch
      %30 = sbr.rel (0) target = $region5
    $region4: #{hint_forward.1} parent=1 // pred_region
      _
    $region5: #{hint_forward.1} parent=1 // pred_fallthru
      _
    // Predicated region
    $region6: #{hint_forward.1} parent=1 // pred_check
      _
    $region7: #{hint_forward.1} parent=1 // pred_check_branch
      %32 = sbr.rel (0) target = $region9
    $region8: #{hint_forward.1} parent=1 // pred_region
      _
    $region9: #{hint_forward.1} parent=1 // pred_fallthru
      _
    // Predicated region
    $region10: #{hint_forward.1} parent=1 // pred_check
      _
    $region11: #{hint_forward.1} parent=1 // pred_check_branch
      %34 = sbr.rel (0) target = $region13
    $region12: #{hint_forward.1} parent=1 // pred_region
      _
    $region13: #{hint_forward.1} parent=1 // pred_fallthru
      _
    // Predicated region
    $region14: #{hint_forward.1} parent=1 // pred_check
      _
    $region15: #{hint_forward.1} parent=1 // pred_check_branch
      %36 = sbr.rel (0) target = $region17
    $region16: #{hint_forward.1} parent=1 // pred_region
      _
    $region17: #{hint_forward.1} parent=1 // pred_fallthru
      _
    // Predicated region
    $region18: #{hint_forward.1} parent=1 // pred_check
      _
    $region19: #{hint_forward.1} parent=1 // pred_check_branch
      %38 = sbr.rel (0) target = $region21
    $region20: #{hint_forward.1} parent=1 // pred_region
      %40 = vsyncadd [#allocation3], 0
      %s41 = sshll.u32 %s4, 4
      %s42 = int_to_ptr.hbm [resolvable:$true] %s41
      %s43 = sshll.u32 [#allocation2], 4
      %s44 = int_to_ptr.vmem [resolvable:$true] %s43
      %49 = dma.hbm_to_vmem [thread:$0]  %s42, 6144, %s44, [#allocation3], 192, 192, 12
    $region21: #{hint_forward.1} parent=1 // pred_fallthru
      _
    // Predicated region
    $region22: #{hint_forward.1} parent=1 // pred_check
      _
    $region23: #{hint_forward.1} parent=1 // pred_check_branch
      %51 = sbr.rel (0) target = $region25
    $region24: #{hint_forward.1} parent=1 // pred_region
      _
    $region25: #{hint_forward.1} parent=1 // pred_fallthru
      _
    // Predicated region
    $region26: #{hint_forward.1} parent=1 // pred_check
      _
    $region27: #{hint_forward.1} parent=1 // pred_check_branch
      %53 = sbr.rel (0) target = $region29
    $region28: #{hint_forward.1} parent=1 // pred_region
      _
    $region29: #{hint_forward.1} parent=1 // pred_fallthru
      _
    // Predicated region
    $region30: #{hint_forward.1} parent=1 // pred_check
      _
    $region31: #{hint_forward.1} parent=1 // pred_check_branch
      %55 = sbr.rel (0) target = $region33
    $region32: #{hint_forward.1} parent=1 // pred_region
      _
    $region33: #{hint_forward.1} parent=1 // pred_fallthru
      _
    // Predicated region
    $region34: #{hint_forward.1} parent=1 // pred_check
      _
    $region35: #{hint_forward.1} parent=1 // pred_check_branch
      %57 = sbr.rel (0) target = $region37
    $region36: #{hint_forward.1} parent=1 // pred_region
      _
    $region37: #{hint_forward.1} parent=1 // pred_fallthru
      _
    // Predicated region
    $region38: #{hint_forward.1} parent=1 // pred_check
      _
    $region39: #{hint_forward.1} parent=1 // pred_check_branch
      %59 = sbr.rel (0) target = $region41
    $region40: #{hint_forward.1} parent=1 // pred_region
      _
    $region41: #{hint_forward.1} parent=1 // pred_fallthru
      _
    // Predicated region
    $region42: #{hint_forward.1} parent=1 // pred_check
      _
    $region43: #{hint_forward.1} parent=1 // pred_check_branch
      %61 = sbr.rel (0) target = $region45
    $region44: #{hint_forward.1} parent=1 // pred_region
      %63 = vsyncadd [#allocation6], 0
      %s64 = sshll.u32 %s10, 4
      %s65 = int_to_ptr.hbm [resolvable:$true] %s64
      %s66 = sshll.u32 [#allocation5], 4
      %s67 = int_to_ptr.vmem [resolvable:$true] %s66
      %72 = dma.hbm_to_vmem [thread:$0]  %s65, 4096, %s67, [#allocation6], 128, 128, 8
    $region45: #{hint_forward.1} parent=1 // pred_fallthru
      _
    // Predicated region
    $region46: #{hint_forward.1} parent=1 // pred_check
      _
    $region47: #{hint_forward.1} parent=1 // pred_check_branch
      %74 = sbr.rel (0) target = $region49
    $region48: #{hint_forward.1} parent=1 // pred_region
      _
    $region49: #{hint_forward.1} parent=1 // pred_fallthru
      _
    // Predicated region
    $region50: #{hint_forward.1} parent=1 // pred_check
      _
    $region51: #{hint_forward.1} parent=1 // pred_check_branch
      %76 = sbr.rel (0) target = $region53
    $region52: #{hint_forward.1} parent=1 // pred_region
      %78 = vsyncadd [#allocation6], 0
      %s79 = sshll.u32 %s12, 4
      %s80 = int_to_ptr.hbm [resolvable:$true] %s79
      %s81 = sshll.u32 [#allocation7], 4
      %s82 = int_to_ptr.vmem [resolvable:$true] %s81
      %87 = dma.hbm_to_vmem [thread:$0]  %s80, 4096, %s82, [#allocation6], 64, 64, 4
    $region53: #{hint_forward.1} parent=1 // pred_fallthru
      _
    // Predicated region
    $region54: #{hint_forward.1} parent=1 // pred_check
      _
    $region55: #{hint_forward.1} parent=1 // pred_check_branch
      %89 = sbr.rel (0) target = $region57
    $region56: #{hint_forward.1} parent=1 // pred_region
      _
    $region57: #{hint_forward.1} parent=1 // pred_fallthru
      _
    // Predicated region
    $region58: #{hint_forward.1} parent=1 // pred_check
      _
    $region59: #{hint_forward.1} parent=1 // pred_check_branch
      %91 = sbr.rel (0) target = $region61
    $region60: #{hint_forward.1} parent=1 // pred_region
      _
    $region61: #{hint_forward.1} parent=1 // pred_fallthru
      _
    // Predicated region
    $region62: #{hint_forward.1} parent=1 // pred_check
      _
    $region63: #{hint_forward.1} parent=1 // pred_check_branch
      %93 = sbr.rel (0) target = $region65
    $region64: #{hint_forward.1} parent=1 // pred_region
      _
    $region65: #{hint_forward.1} parent=1 // pred_fallthru
      _
    // Predicated region
    $region66: #{hint_forward.1} parent=1 // pred_check
      _
    $region67: #{hint_forward.1} parent=1 // pred_check_branch
      %95 = sbr.rel (0) target = $region69
    $region68: #{hint_forward.1} parent=1 // pred_region
      %97 = vsyncadd [#allocation9], 0
      %s98 = sshll.u32 %s16, 4
      %s99 = int_to_ptr.hbm [resolvable:$true] %s98
      %s100 = sshll.u32 [#allocation8], 4
      %s101 = int_to_ptr.vmem [resolvable:$true] %s100
      %106 = dma.hbm_to_vmem [thread:$0]  %s99, 2048, %s101, [#allocation9], 128, 128, 8
    $region69: #{hint_forward.1} parent=1 // pred_fallthru
      _
    // Predicated region
    $region70: #{hint_forward.1} parent=1 // pred_check
      _
    $region71: #{hint_forward.1} parent=1 // pred_check_branch
      %108 = sbr.rel (0) target = $region73
    $region72: #{hint_forward.1} parent=1 // pred_region
      _
    $region73: #{hint_forward.1} parent=1 // pred_fallthru
      _
    // Predicated region
    $region74: #{hint_forward.1} parent=1 // pred_check
      _
    $region75: #{hint_forward.1} parent=1 // pred_check_branch
      %110 = sbr.rel (0) target = $region77
    $region76: #{hint_forward.1} parent=1 // pred_region
      %112 = vsyncadd [#allocation9], 0
      %s113 = sshll.u32 %s18, 4
      %s114 = int_to_ptr.hbm [resolvable:$true] %s113
      %s115 = sshll.u32 [#allocation10], 4
      %s116 = int_to_ptr.vmem [resolvable:$true] %s115
      %121 = dma.hbm_to_vmem [thread:$0]  %s114, 2048, %s116, [#allocation9], 64, 64, 4
    $region77: #{hint_forward.1} parent=1 // pred_fallthru
      _
    // Predicated region
    $region78: #{hint_forward.1} parent=1 // pred_check
      _
    $region79: #{hint_forward.1} parent=1 // pred_check_branch
      %123 = sbr.rel (0) target = $region81
    $region80: #{hint_forward.1} parent=1 // pred_region
      _
    $region81: #{hint_forward.1} parent=1 // pred_fallthru
      _
    // Predicated region
    $region82: #{hint_forward.1} parent=1 // pred_check
      _
    $region83: #{hint_forward.1} parent=1 // pred_check_branch
      %125 = sbr.rel (0) target = $region85
    $region84: #{hint_forward.1} parent=1 // pred_region
      %127 = dma.done [#allocation3], 6144
    $region85: #{hint_forward.1} parent=1 // pred_fallthru
      _
    // Predicated region
    $region86: #{hint_forward.1} parent=1 // pred_check
      _
    $region87: #{hint_forward.1} parent=1 // pred_check_branch
      %129 = sbr.rel (0) target = $region89
    $region88: #{hint_forward.1} parent=1 // pred_region
      %131 = dma.done [#allocation6], 4096
    $region89: #{hint_forward.1} parent=1 // pred_fallthru
      _
    // Predicated region
    $region90: #{hint_forward.1} parent=1 // pred_check
      _
    $region91: #{hint_forward.1} parent=1 // pred_check_branch
      %133 = sbr.rel (0) target = $region93
    $region92: #{hint_forward.1} parent=1 // pred_region
      %135 = dma.done [#allocation6], 4096
    $region93: #{hint_forward.1} parent=1 // pred_fallthru
      _
    // Predicated region
    $region94: #{hint_forward.1} parent=1 // pred_check
      _
    $region95: #{hint_forward.1} parent=1 // pred_check_branch
      %137 = sbr.rel (0) target = $region97
    $region96: #{hint_forward.1} parent=1 // pred_region
      %139 = dma.done [#allocation9], 2048
    $region97: #{hint_forward.1} parent=1 // pred_fallthru
      _
    // Predicated region
    $region98: #{hint_forward.1} parent=1 // pred_check
      _
    $region99: #{hint_forward.1} parent=1 // pred_check_branch
      %141 = sbr.rel (0) target = $region101
    $region100: #{hint_forward.1} parent=1 // pred_region
      %143 = dma.done [#allocation9], 2048
    $region101: #{hint_forward.1} parent=1 // pred_fallthru
      _
    %v145 = vld [vmem:[%s0] sm:$0xff]
    %v146 = vld [vmem:[%s0 + $0x8] sm:$0xff]
    %v147 = vld [vmem:[%s1] sm:$0xff]
    %v148 = vld [vmem:[%s1 + $0x8] sm:$0xff]
    %v149 = vld [vmem:[%s2] sm:$0x1]
    %v150 = vld [vmem:[%s3] sm:$0x1]
    %151 = vadd.xlane.f32.xlu0 %v145
    %v152 = vpop.xlane.xlu0 %151
    %153 = vadd.xlane.f32.xlu0 %v146
    %v154 = vpop.xlane.xlu0 %153
    %v155 = vrcp.pop 128.0
    %v156 = vmul.f32 128.0, %v155
    %v157 = vsub.f32 1.0, %v156
    %v158 = vmul.f32 %v155, %v157
    %v159 = vadd.f32 %v155, %v158
    %vm160 = vweird.f32 %v155
    %v161 = vsel %vm160, %v155, %v159
    %v162 = vmul.f32 %v152, %v161
    %v163 = vmul.f32 %v154, %v161
    %v164 = vsub.f32 %v145, %v162
    %v165 = vsub.f32 %v146, %v163
    %v166 = vmul.f32 %v164, %v164
    %v167 = vmul.f32 %v165, %v165
    %168 = vadd.xlane.f32.xlu0 %v166
    %v169 = vpop.xlane.xlu0 %168
    %170 = vadd.xlane.f32.xlu0 %v167
    %v171 = vpop.xlane.xlu0 %170
    %v172 = vmul.f32 %v169, %v161
    %v173 = vmul.f32 %v171, %v161
    %v174 = vadd.f32 %v172, 1e-12
    %v175 = vadd.f32 %v173, 1e-12
    %v176 = vrsqrt.pop %v174
    %v177 = vmul.f32 %v176, %v174
    %v178 = vmul.f32 %v177, %v176
    %v179 = vmul.f32 0.5, %v178
    %v180 = vsub.f32 1.5, %v179
    %v181 = vmul.f32 %v176, %v180
    %vm182 = vweird.f32 %v174
    %vm183 = vweird.f32 %v176
    %vm184 = vmor %vm182, %vm183
    %v185 = vsel %vm184, %v176, %v181
    %v186 = vrsqrt.pop %v175
    %v187 = vmul.f32 %v186, %v175
    %v188 = vmul.f32 %v187, %v186
    %v189 = vmul.f32 0.5, %v188
    %v190 = vsub.f32 1.5, %v189
    %v191 = vmul.f32 %v186, %v190
    %vm192 = vweird.f32 %v175
    %vm193 = vweird.f32 %v186
    %vm194 = vmor %vm192, %vm193
    %v195 = vsel %vm194, %v186, %v191
    %v196 = vmul.f32 %v164, %v185
    %v197 = vmul.f32 %v165, %v195
    %v199 = vperm.slane %v149, 0
    %v201 = vmul.f32 %v196, %v199
    %v202 = vmul.f32 %v197, %v199
    %v204 = vperm.slane %v150, 0
    %v206 = vadd.f32 %v201, %v204
    %v207 = vadd.f32 %v202, %v204
    %v208 = vld [vmem:[#allocation2] sm:$0xff]
    %v209 = vld [vmem:[#allocation2 + $0x8] sm:$0xf]
    %v210 = vld [vmem:[#allocation2 + $0xc] sm:$0xff]
    %v211 = vld [vmem:[#allocation2 + $0x14] sm:$0xf]
    %v212 = vld [vmem:[#allocation2 + $0x18] sm:$0xff]
    %v213 = vld [vmem:[#allocation2 + $0x20] sm:$0xf]
    %v214 = vld [vmem:[#allocation2 + $0x24] sm:$0xff]
    %v215 = vld [vmem:[#allocation2 + $0x2c] sm:$0xf]
    %v216 = vld [vmem:[#allocation2 + $0x30] sm:$0xff]
    %v217 = vld [vmem:[#allocation2 + $0x38] sm:$0xf]
    %v218 = vld [vmem:[#allocation2 + $0x3c] sm:$0xff]
    %v219 = vld [vmem:[#allocation2 + $0x44] sm:$0xf]
    %v220 = vld [vmem:[#allocation2 + $0x48] sm:$0xff]
    %v221 = vld [vmem:[#allocation2 + $0x50] sm:$0xf]
    %v222 = vld [vmem:[#allocation2 + $0x54] sm:$0xff]
    %v223 = vld [vmem:[#allocation2 + $0x5c] sm:$0xf]
    %v224 = vld [vmem:[#allocation2 + $0x60] sm:$0xff]
    %v225 = vld [vmem:[#allocation2 + $0x68] sm:$0xf]
    %v226 = vld [vmem:[#allocation2 + $0x6c] sm:$0xff]
    %v227 = vld [vmem:[#allocation2 + $0x74] sm:$0xf]
    %v228 = vld [vmem:[#allocation2 + $0x78] sm:$0xff]
    %v229 = vld [vmem:[#allocation2 + $0x80] sm:$0xf]
    %v230 = vld [vmem:[#allocation2 + $0x84] sm:$0xff]
    %v231 = vld [vmem:[#allocation2 + $0x8c] sm:$0xf]
    %v232 = vld [vmem:[#allocation2 + $0x90] sm:$0xff]
    %v233 = vld [vmem:[#allocation2 + $0x98] sm:$0xf]
    %v234 = vld [vmem:[#allocation2 + $0x9c] sm:$0xff]
    %v235 = vld [vmem:[#allocation2 + $0xa4] sm:$0xf]
    %v236 = vld [vmem:[#allocation2 + $0xa8] sm:$0xff]
    %v237 = vld [vmem:[#allocation2 + $0xb0] sm:$0xf]
    %v238 = vld [vmem:[#allocation2 + $0xb4] sm:$0xff]
    %v239 = vld [vmem:[#allocation2 + $0xbc] sm:$0xf]
    %v240 = vpack.c.bf16 %v207, %v206
    %v241 = vld [vmem:[%s5] sm:$0x7]
    %v243 = vperm.slane %v241, 0
    %v244 = vperm.slane %v241, 1
    %v245 = vperm.slane %v241, 2
    %v281 = vunpack.c.l.b16 %v208
    %v282 = vunpack.c.h.b16 %v208
    %v283 = vunpack.c.l.b16 %v209
    %v284 = vunpack.c.l.b16 %v210
    %v285 = vunpack.c.h.b16 %v210
    %v286 = vunpack.c.l.b16 %v211
    %v287 = vunpack.c.l.b16 %v212
    %v288 = vunpack.c.h.b16 %v212
    %v289 = vunpack.c.l.b16 %v213
    %v290 = vunpack.c.l.b16 %v214
    %v291 = vunpack.c.h.b16 %v214
    %v292 = vunpack.c.l.b16 %v215
    %v293 = vunpack.c.l.b16 %v216
    %v294 = vunpack.c.h.b16 %v216
    %v295 = vunpack.c.l.b16 %v217
    %v296 = vunpack.c.l.b16 %v218
    %v297 = vunpack.c.h.b16 %v218
    %v298 = vunpack.c.l.b16 %v219
    %v299 = vunpack.c.l.b16 %v220
    %v300 = vunpack.c.h.b16 %v220
    %v301 = vunpack.c.l.b16 %v221
    %v302 = vunpack.c.l.b16 %v222
    %v303 = vunpack.c.h.b16 %v222
    %v304 = vunpack.c.l.b16 %v223
    %v305 = vunpack.c.l.b16 %v224
    %v306 = vunpack.c.h.b16 %v224
    %v307 = vunpack.c.l.b16 %v225
    %v308 = vunpack.c.l.b16 %v226
    %v309 = vunpack.c.h.b16 %v226
    %v310 = vunpack.c.l.b16 %v227
    %v311 = vunpack.c.l.b16 %v228
    %v312 = vunpack.c.h.b16 %v228
    %v313 = vunpack.c.l.b16 %v229
    %v314 = vunpack.c.l.b16 %v230
    %v315 = vunpack.c.h.b16 %v230
    %v316 = vunpack.c.l.b16 %v231
    %v317 = vunpack.c.l.b16 %v232
    %v318 = vunpack.c.h.b16 %v232
    %v319 = vunpack.c.l.b16 %v233
    %v320 = vunpack.c.l.b16 %v234
    %v321 = vunpack.c.h.b16 %v234
    %v322 = vunpack.c.l.b16 %v235
    %v323 = vunpack.c.l.b16 %v236
    %v324 = vunpack.c.h.b16 %v236
    %v325 = vunpack.c.l.b16 %v237
    %v326 = vunpack.c.l.b16 %v238
    %v327 = vunpack.c.h.b16 %v238
    %v328 = vunpack.c.l.b16 %v239
    %v329 = vpack.c.b16 %v284, %v281
    %v330 = vpack.c.b16 %v285, %v282
    %v331 = vpack.c.b16 %v286, %v283
    %v332 = vpack.c.b16 %v290, %v287
    %v333 = vpack.c.b16 %v291, %v288
    %v334 = vpack.c.b16 %v292, %v289
    %v335 = vpack.c.b16 %v296, %v293
    %v336 = vpack.c.b16 %v297, %v294
    %v337 = vpack.c.b16 %v298, %v295
    %v338 = vpack.c.b16 %v302, %v299
    %v339 = vpack.c.b16 %v303, %v300
    %v340 = vpack.c.b16 %v304, %v301
    %v341 = vpack.c.b16 %v308, %v305
    %v342 = vpack.c.b16 %v309, %v306
    %v343 = vpack.c.b16 %v310, %v307
    %v344 = vpack.c.b16 %v314, %v311
    %v345 = vpack.c.b16 %v315, %v312
    %v346 = vpack.c.b16 %v316, %v313
    %v347 = vpack.c.b16 %v320, %v317
    %v348 = vpack.c.b16 %v321, %v318
    %v349 = vpack.c.b16 %v322, %v319
    %v350 = vpack.c.b16 %v326, %v323
    %v351 = vpack.c.b16 %v327, %v324
    %v352 = vpack.c.b16 %v328, %v325
    %377 = vmatpush.bf16.msra.mxu0 %v350
    %378 = vmatpush.bf16.msra.mxu0 %v347
    %379 = vmatpush.bf16.msra.mxu0 %v344
    %380 = vmatpush.bf16.msra.mxu0 %v341
    %381 = vmatpush.bf16.msra.mxu0 %v338
    %382 = vmatpush.bf16.msra.mxu0 %v335
    %383 = vmatpush.bf16.msra.mxu0 %v332
    %384 = vmatpush.bf16.msra.mxu0 %v329
    %385 = vmatmul.bf16.gmra.mxu0 %v240
    %v386 = vpop.f32.mrf.mxu0
    %v387 = vadd.f32 %v243, %v386
    %v388 = vpop.f32.mrf.mxu0
    %v389 = vadd.f32 %v243, %v388
    %390 = vdwg.mxu0
    %391 = vmatpush.bf16.msra.mxu0 %v351
    %392 = vmatpush.bf16.msra.mxu0 %v348
    %393 = vmatpush.bf16.msra.mxu0 %v345
    %394 = vmatpush.bf16.msra.mxu0 %v342
    %395 = vmatpush.bf16.msra.mxu0 %v339
    %396 = vmatpush.bf16.msra.mxu0 %v336
    %397 = vmatpush.bf16.msra.mxu0 %v333
    %398 = vmatpush.bf16.msra.mxu0 %v330
    %399 = vmatmul.bf16.gmra.mxu0 %v240
    %v400 = vpop.f32.mrf.mxu0
    %v401 = vadd.f32 %v244, %v400
    %v402 = vpop.f32.mrf.mxu0
    %v403 = vadd.f32 %v244, %v402
    %404 = vdwg.mxu0
    %405 = vmatpush.bf16.msra.mxu0 %v352
    %406 = vmatpush.bf16.msra.mxu0 %v349
    %407 = vmatpush.bf16.msra.mxu0 %v346
    %408 = vmatpush.bf16.msra.mxu0 %v343
    %409 = vmatpush.bf16.msra.mxu0 %v340
    %410 = vmatpush.bf16.msra.mxu0 %v337
    %411 = vmatpush.bf16.msra.mxu0 %v334
    %412 = vmatpush.bf16.msra.mxu0 %v331
    %413 = vmatmul.bf16.gmra.mxu0 %v240
    %v414 = vpop.f32.mrf.mxu0
    %v415 = vadd.f32 %v245, %v414
    %v416 = vpop.f32.mrf.mxu0
    %v417 = vadd.f32 %v245, %v416
    %418 = vdwg.mxu0
    %421 = vrot.lane.b32.xlu0 %v387, 96
    %v422 = vpop.permute.xlu0 %421
    %423 = vrot.lane.b32.xlu0 %v389, 96
    %v424 = vpop.permute.xlu0 %423
    %427 = vrot.lane.b32.xlu0 %v387, 64
    %v428 = vpop.permute.xlu0 %427
    %429 = vrot.lane.b32.xlu0 %v389, 64
    %v430 = vpop.permute.xlu0 %429
    %433 = vrot.lane.b32.xlu0 %v387, 32
    %v434 = vpop.permute.xlu0 %433
    %435 = vrot.lane.b32.xlu0 %v389, 32
    %v436 = vpop.permute.xlu0 %435
    %v439 = vrot.slane %v428, 4
    %vm440 = vcmask 1047556
    %v441 = vsel %vm440, %v439, %v387
    %v442 = vrot.slane %v387, 4
    %v443 = vsel %vm440, %v428, %v442
    %v445 = vunpack.c.l.s4 1983009808
    %v446 = vunpack.c.0.s8 %v445
    %v447 = vperm.slane %v441, %v446
    %v449 = vunpack.c.l.s4 1983009808
    %v450 = vunpack.c.0.s8 %v449
    %v451 = vperm.slane %v443, %v450
    %v452 = vrot.slane %v434, 4
    %v453 = vsel %vm440, %v452, %v422
    %v454 = vrot.slane %v422, 4
    %v455 = vsel %vm440, %v434, %v454
    %v457 = vunpack.c.l.s4 1983009808
    %v458 = vunpack.c.0.s8 %v457
    %v459 = vperm.slane %v453, %v458
    %v461 = vunpack.c.l.s4 1983009808
    %v462 = vunpack.c.0.s8 %v461
    %v463 = vperm.slane %v455, %v462
    %v464 = vrot.slane %v459, 4
    %v465 = vsel %vm440, %v464, %v447
    %v466 = vrot.slane %v447, 4
    %v467 = vsel %vm440, %v459, %v466
    %v469 = vunpack.c.l.s4 1934713408
    %v470 = vunpack.c.0.s8 %v469
    %v471 = vperm.slane %v465, %v470
    %v473 = vunpack.c.l.s4 1934713408
    %v474 = vunpack.c.0.s8 %v473
    %v475 = vperm.slane %v467, %v474
    %v476 = vrot.slane %v463, 4
    %v477 = vsel %vm440, %v476, %v451
    %v478 = vrot.slane %v451, 4
    %v479 = vsel %vm440, %v463, %v478
    %v481 = vunpack.c.l.s4 1934713408
    %v482 = vunpack.c.0.s8 %v481
    %v483 = vperm.slane %v477, %v482
    %v485 = vunpack.c.l.s4 1934713408
    %v486 = vunpack.c.0.s8 %v485
    %v487 = vperm.slane %v479, %v486
    %v488 = vrot.slane %v471, 4
    %v489 = vsel %vm440, 0.0, %v488
    %v490 = vrot.slane %v475, 4
    %v491 = vsel %vm440, 0.0, %v490
    %v492 = vrot.slane %v483, 4
    %v493 = vsel %vm440, 0.0, %v492
    %v494 = vrot.slane %v487, 4
    %v495 = vsel %vm440, 0.0, %v494
    %v496 = vrot.slane %v430, 4
    %v497 = vsel %vm440, %v496, %v389
    %v498 = vrot.slane %v389, 4
    %v499 = vsel %vm440, %v430, %v498
    %v501 = vunpack.c.l.s4 1983009808
    %v502 = vunpack.c.0.s8 %v501
    %v503 = vperm.slane %v497, %v502
    %v505 = vunpack.c.l.s4 1983009808
    %v506 = vunpack.c.0.s8 %v505
    %v507 = vperm.slane %v499, %v506
    %v508 = vrot.slane %v436, 4
    %v509 = vsel %vm440, %v508, %v424
    %v510 = vrot.slane %v424, 4
    %v511 = vsel %vm440, %v436, %v510
    %v513 = vunpack.c.l.s4 1983009808
    %v514 = vunpack.c.0.s8 %v513
    %v515 = vperm.slane %v509, %v514
    %v517 = vunpack.c.l.s4 1983009808
    %v518 = vunpack.c.0.s8 %v517
    %v519 = vperm.slane %v511, %v518
    %v520 = vrot.slane %v515, 4
    %v521 = vsel %vm440, %v520, %v503
    %v522 = vrot.slane %v503, 4
    %v523 = vsel %vm440, %v515, %v522
    %v525 = vunpack.c.l.s4 1934713408
    %v526 = vunpack.c.0.s8 %v525
    %v527 = vperm.slane %v521, %v526
    %v529 = vunpack.c.l.s4 1934713408
    %v530 = vunpack.c.0.s8 %v529
    %v531 = vperm.slane %v523, %v530
    %v532 = vrot.slane %v519, 4
    %v533 = vsel %vm440, %v532, %v507
    %v534 = vrot.slane %v507, 4
    %v535 = vsel %vm440, %v519, %v534
    %v537 = vunpack.c.l.s4 1934713408
    %v538 = vunpack.c.0.s8 %v537
    %v539 = vperm.slane %v533, %v538
    %v541 = vunpack.c.l.s4 1934713408
    %v542 = vunpack.c.0.s8 %v541
    %v543 = vperm.slane %v535, %v542
    %v544 = vrot.slane %v527, 4
    %v545 = vsel %vm440, 0.0, %v544
    %v546 = vrot.slane %v531, 4
    %v547 = vsel %vm440, 0.0, %v546
    %v548 = vrot.slane %v539, 4
    %v549 = vsel %vm440, 0.0, %v548
    %v550 = vrot.slane %v543, 4
    %v551 = vsel %vm440, 0.0, %v550
    %v552 = vsel %vm440, %v490, %v471
    %v554 = vunpack.c.l.s4 1983009808
    %v555 = vunpack.c.0.s8 %v554
    %v556 = vperm.slane %v552, %v555
    %v557 = vrot.slane %v491, 4
    %v558 = vsel %vm440, %v557, %v489
    %v560 = vunpack.c.l.s4 1983009808
    %v561 = vunpack.c.0.s8 %v560
    %v562 = vperm.slane %v558, %v561
    %v563 = vsel %vm440, %v494, %v483
    %v565 = vunpack.c.l.s4 1983009808
    %v566 = vunpack.c.0.s8 %v565
    %v567 = vperm.slane %v563, %v566
    %v568 = vrot.slane %v495, 4
    %v569 = vsel %vm440, %v568, %v493
    %v571 = vunpack.c.l.s4 1983009808
    %v572 = vunpack.c.0.s8 %v571
    %v573 = vperm.slane %v569, %v572
    %v574 = vrot.slane %v562, 4
    %v575 = vsel %vm440, %v574, %v556
    %v576 = vrot.slane %v556, 4
    %v577 = vsel %vm440, %v562, %v576
    %v579 = vunpack.c.l.s4 1934713408
    %v580 = vunpack.c.0.s8 %v579
    %v581 = vperm.slane %v575, %v580
    %v583 = vunpack.c.l.s4 1934713408
    %v584 = vunpack.c.0.s8 %v583
    %v585 = vperm.slane %v577, %v584
    %v586 = vrot.slane %v573, 4
    %v587 = vsel %vm440, %v586, %v567
    %v588 = vrot.slane %v567, 4
    %v589 = vsel %vm440, %v573, %v588
    %v591 = vunpack.c.l.s4 1934713408
    %v592 = vunpack.c.0.s8 %v591
    %v593 = vperm.slane %v587, %v592
    %v595 = vunpack.c.l.s4 1934713408
    %v596 = vunpack.c.0.s8 %v595
    %v597 = vperm.slane %v589, %v596
    %v598 = vrot.slane %v593, 4
    %v599 = vsel %vm440, %v598, %v581
    %v600 = vrot.slane %v581, 4
    %v601 = vsel %vm440, %v593, %v600
    %v602 = vrot.slane %v597, 4
    %v603 = vsel %vm440, %v602, %v585
    %v604 = vrot.slane %v585, 4
    %v605 = vsel %vm440, %v597, %v604
    %v606 = vsel %vm440, %v546, %v527
    %v608 = vunpack.c.l.s4 1983009808
    %v609 = vunpack.c.0.s8 %v608
    %v610 = vperm.slane %v606, %v609
    %v611 = vrot.slane %v547, 4
    %v612 = vsel %vm440, %v611, %v545
    %v614 = vunpack.c.l.s4 1983009808
    %v615 = vunpack.c.0.s8 %v614
    %v616 = vperm.slane %v612, %v615
    %v617 = vsel %vm440, %v550, %v539
    %v619 = vunpack.c.l.s4 1983009808
    %v620 = vunpack.c.0.s8 %v619
    %v621 = vperm.slane %v617, %v620
    %v622 = vrot.slane %v551, 4
    %v623 = vsel %vm440, %v622, %v549
    %v625 = vunpack.c.l.s4 1983009808
    %v626 = vunpack.c.0.s8 %v625
    %v627 = vperm.slane %v623, %v626
    %v628 = vrot.slane %v616, 4
    %v629 = vsel %vm440, %v628, %v610
    %v630 = vrot.slane %v610, 4
    %v631 = vsel %vm440, %v616, %v630
    %v633 = vunpack.c.l.s4 1934713408
    %v634 = vunpack.c.0.s8 %v633
    %v635 = vperm.slane %v629, %v634
    %v637 = vunpack.c.l.s4 1934713408
    %v638 = vunpack.c.0.s8 %v637
    %v639 = vperm.slane %v631, %v638
    %v640 = vrot.slane %v627, 4
    %v641 = vsel %vm440, %v640, %v621
    %v642 = vrot.slane %v621, 4
    %v643 = vsel %vm440, %v627, %v642
    %v645 = vunpack.c.l.s4 1934713408
    %v646 = vunpack.c.0.s8 %v645
    %v647 = vperm.slane %v641, %v646
    %v649 = vunpack.c.l.s4 1934713408
    %v650 = vunpack.c.0.s8 %v649
    %v651 = vperm.slane %v643, %v650
    %v652 = vrot.slane %v647, 4
    %v653 = vsel %vm440, %v652, %v635
    %v654 = vrot.slane %v635, 4
    %v655 = vsel %vm440, %v647, %v654
    %v656 = vrot.slane %v651, 4
    %v657 = vsel %vm440, %v656, %v639
    %v658 = vrot.slane %v639, 4
    %v659 = vsel %vm440, %v651, %v658
    %v660 = vpack.c.bf16 %v599, %v599
    %v661 = vpack.c.bf16 %v653, %v653
    %v662 = vpack.c.bf16 %v601, %v601
    %v663 = vpack.c.bf16 %v655, %v655
    %v664 = vpack.c.bf16 %v603, %v603
    %v665 = vpack.c.bf16 %v657, %v657
    %v666 = vpack.c.bf16 %v605, %v605
    %v667 = vpack.c.bf16 %v659, %v659
    %670 = vrot.lane.b32.xlu0 %v401, 96
    %v671 = vpop.permute.xlu0 %670
    %672 = vrot.lane.b32.xlu0 %v403, 96
    %v673 = vpop.permute.xlu0 %672
    %676 = vrot.lane.b32.xlu0 %v401, 64
    %v677 = vpop.permute.xlu0 %676
    %678 = vrot.lane.b32.xlu0 %v403, 64
    %v679 = vpop.permute.xlu0 %678
    %682 = vrot.lane.b32.xlu0 %v401, 32
    %v683 = vpop.permute.xlu0 %682
    %684 = vrot.lane.b32.xlu0 %v403, 32
    %v685 = vpop.permute.xlu0 %684
    %v688 = vrot.slane %v677, 4
    %v689 = vsel %vm440, %v688, %v401
    %v690 = vrot.slane %v401, 4
    %v691 = vsel %vm440, %v677, %v690
    %v693 = vunpack.c.l.s4 1983009808
    %v694 = vunpack.c.0.s8 %v693
    %v695 = vperm.slane %v689, %v694
    %v697 = vunpack.c.l.s4 1983009808
    %v698 = vunpack.c.0.s8 %v697
    %v699 = vperm.slane %v691, %v698
    %v700 = vrot.slane %v683, 4
    %v701 = vsel %vm440, %v700, %v671
    %v702 = vrot.slane %v671, 4
    %v703 = vsel %vm440, %v683, %v702
    %v705 = vunpack.c.l.s4 1983009808
    %v706 = vunpack.c.0.s8 %v705
    %v707 = vperm.slane %v701, %v706
    %v709 = vunpack.c.l.s4 1983009808
    %v710 = vunpack.c.0.s8 %v709
    %v711 = vperm.slane %v703, %v710
    %v712 = vrot.slane %v707, 4
    %v713 = vsel %vm440, %v712, %v695
    %v714 = vrot.slane %v695, 4
    %v715 = vsel %vm440, %v707, %v714
    %v717 = vunpack.c.l.s4 1934713408
    %v718 = vunpack.c.0.s8 %v717
    %v719 = vperm.slane %v713, %v718
    %v721 = vunpack.c.l.s4 1934713408
    %v722 = vunpack.c.0.s8 %v721
    %v723 = vperm.slane %v715, %v722
    %v724 = vrot.slane %v711, 4
    %v725 = vsel %vm440, %v724, %v699
    %v726 = vrot.slane %v699, 4
    %v727 = vsel %vm440, %v711, %v726
    %v729 = vunpack.c.l.s4 1934713408
    %v730 = vunpack.c.0.s8 %v729
    %v731 = vperm.slane %v725, %v730
    %v733 = vunpack.c.l.s4 1934713408
    %v734 = vunpack.c.0.s8 %v733
    %v735 = vperm.slane %v727, %v734
    %v736 = vrot.slane %v719, 4
    %v737 = vsel %vm440, 0.0, %v736
    %v738 = vrot.slane %v723, 4
    %v739 = vsel %vm440, 0.0, %v738
    %v740 = vrot.slane %v731, 4
    %v741 = vsel %vm440, 0.0, %v740
    %v742 = vrot.slane %v735, 4
    %v743 = vsel %vm440, 0.0, %v742
    %v744 = vrot.slane %v679, 4
    %v745 = vsel %vm440, %v744, %v403
    %v746 = vrot.slane %v403, 4
    %v747 = vsel %vm440, %v679, %v746
    %v749 = vunpack.c.l.s4 1983009808
    %v750 = vunpack.c.0.s8 %v749
    %v751 = vperm.slane %v745, %v750
    %v753 = vunpack.c.l.s4 1983009808
    %v754 = vunpack.c.0.s8 %v753
    %v755 = vperm.slane %v747, %v754
    %v756 = vrot.slane %v685, 4
    %v757 = vsel %vm440, %v756, %v673
    %v758 = vrot.slane %v673, 4
    %v759 = vsel %vm440, %v685, %v758
    %v761 = vunpack.c.l.s4 1983009808
    %v762 = vunpack.c.0.s8 %v761
    %v763 = vperm.slane %v757, %v762
    %v765 = vunpack.c.l.s4 1983009808
    %v766 = vunpack.c.0.s8 %v765
    %v767 = vperm.slane %v759, %v766
    %v768 = vrot.slane %v763, 4
    %v769 = vsel %vm440, %v768, %v751
    %v770 = vrot.slane %v751, 4
    %v771 = vsel %vm440, %v763, %v770
    %v773 = vunpack.c.l.s4 1934713408
    %v774 = vunpack.c.0.s8 %v773
    %v775 = vperm.slane %v769, %v774
    %v777 = vunpack.c.l.s4 1934713408
    %v778 = vunpack.c.0.s8 %v777
    %v779 = vperm.slane %v771, %v778
    %v780 = vrot.slane %v767, 4
    %v781 = vsel %vm440, %v780, %v755
    %v782 = vrot.slane %v755, 4
    %v783 = vsel %vm440, %v767, %v782
    %v785 = vunpack.c.l.s4 1934713408
    %v786 = vunpack.c.0.s8 %v785
    %v787 = vperm.slane %v781, %v786
    %v789 = vunpack.c.l.s4 1934713408
    %v790 = vunpack.c.0.s8 %v789
    %v791 = vperm.slane %v783, %v790
    %v792 = vrot.slane %v775, 4
    %v793 = vsel %vm440, 0.0, %v792
    %v794 = vrot.slane %v779, 4
    %v795 = vsel %vm440, 0.0, %v794
    %v796 = vrot.slane %v787, 4
    %v797 = vsel %vm440, 0.0, %v796
    %v798 = vrot.slane %v791, 4
    %v799 = vsel %vm440, 0.0, %v798
    %v800 = vsel %vm440, %v738, %v719
    %v802 = vunpack.c.l.s4 1983009808
    %v803 = vunpack.c.0.s8 %v802
    %v804 = vperm.slane %v800, %v803
    %v805 = vrot.slane %v739, 4
    %v806 = vsel %vm440, %v805, %v737
    %v808 = vunpack.c.l.s4 1983009808
    %v809 = vunpack.c.0.s8 %v808
    %v810 = vperm.slane %v806, %v809
    %v811 = vsel %vm440, %v742, %v731
    %v813 = vunpack.c.l.s4 1983009808
    %v814 = vunpack.c.0.s8 %v813
    %v815 = vperm.slane %v811, %v814
    %v816 = vrot.slane %v743, 4
    %v817 = vsel %vm440, %v816, %v741
    %v819 = vunpack.c.l.s4 1983009808
    %v820 = vunpack.c.0.s8 %v819
    %v821 = vperm.slane %v817, %v820
    %v822 = vrot.slane %v810, 4
    %v823 = vsel %vm440, %v822, %v804
    %v824 = vrot.slane %v804, 4
    %v825 = vsel %vm440, %v810, %v824
    %v827 = vunpack.c.l.s4 1934713408
    %v828 = vunpack.c.0.s8 %v827
    %v829 = vperm.slane %v823, %v828
    %v831 = vunpack.c.l.s4 1934713408
    %v832 = vunpack.c.0.s8 %v831
    %v833 = vperm.slane %v825, %v832
    %v834 = vrot.slane %v821, 4
    %v835 = vsel %vm440, %v834, %v815
    %v836 = vrot.slane %v815, 4
    %v837 = vsel %vm440, %v821, %v836
    %v839 = vunpack.c.l.s4 1934713408
    %v840 = vunpack.c.0.s8 %v839
    %v841 = vperm.slane %v835, %v840
    %v843 = vunpack.c.l.s4 1934713408
    %v844 = vunpack.c.0.s8 %v843
    %v845 = vperm.slane %v837, %v844
    %v846 = vrot.slane %v841, 4
    %v847 = vsel %vm440, %v846, %v829
    %v848 = vrot.slane %v829, 4
    %v849 = vsel %vm440, %v841, %v848
    %v850 = vrot.slane %v845, 4
    %v851 = vsel %vm440, %v850, %v833
    %v852 = vrot.slane %v833, 4
    %v853 = vsel %vm440, %v845, %v852
    %v854 = vsel %vm440, %v794, %v775
    %v856 = vunpack.c.l.s4 1983009808
    %v857 = vunpack.c.0.s8 %v856
    %v858 = vperm.slane %v854, %v857
    %v859 = vrot.slane %v795, 4
    %v860 = vsel %vm440, %v859, %v793
    %v862 = vunpack.c.l.s4 1983009808
    %v863 = vunpack.c.0.s8 %v862
    %v864 = vperm.slane %v860, %v863
    %v865 = vsel %vm440, %v798, %v787
    %v867 = vunpack.c.l.s4 1983009808
    %v868 = vunpack.c.0.s8 %v867
    %v869 = vperm.slane %v865, %v868
    %v870 = vrot.slane %v799, 4
    %v871 = vsel %vm440, %v870, %v797
    %v873 = vunpack.c.l.s4 1983009808
    %v874 = vunpack.c.0.s8 %v873
    %v875 = vperm.slane %v871, %v874
    %v876 = vrot.slane %v864, 4
    %v877 = vsel %vm440, %v876, %v858
    %v878 = vrot.slane %v858, 4
    %v879 = vsel %vm440, %v864, %v878
    %v881 = vunpack.c.l.s4 1934713408
    %v882 = vunpack.c.0.s8 %v881
    %v883 = vperm.slane %v877, %v882
    %v885 = vunpack.c.l.s4 1934713408
    %v886 = vunpack.c.0.s8 %v885
    %v887 = vperm.slane %v879, %v886
    %v888 = vrot.slane %v875, 4
    %v889 = vsel %vm440, %v888, %v869
    %v890 = vrot.slane %v869, 4
    %v891 = vsel %vm440, %v875, %v890
    %v893 = vunpack.c.l.s4 1934713408
    %v894 = vunpack.c.0.s8 %v893
    %v895 = vperm.slane %v889, %v894
    %v897 = vunpack.c.l.s4 1934713408
    %v898 = vunpack.c.0.s8 %v897
    %v899 = vperm.slane %v891, %v898
    %v900 = vrot.slane %v895, 4
    %v901 = vsel %vm440, %v900, %v883
    %v902 = vrot.slane %v883, 4
    %v903 = vsel %vm440, %v895, %v902
    %v904 = vrot.slane %v899, 4
    %v905 = vsel %vm440, %v904, %v887
    %v906 = vrot.slane %v887, 4
    %v907 = vsel %vm440, %v899, %v906
    %v908 = vpack.c.bf16 %v847, %v847
    %v909 = vpack.c.bf16 %v901, %v901
    %v910 = vpack.c.bf16 %v849, %v849
    %v911 = vpack.c.bf16 %v903, %v903
    %v912 = vpack.c.bf16 %v851, %v851
    %v913 = vpack.c.bf16 %v905, %v905
    %v914 = vpack.c.bf16 %v853, %v853
    %v915 = vpack.c.bf16 %v907, %v907
    %918 = vrot.lane.b32.xlu0 %v415, 96
    %v919 = vpop.permute.xlu0 %918
    %920 = vrot.lane.b32.xlu0 %v417, 96
    %v921 = vpop.permute.xlu0 %920
    %924 = vrot.lane.b32.xlu0 %v415, 64
    %v925 = vpop.permute.xlu0 %924
    %926 = vrot.lane.b32.xlu0 %v417, 64
    %v927 = vpop.permute.xlu0 %926
    %930 = vrot.lane.b32.xlu0 %v415, 32
    %v931 = vpop.permute.xlu0 %930
    %932 = vrot.lane.b32.xlu0 %v417, 32
    %v933 = vpop.permute.xlu0 %932
    %v936 = vrot.slane %v925, 4
    %v937 = vsel %vm440, %v936, %v415
    %v938 = vrot.slane %v415, 4
    %v939 = vsel %vm440, %v925, %v938
    %v941 = vunpack.c.l.s4 1983009808
    %v942 = vunpack.c.0.s8 %v941
    %v943 = vperm.slane %v937, %v942
    %v945 = vunpack.c.l.s4 1983009808
    %v946 = vunpack.c.0.s8 %v945
    %v947 = vperm.slane %v939, %v946
    %v948 = vrot.slane %v931, 4
    %v949 = vsel %vm440, %v948, %v919
    %v950 = vrot.slane %v919, 4
    %v951 = vsel %vm440, %v931, %v950
    %v953 = vunpack.c.l.s4 1983009808
    %v954 = vunpack.c.0.s8 %v953
    %v955 = vperm.slane %v949, %v954
    %v957 = vunpack.c.l.s4 1983009808
    %v958 = vunpack.c.0.s8 %v957
    %v959 = vperm.slane %v951, %v958
    %v960 = vrot.slane %v955, 4
    %v961 = vsel %vm440, %v960, %v943
    %v962 = vrot.slane %v943, 4
    %v963 = vsel %vm440, %v955, %v962
    %v965 = vunpack.c.l.s4 1934713408
    %v966 = vunpack.c.0.s8 %v965
    %v967 = vperm.slane %v961, %v966
    %v969 = vunpack.c.l.s4 1934713408
    %v970 = vunpack.c.0.s8 %v969
    %v971 = vperm.slane %v963, %v970
    %v972 = vrot.slane %v959, 4
    %v973 = vsel %vm440, %v972, %v947
    %v974 = vrot.slane %v947, 4
    %v975 = vsel %vm440, %v959, %v974
    %v977 = vunpack.c.l.s4 1934713408
    %v978 = vunpack.c.0.s8 %v977
    %v979 = vperm.slane %v973, %v978
    %v981 = vunpack.c.l.s4 1934713408
    %v982 = vunpack.c.0.s8 %v981
    %v983 = vperm.slane %v975, %v982
    %v984 = vrot.slane %v967, 4
    %v985 = vsel %vm440, 0.0, %v984
    %v986 = vrot.slane %v971, 4
    %v987 = vsel %vm440, 0.0, %v986
    %v988 = vrot.slane %v979, 4
    %v989 = vsel %vm440, 0.0, %v988
    %v990 = vrot.slane %v983, 4
    %v991 = vsel %vm440, 0.0, %v990
    %v992 = vrot.slane %v927, 4
    %v993 = vsel %vm440, %v992, %v417
    %v994 = vrot.slane %v417, 4
    %v995 = vsel %vm440, %v927, %v994
    %v997 = vunpack.c.l.s4 1983009808
    %v998 = vunpack.c.0.s8 %v997
    %v999 = vperm.slane %v993, %v998
    %v1001 = vunpack.c.l.s4 1983009808
    %v1002 = vunpack.c.0.s8 %v1001
    %v1003 = vperm.slane %v995, %v1002
    %v1004 = vrot.slane %v933, 4
    %v1005 = vsel %vm440, %v1004, %v921
    %v1006 = vrot.slane %v921, 4
    %v1007 = vsel %vm440, %v933, %v1006
    %v1009 = vunpack.c.l.s4 1983009808
    %v1010 = vunpack.c.0.s8 %v1009
    %v1011 = vperm.slane %v1005, %v1010
    %v1013 = vunpack.c.l.s4 1983009808
    %v1014 = vunpack.c.0.s8 %v1013
    %v1015 = vperm.slane %v1007, %v1014
    %v1016 = vrot.slane %v1011, 4
    %v1017 = vsel %vm440, %v1016, %v999
    %v1018 = vrot.slane %v999, 4
    %v1019 = vsel %vm440, %v1011, %v1018
    %v1021 = vunpack.c.l.s4 1934713408
    %v1022 = vunpack.c.0.s8 %v1021
    %v1023 = vperm.slane %v1017, %v1022
    %v1025 = vunpack.c.l.s4 1934713408
    %v1026 = vunpack.c.0.s8 %v1025
    %v1027 = vperm.slane %v1019, %v1026
    %v1028 = vrot.slane %v1015, 4
    %v1029 = vsel %vm440, %v1028, %v1003
    %v1030 = vrot.slane %v1003, 4
    %v1031 = vsel %vm440, %v1015, %v1030
    %v1033 = vunpack.c.l.s4 1934713408
    %v1034 = vunpack.c.0.s8 %v1033
    %v1035 = vperm.slane %v1029, %v1034
    %v1037 = vunpack.c.l.s4 1934713408
    %v1038 = vunpack.c.0.s8 %v1037
    %v1039 = vperm.slane %v1031, %v1038
    %v1040 = vrot.slane %v1023, 4
    %v1041 = vsel %vm440, 0.0, %v1040
    %v1042 = vrot.slane %v1027, 4
    %v1043 = vsel %vm440, 0.0, %v1042
    %v1044 = vrot.slane %v1035, 4
    %v1045 = vsel %vm440, 0.0, %v1044
    %v1046 = vrot.slane %v1039, 4
    %v1047 = vsel %vm440, 0.0, %v1046
    %v1048 = vsel %vm440, %v986, %v967
    %v1050 = vunpack.c.l.s4 1983009808
    %v1051 = vunpack.c.0.s8 %v1050
    %v1052 = vperm.slane %v1048, %v1051
    %v1053 = vrot.slane %v987, 4
    %v1054 = vsel %vm440, %v1053, %v985
    %v1056 = vunpack.c.l.s4 1983009808
    %v1057 = vunpack.c.0.s8 %v1056
    %v1058 = vperm.slane %v1054, %v1057
    %v1059 = vsel %vm440, %v990, %v979
    %v1061 = vunpack.c.l.s4 1983009808
    %v1062 = vunpack.c.0.s8 %v1061
    %v1063 = vperm.slane %v1059, %v1062
    %v1064 = vrot.slane %v991, 4
    %v1065 = vsel %vm440, %v1064, %v989
    %v1067 = vunpack.c.l.s4 1983009808
    %v1068 = vunpack.c.0.s8 %v1067
    %v1069 = vperm.slane %v1065, %v1068
    %v1070 = vrot.slane %v1058, 4
    %v1071 = vsel %vm440, %v1070, %v1052
    %v1072 = vrot.slane %v1052, 4
    %v1073 = vsel %vm440, %v1058, %v1072
    %v1075 = vunpack.c.l.s4 1934713408
    %v1076 = vunpack.c.0.s8 %v1075
    %v1077 = vperm.slane %v1071, %v1076
    %v1079 = vunpack.c.l.s4 1934713408
    %v1080 = vunpack.c.0.s8 %v1079
    %v1081 = vperm.slane %v1073, %v1080
    %v1082 = vrot.slane %v1069, 4
    %v1083 = vsel %vm440, %v1082, %v1063
    %v1084 = vrot.slane %v1063, 4
    %v1085 = vsel %vm440, %v1069, %v1084
    %v1087 = vunpack.c.l.s4 1934713408
    %v1088 = vunpack.c.0.s8 %v1087
    %v1089 = vperm.slane %v1083, %v1088
    %v1091 = vunpack.c.l.s4 1934713408
    %v1092 = vunpack.c.0.s8 %v1091
    %v1093 = vperm.slane %v1085, %v1092
    %v1094 = vrot.slane %v1089, 4
    %v1095 = vsel %vm440, %v1094, %v1077
    %v1096 = vrot.slane %v1077, 4
    %v1097 = vsel %vm440, %v1089, %v1096
    %v1098 = vrot.slane %v1093, 4
    %v1099 = vsel %vm440, %v1098, %v1081
    %v1100 = vrot.slane %v1081, 4
    %v1101 = vsel %vm440, %v1093, %v1100
    %v1102 = vsel %vm440, %v1042, %v1023
    %v1104 = vunpack.c.l.s4 1983009808
    %v1105 = vunpack.c.0.s8 %v1104
    %v1106 = vperm.slane %v1102, %v1105
    %v1107 = vrot.slane %v1043, 4
    %v1108 = vsel %vm440, %v1107, %v1041
    %v1110 = vunpack.c.l.s4 1983009808
    %v1111 = vunpack.c.0.s8 %v1110
    %v1112 = vperm.slane %v1108, %v1111
    %v1113 = vsel %vm440, %v1046, %v1035
    %v1115 = vunpack.c.l.s4 1983009808
    %v1116 = vunpack.c.0.s8 %v1115
    %v1117 = vperm.slane %v1113, %v1116
    %v1118 = vrot.slane %v1047, 4
    %v1119 = vsel %vm440, %v1118, %v1045
    %v1121 = vunpack.c.l.s4 1983009808
    %v1122 = vunpack.c.0.s8 %v1121
    %v1123 = vperm.slane %v1119, %v1122
    %v1124 = vrot.slane %v1112, 4
    %v1125 = vsel %vm440, %v1124, %v1106
    %v1126 = vrot.slane %v1106, 4
    %v1127 = vsel %vm440, %v1112, %v1126
    %v1129 = vunpack.c.l.s4 1934713408
    %v1130 = vunpack.c.0.s8 %v1129
    %v1131 = vperm.slane %v1125, %v1130
    %v1133 = vunpack.c.l.s4 1934713408
    %v1134 = vunpack.c.0.s8 %v1133
    %v1135 = vperm.slane %v1127, %v1134
    %v1136 = vrot.slane %v1123, 4
    %v1137 = vsel %vm440, %v1136, %v1117
    %v1138 = vrot.slane %v1117, 4
    %v1139 = vsel %vm440, %v1123, %v1138
    %v1141 = vunpack.c.l.s4 1934713408
    %v1142 = vunpack.c.0.s8 %v1141
    %v1143 = vperm.slane %v1137, %v1142
    %v1145 = vunpack.c.l.s4 1934713408
    %v1146 = vunpack.c.0.s8 %v1145
    %v1147 = vperm.slane %v1139, %v1146
    %v1148 = vrot.slane %v1143, 4
    %v1149 = vsel %vm440, %v1148, %v1131
    %v1150 = vrot.slane %v1131, 4
    %v1151 = vsel %vm440, %v1143, %v1150
    %v1152 = vrot.slane %v1147, 4
    %v1153 = vsel %vm440, %v1152, %v1135
    %v1154 = vrot.slane %v1135, 4
    %v1155 = vsel %vm440, %v1147, %v1154
    %v1156 = vpack.c.bf16 %v1095, %v1095
    %v1157 = vpack.c.bf16 %v1149, %v1149
    %v1158 = vpack.c.bf16 %v1097, %v1097
    %v1159 = vpack.c.bf16 %v1151, %v1151
    %v1160 = vpack.c.bf16 %v1099, %v1099
    %v1161 = vpack.c.bf16 %v1153, %v1153
    %v1162 = vpack.c.bf16 %v1101, %v1101
    %v1163 = vpack.c.bf16 %v1155, %v1155
    %v1166 = vunpack.c.l.b16 %v660
    %v1167 = vunpack.c.l.b16 %v661
    %v1168 = vpack.c.b16 %v1167, %v1166
    %v1171 = vunpack.c.l.b16 %v908
    %v1172 = vunpack.c.l.b16 %v909
    %v1173 = vpack.c.b16 %v1172, %v1171
    %vm1174 = vcmask 261120
    %v1176 = vsel %vm1174, %v1168, 0
    %v1179 = vsel %vm1174, %v1173, 0
    %1181 = vmatpush.bf16.xpose.msra.mxu0 0
    %1182 = vmatpush.bf16.xpose.msra.mxu0 0
    %1183 = vmatpush.bf16.xpose.msra.mxu0 0
    %1184 = vmatpush.bf16.xpose.msra.mxu0 0
    %1185 = vmatpush.bf16.xpose.msra.mxu0 0
    %1186 = vmatpush.bf16.xpose.msra.mxu0 0
    %1187 = vmatpush.bf16.xpose.msra.mxu0 0
    %1188 = vmatpush.bf16.xpose.msra.mxu0 %v1179
    %1189 = vmatmul.bf16.gmra.mxu0 %v1176
    %v1190 = vpop.f32.mrf.mxu0
    %v1191 = vadd.f32 %v147, %v1190
    %v1192 = vpop.f32.mrf.mxu0
    %v1193 = vadd.f32 %v148, %v1192
    %1194 = vdwg.mxu0
    %v1197 = vunpack.c.l.b16 %v662
    %v1198 = vunpack.c.l.b16 %v663
    %v1199 = vpack.c.b16 %v1198, %v1197
    %v1202 = vunpack.c.l.b16 %v910
    %v1203 = vunpack.c.l.b16 %v911
    %v1204 = vpack.c.b16 %v1203, %v1202
    %v1206 = vsel %vm1174, %v1199, 0
    %v1209 = vsel %vm1174, %v1204, 0
    %1211 = vmatpush.bf16.xpose.msra.mxu0 0
    %1212 = vmatpush.bf16.xpose.msra.mxu0 0
    %1213 = vmatpush.bf16.xpose.msra.mxu0 0
    %1214 = vmatpush.bf16.xpose.msra.mxu0 0
    %1215 = vmatpush.bf16.xpose.msra.mxu0 0
    %1216 = vmatpush.bf16.xpose.msra.mxu0 0
    %1217 = vmatpush.bf16.xpose.msra.mxu0 0
    %1218 = vmatpush.bf16.xpose.msra.mxu0 %v1209
    %1219 = vmatmul.bf16.gmra.mxu0 %v1206
    %v1220 = vpop.f32.mrf.mxu0
    %v1221 = vadd.f32 %v147, %v1220
    %v1222 = vpop.f32.mrf.mxu0
    %v1223 = vadd.f32 %v148, %v1222
    %1224 = vdwg.mxu0
    %v1227 = vunpack.c.l.b16 %v664
    %v1228 = vunpack.c.l.b16 %v665
    %v1229 = vpack.c.b16 %v1228, %v1227
    %v1232 = vunpack.c.l.b16 %v912
    %v1233 = vunpack.c.l.b16 %v913
    %v1234 = vpack.c.b16 %v1233, %v1232
    %v1236 = vsel %vm1174, %v1229, 0
    %v1239 = vsel %vm1174, %v1234, 0
    %1241 = vmatpush.bf16.xpose.msra.mxu0 0
    %1242 = vmatpush.bf16.xpose.msra.mxu0 0
    %1243 = vmatpush.bf16.xpose.msra.mxu0 0
    %1244 = vmatpush.bf16.xpose.msra.mxu0 0
    %1245 = vmatpush.bf16.xpose.msra.mxu0 0
    %1246 = vmatpush.bf16.xpose.msra.mxu0 0
    %1247 = vmatpush.bf16.xpose.msra.mxu0 0
    %1248 = vmatpush.bf16.xpose.msra.mxu0 %v1239
    %1249 = vmatmul.bf16.gmra.mxu0 %v1236
    %v1250 = vpop.f32.mrf.mxu0
    %v1251 = vadd.f32 %v147, %v1250
    %v1252 = vpop.f32.mrf.mxu0
    %v1253 = vadd.f32 %v148, %v1252
    %1254 = vdwg.mxu0
    %v1257 = vunpack.c.l.b16 %v666
    %v1258 = vunpack.c.l.b16 %v667
    %v1259 = vpack.c.b16 %v1258, %v1257
    %v1262 = vunpack.c.l.b16 %v914
    %v1263 = vunpack.c.l.b16 %v915
    %v1264 = vpack.c.b16 %v1263, %v1262
    %v1266 = vsel %vm1174, %v1259, 0
    %v1269 = vsel %vm1174, %v1264, 0
    %1271 = vmatpush.bf16.xpose.msra.mxu0 0
    %1272 = vmatpush.bf16.xpose.msra.mxu0 0
    %1273 = vmatpush.bf16.xpose.msra.mxu0 0
    %1274 = vmatpush.bf16.xpose.msra.mxu0 0
    %1275 = vmatpush.bf16.xpose.msra.mxu0 0
    %1276 = vmatpush.bf16.xpose.msra.mxu0 0
    %1277 = vmatpush.bf16.xpose.msra.mxu0 0
    %1278 = vmatpush.bf16.xpose.msra.mxu0 %v1269
    %1279 = vmatmul.bf16.gmra.mxu0 %v1266
    %v1280 = vpop.f32.mrf.mxu0
    %v1281 = vadd.f32 %v147, %v1280
    %v1282 = vpop.f32.mrf.mxu0
    %v1283 = vadd.f32 %v148, %v1282
    %1284 = vdwg.mxu0
    %vm1285 = vcmask 130048
    %v1286 = vsel %vm1285, %v1191, -inf
    %1287 = vmax.xlane.f32.xlu0 %v1286
    %v1288 = vpop.xlane.xlu0 %1287
    %v1289 = vsel %vm1285, %v1193, -inf
    %1290 = vmax.xlane.f32.xlu0 %v1289
    %v1291 = vpop.xlane.xlu0 %1290
    %v1292 = vsel %vm1285, %v1221, -inf
    %1293 = vmax.xlane.f32.xlu0 %v1292
    %v1294 = vpop.xlane.xlu0 %1293
    %v1295 = vsel %vm1285, %v1223, -inf
    %1296 = vmax.xlane.f32.xlu0 %v1295
    %v1297 = vpop.xlane.xlu0 %1296
    %v1298 = vsel %vm1285, %v1251, -inf
    %1299 = vmax.xlane.f32.xlu0 %v1298
    %v1300 = vpop.xlane.xlu0 %1299
    %v1301 = vsel %vm1285, %v1253, -inf
    %1302 = vmax.xlane.f32.xlu0 %v1301
    %v1303 = vpop.xlane.xlu0 %1302
    %v1304 = vsel %vm1285, %v1281, -inf
    %1305 = vmax.xlane.f32.xlu0 %v1304
    %v1306 = vpop.xlane.xlu0 %1305
    %v1307 = vsel %vm1285, %v1283, -inf
    %1308 = vmax.xlane.f32.xlu0 %v1307
    %v1309 = vpop.xlane.xlu0 %1308
    %v1310 = vsub.f32 %v1191, %v1288
    %v1311 = vsub.f32 %v1193, %v1291
    %v1312 = vsub.f32 %v1221, %v1294
    %v1313 = vsub.f32 %v1223, %v1297
    %v1314 = vsub.f32 %v1251, %v1300
    %v1315 = vsub.f32 %v1253, %v1303
    %v1316 = vsub.f32 %v1281, %v1306
    %v1317 = vsub.f32 %v1283, %v1309
    %v1318 = vmul.f32 %v1310, 1.442695
    %v1319 = vpow.pop %v1318
    %v1320 = vmul.f32 %v1311, 1.442695
    %v1321 = vpow.pop %v1320
    %v1322 = vmul.f32 %v1312, 1.442695
    %v1323 = vpow.pop %v1322
    %v1324 = vmul.f32 %v1313, 1.442695
    %v1325 = vpow.pop %v1324
    %v1326 = vmul.f32 %v1314, 1.442695
    %v1327 = vpow.pop %v1326
    %v1328 = vmul.f32 %v1315, 1.442695
    %v1329 = vpow.pop %v1328
    %v1330 = vmul.f32 %v1316, 1.442695
    %v1331 = vpow.pop %v1330
    %v1332 = vmul.f32 %v1317, 1.442695
    %v1333 = vpow.pop %v1332
    %v1334 = vsel %vm1285, %v1319, 0.0
    %1335 = vadd.xlane.f32.xlu0 %v1334
    %v1336 = vpop.xlane.xlu0 %1335
    %v1337 = vsel %vm1285, %v1321, 0.0
    %1338 = vadd.xlane.f32.xlu0 %v1337
    %v1339 = vpop.xlane.xlu0 %1338
    %v1340 = vsel %vm1285, %v1323, 0.0
    %1341 = vadd.xlane.f32.xlu0 %v1340
    %v1342 = vpop.xlane.xlu0 %1341
    %v1343 = vsel %vm1285, %v1325, 0.0
    %1344 = vadd.xlane.f32.xlu0 %v1343
    %v1345 = vpop.xlane.xlu0 %1344
    %v1346 = vsel %vm1285, %v1327, 0.0
    %1347 = vadd.xlane.f32.xlu0 %v1346
    %v1348 = vpop.xlane.xlu0 %1347
    %v1349 = vsel %vm1285, %v1329, 0.0
    %1350 = vadd.xlane.f32.xlu0 %v1349
    %v1351 = vpop.xlane.xlu0 %1350
    %v1352 = vsel %vm1285, %v1331, 0.0
    %1353 = vadd.xlane.f32.xlu0 %v1352
    %v1354 = vpop.xlane.xlu0 %1353
    %v1355 = vsel %vm1285, %v1333, 0.0
    %1356 = vadd.xlane.f32.xlu0 %v1355
    %v1357 = vpop.xlane.xlu0 %1356
    %v1358 = vrcp.pop %v1336
    %v1359 = vrcp.pop %v1339
    %v1360 = vrcp.pop %v1342
    %v1361 = vrcp.pop %v1345
    %v1362 = vrcp.pop %v1348
    %v1363 = vrcp.pop %v1351
    %v1364 = vrcp.pop %v1354
    %v1365 = vrcp.pop %v1357
    %v1366 = vmul.f32 %v1319, %v1358
    %v1367 = vmul.f32 %v1321, %v1359
    %v1368 = vmul.f32 %v1323, %v1360
    %v1369 = vmul.f32 %v1325, %v1361
    %v1370 = vmul.f32 %v1327, %v1362
    %v1371 = vmul.f32 %v1329, %v1363
    %v1372 = vmul.f32 %v1331, %v1364
    %v1373 = vmul.f32 %v1333, %v1365
    %v1374 = vpack.c.bf16 %v1366, %v1366
    %v1375 = vpack.c.bf16 %v1367, %v1367
    %v1376 = vpack.c.bf16 %v1368, %v1368
    %v1377 = vpack.c.bf16 %v1369, %v1369
    %v1378 = vpack.c.bf16 %v1370, %v1370
    %v1379 = vpack.c.bf16 %v1371, %v1371
    %v1380 = vpack.c.bf16 %v1372, %v1372
    %v1381 = vpack.c.bf16 %v1373, %v1373
    %v1384 = vunpack.c.l.b16 %v1374
    %v1385 = vunpack.c.l.b16 %v1375
    %v1386 = vpack.c.b16 %v1385, %v1384
    %v1389 = vunpack.c.l.b16 %v1156
    %v1390 = vunpack.c.l.b16 %v1157
    %v1391 = vpack.c.b16 %v1390, %v1389
    %v1394 = vsel %vm1285, %v1386, 0
    %1396 = vmatpush.bf16.msra.mxu0 0
    %1397 = vmatpush.bf16.msra.mxu0 0
    %1398 = vmatpush.bf16.msra.mxu0 0
    %1399 = vmatpush.bf16.msra.mxu0 0
    %1400 = vmatpush.bf16.msra.mxu0 0
    %1401 = vmatpush.bf16.msra.mxu0 0
    %1402 = vmatpush.bf16.msra.mxu0 0
    %1403 = vmatpush.bf16.msra.mxu0 %v1391
    %1404 = vmatmul.bf16.gmra.mxu0 %v1394
    %v1405 = vpop.f32.mrf.mxu0
    %v1406 = vadd.f32 0.0, %v1405
    %v1407 = vpop.f32.mrf.mxu0
    %v1408 = vadd.f32 0.0, %v1407
    %1409 = vdwg.mxu0
    %v1412 = vunpack.c.l.b16 %v1376
    %v1413 = vunpack.c.l.b16 %v1377
    %v1414 = vpack.c.b16 %v1413, %v1412
    %v1417 = vunpack.c.l.b16 %v1158
    %v1418 = vunpack.c.l.b16 %v1159
    %v1419 = vpack.c.b16 %v1418, %v1417
    %v1422 = vsel %vm1285, %v1414, 0
    %1424 = vmatpush.bf16.msra.mxu0 0
    %1425 = vmatpush.bf16.msra.mxu0 0
    %1426 = vmatpush.bf16.msra.mxu0 0
    %1427 = vmatpush.bf16.msra.mxu0 0
    %1428 = vmatpush.bf16.msra.mxu0 0
    %1429 = vmatpush.bf16.msra.mxu0 0
    %1430 = vmatpush.bf16.msra.mxu0 0
    %1431 = vmatpush.bf16.msra.mxu0 %v1419
    %1432 = vmatmul.bf16.gmra.mxu0 %v1422
    %v1433 = vpop.f32.mrf.mxu0
    %v1434 = vadd.f32 0.0, %v1433
    %v1435 = vpop.f32.mrf.mxu0
    %v1436 = vadd.f32 0.0, %v1435
    %1437 = vdwg.mxu0
    %v1440 = vunpack.c.l.b16 %v1378
    %v1441 = vunpack.c.l.b16 %v1379
    %v1442 = vpack.c.b16 %v1441, %v1440
    %v1445 = vunpack.c.l.b16 %v1160
    %v1446 = vunpack.c.l.b16 %v1161
    %v1447 = vpack.c.b16 %v1446, %v1445
    %v1450 = vsel %vm1285, %v1442, 0
    %1452 = vmatpush.bf16.msra.mxu0 0
    %1453 = vmatpush.bf16.msra.mxu0 0
    %1454 = vmatpush.bf16.msra.mxu0 0
    %1455 = vmatpush.bf16.msra.mxu0 0
    %1456 = vmatpush.bf16.msra.mxu0 0
    %1457 = vmatpush.bf16.msra.mxu0 0
    %1458 = vmatpush.bf16.msra.mxu0 0
    %1459 = vmatpush.bf16.msra.mxu0 %v1447
    %1460 = vmatmul.bf16.gmra.mxu0 %v1450
    %v1461 = vpop.f32.mrf.mxu0
    %v1462 = vadd.f32 0.0, %v1461
    %v1463 = vpop.f32.mrf.mxu0
    %v1464 = vadd.f32 0.0, %v1463
    %1465 = vdwg.mxu0
    %v1468 = vunpack.c.l.b16 %v1380
    %v1469 = vunpack.c.l.b16 %v1381
    %v1470 = vpack.c.b16 %v1469, %v1468
    %v1473 = vunpack.c.l.b16 %v1162
    %v1474 = vunpack.c.l.b16 %v1163
    %v1475 = vpack.c.b16 %v1474, %v1473
    %v1478 = vsel %vm1285, %v1470, 0
    %1480 = vmatpush.bf16.msra.mxu0 0
    %1481 = vmatpush.bf16.msra.mxu0 0
    %1482 = vmatpush.bf16.msra.mxu0 0
    %1483 = vmatpush.bf16.msra.mxu0 0
    %1484 = vmatpush.bf16.msra.mxu0 0
    %1485 = vmatpush.bf16.msra.mxu0 0
    %1486 = vmatpush.bf16.msra.mxu0 0
    %1487 = vmatpush.bf16.msra.mxu0 %v1475
    %1488 = vmatmul.bf16.gmra.mxu0 %v1478
    %v1489 = vpop.f32.mrf.mxu0
    %v1490 = vadd.f32 0.0, %v1489
    %v1491 = vpop.f32.mrf.mxu0
    %v1492 = vadd.f32 0.0, %v1491
    %1493 = vdwg.mxu0
    %v1494 = vrot.slane %v1462, 4
    %v1495 = vsel %vm440, %v1494, %v1406
    %v1496 = vrot.slane %v1406, 4
    %v1497 = vsel %vm440, %v1462, %v1496
    %v1499 = vunpack.c.l.s4 1983009808
    %v1500 = vunpack.c.0.s8 %v1499
    %v1501 = vperm.slane %v1495, %v1500
    %v1503 = vunpack.c.l.s4 1983009808
    %v1504 = vunpack.c.0.s8 %v1503
    %v1505 = vperm.slane %v1497, %v1504
    %v1506 = vrot.slane %v1490, 4
    %v1507 = vsel %vm440, %v1506, %v1434
    %v1508 = vrot.slane %v1434, 4
    %v1509 = vsel %vm440, %v1490, %v1508
    %v1511 = vunpack.c.l.s4 1983009808
    %v1512 = vunpack.c.0.s8 %v1511
    %v1513 = vperm.slane %v1507, %v1512
    %v1515 = vunpack.c.l.s4 1983009808
    %v1516 = vunpack.c.0.s8 %v1515
    %v1517 = vperm.slane %v1509, %v1516
    %v1518 = vrot.slane %v1513, 4
    %v1519 = vsel %vm440, %v1518, %v1501
    %v1520 = vrot.slane %v1501, 4
    %v1521 = vsel %vm440, %v1513, %v1520
    %v1523 = vunpack.c.l.s4 1934713408
    %v1524 = vunpack.c.0.s8 %v1523
    %v1525 = vperm.slane %v1519, %v1524
    %v1527 = vunpack.c.l.s4 1934713408
    %v1528 = vunpack.c.0.s8 %v1527
    %v1529 = vperm.slane %v1521, %v1528
    %v1530 = vrot.slane %v1517, 4
    %v1531 = vsel %vm440, %v1530, %v1505
    %v1532 = vrot.slane %v1505, 4
    %v1533 = vsel %vm440, %v1517, %v1532
    %v1535 = vunpack.c.l.s4 1934713408
    %v1536 = vunpack.c.0.s8 %v1535
    %v1537 = vperm.slane %v1531, %v1536
    %v1539 = vunpack.c.l.s4 1934713408
    %v1540 = vunpack.c.0.s8 %v1539
    %v1541 = vperm.slane %v1533, %v1540
    %v1542 = vrot.slane %v1525, 4
    %v1543 = vsel %vm440, 0.0, %v1542
    %v1544 = vrot.slane %v1529, 4
    %v1545 = vsel %vm440, 0.0, %v1544
    %v1546 = vrot.slane %v1537, 4
    %v1547 = vsel %vm440, 0.0, %v1546
    %v1548 = vrot.slane %v1541, 4
    %v1549 = vsel %vm440, 0.0, %v1548
    %v1550 = vrot.slane %v1464, 4
    %v1551 = vsel %vm440, %v1550, %v1408
    %v1552 = vrot.slane %v1408, 4
    %v1553 = vsel %vm440, %v1464, %v1552
    %v1555 = vunpack.c.l.s4 1983009808
    %v1556 = vunpack.c.0.s8 %v1555
    %v1557 = vperm.slane %v1551, %v1556
    %v1559 = vunpack.c.l.s4 1983009808
    %v1560 = vunpack.c.0.s8 %v1559
    %v1561 = vperm.slane %v1553, %v1560
    %v1562 = vrot.slane %v1492, 4
    %v1563 = vsel %vm440, %v1562, %v1436
    %v1564 = vrot.slane %v1436, 4
    %v1565 = vsel %vm440, %v1492, %v1564
    %v1567 = vunpack.c.l.s4 1983009808
    %v1568 = vunpack.c.0.s8 %v1567
    %v1569 = vperm.slane %v1563, %v1568
    %v1571 = vunpack.c.l.s4 1983009808
    %v1572 = vunpack.c.0.s8 %v1571
    %v1573 = vperm.slane %v1565, %v1572
    %v1574 = vrot.slane %v1569, 4
    %v1575 = vsel %vm440, %v1574, %v1557
    %v1576 = vrot.slane %v1557, 4
    %v1577 = vsel %vm440, %v1569, %v1576
    %v1579 = vunpack.c.l.s4 1934713408
    %v1580 = vunpack.c.0.s8 %v1579
    %v1581 = vperm.slane %v1575, %v1580
    %v1583 = vunpack.c.l.s4 1934713408
    %v1584 = vunpack.c.0.s8 %v1583
    %v1585 = vperm.slane %v1577, %v1584
    %v1586 = vrot.slane %v1573, 4
    %v1587 = vsel %vm440, %v1586, %v1561
    %v1588 = vrot.slane %v1561, 4
    %v1589 = vsel %vm440, %v1573, %v1588
    %v1591 = vunpack.c.l.s4 1934713408
    %v1592 = vunpack.c.0.s8 %v1591
    %v1593 = vperm.slane %v1587, %v1592
    %v1595 = vunpack.c.l.s4 1934713408
    %v1596 = vunpack.c.0.s8 %v1595
    %v1597 = vperm.slane %v1589, %v1596
    %v1598 = vrot.slane %v1581, 4
    %v1599 = vsel %vm440, 0.0, %v1598
    %v1600 = vrot.slane %v1585, 4
    %v1601 = vsel %vm440, 0.0, %v1600
    %v1602 = vrot.slane %v1593, 4
    %v1603 = vsel %vm440, 0.0, %v1602
    %v1604 = vrot.slane %v1597, 4
    %v1605 = vsel %vm440, 0.0, %v1604
    %v1606 = vsel %vm440, %v1544, %v1525
    %v1608 = vunpack.c.l.s4 1983009808
    %v1609 = vunpack.c.0.s8 %v1608
    %v1610 = vperm.slane %v1606, %v1609
    %v1611 = vrot.slane %v1545, 4
    %v1612 = vsel %vm440, %v1611, %v1543
    %v1614 = vunpack.c.l.s4 1983009808
    %v1615 = vunpack.c.0.s8 %v1614
    %v1616 = vperm.slane %v1612, %v1615
    %v1617 = vsel %vm440, %v1548, %v1537
    %v1619 = vunpack.c.l.s4 1983009808
    %v1620 = vunpack.c.0.s8 %v1619
    %v1621 = vperm.slane %v1617, %v1620
    %v1622 = vrot.slane %v1549, 4
    %v1623 = vsel %vm440, %v1622, %v1547
    %v1625 = vunpack.c.l.s4 1983009808
    %v1626 = vunpack.c.0.s8 %v1625
    %v1627 = vperm.slane %v1623, %v1626
    %v1628 = vrot.slane %v1616, 4
    %v1629 = vsel %vm440, %v1628, %v1610
    %v1630 = vrot.slane %v1610, 4
    %v1631 = vsel %vm440, %v1616, %v1630
    %v1633 = vunpack.c.l.s4 1934713408
    %v1634 = vunpack.c.0.s8 %v1633
    %v1635 = vperm.slane %v1629, %v1634
    %v1637 = vunpack.c.l.s4 1934713408
    %v1638 = vunpack.c.0.s8 %v1637
    %v1639 = vperm.slane %v1631, %v1638
    %v1640 = vrot.slane %v1627, 4
    %v1641 = vsel %vm440, %v1640, %v1621
    %v1642 = vrot.slane %v1621, 4
    %v1643 = vsel %vm440, %v1627, %v1642
    %v1645 = vunpack.c.l.s4 1934713408
    %v1646 = vunpack.c.0.s8 %v1645
    %v1647 = vperm.slane %v1641, %v1646
    %v1649 = vunpack.c.l.s4 1934713408
    %v1650 = vunpack.c.0.s8 %v1649
    %v1651 = vperm.slane %v1643, %v1650
    %v1652 = vrot.slane %v1647, 4
    %v1653 = vsel %vm440, %v1652, %v1635
    %v1654 = vrot.slane %v1635, 4
    %v1655 = vsel %vm440, %v1647, %v1654
    %v1656 = vrot.slane %v1651, 4
    %v1657 = vsel %vm440, %v1656, %v1639
    %v1658 = vrot.slane %v1639, 4
    %v1659 = vsel %vm440, %v1651, %v1658
    %v1660 = vsel %vm440, %v1600, %v1581
    %v1662 = vunpack.c.l.s4 1983009808
    %v1663 = vunpack.c.0.s8 %v1662
    %v1664 = vperm.slane %v1660, %v1663
    %v1665 = vrot.slane %v1601, 4
    %v1666 = vsel %vm440, %v1665, %v1599
    %v1668 = vunpack.c.l.s4 1983009808
    %v1669 = vunpack.c.0.s8 %v1668
    %v1670 = vperm.slane %v1666, %v1669
    %v1671 = vsel %vm440, %v1604, %v1593
    %v1673 = vunpack.c.l.s4 1983009808
    %v1674 = vunpack.c.0.s8 %v1673
    %v1675 = vperm.slane %v1671, %v1674
    %v1676 = vrot.slane %v1605, 4
    %v1677 = vsel %vm440, %v1676, %v1603
    %v1679 = vunpack.c.l.s4 1983009808
    %v1680 = vunpack.c.0.s8 %v1679
    %v1681 = vperm.slane %v1677, %v1680
    %v1682 = vrot.slane %v1670, 4
    %v1683 = vsel %vm440, %v1682, %v1664
    %v1684 = vrot.slane %v1664, 4
    %v1685 = vsel %vm440, %v1670, %v1684
    %v1687 = vunpack.c.l.s4 1934713408
    %v1688 = vunpack.c.0.s8 %v1687
    %v1689 = vperm.slane %v1683, %v1688
    %v1691 = vunpack.c.l.s4 1934713408
    %v1692 = vunpack.c.0.s8 %v1691
    %v1693 = vperm.slane %v1685, %v1692
    %v1694 = vrot.slane %v1681, 4
    %v1695 = vsel %vm440, %v1694, %v1675
    %v1696 = vrot.slane %v1675, 4
    %v1697 = vsel %vm440, %v1681, %v1696
    %v1699 = vunpack.c.l.s4 1934713408
    %v1700 = vunpack.c.0.s8 %v1699
    %v1701 = vperm.slane %v1695, %v1700
    %v1703 = vunpack.c.l.s4 1934713408
    %v1704 = vunpack.c.0.s8 %v1703
    %v1705 = vperm.slane %v1697, %v1704
    %v1706 = vrot.slane %v1701, 4
    %v1707 = vsel %vm440, %v1706, %v1689
    %v1708 = vrot.slane %v1689, 4
    %v1709 = vsel %vm440, %v1701, %v1708
    %v1710 = vrot.slane %v1705, 4
    %v1711 = vsel %vm440, %v1710, %v1693
    %v1712 = vrot.slane %v1693, 4
    %v1713 = vsel %vm440, %v1705, %v1712
    %1716 = vrot.lane.b32.xlu0 %v1655, 32
    %v1717 = vpop.permute.xlu0 %1716
    %1718 = vrot.lane.b32.xlu0 %v1709, 32
    %v1719 = vpop.permute.xlu0 %1718
    %1724 = vrot.lane.b32.xlu0 %v1657, 64
    %v1725 = vpop.permute.xlu0 %1724
    %1726 = vrot.lane.b32.xlu0 %v1711, 64
    %v1727 = vpop.permute.xlu0 %1726
    %1732 = vrot.lane.b32.xlu0 %v1659, 96
    %v1733 = vpop.permute.xlu0 %1732
    %1734 = vrot.lane.b32.xlu0 %v1713, 96
    %v1735 = vpop.permute.xlu0 %1734
    %v1738 = vsel %vm1174, %v1653, %v1717
    %v1739 = vsel %vm1174, %v1707, %v1719
    %vm1740 = vcmask 523264
    %v1741 = vsel %vm1740, %v1738, %v1725
    %v1742 = vsel %vm1740, %v1739, %v1727
    %vm1743 = vcmask 785408
    %v1744 = vsel %vm1743, %v1741, %v1733
    %v1745 = vsel %vm1743, %v1742, %v1735
    %v1746 = vld [vmem:[%s6] sm:$0xf]
    %v1747 = vld [vmem:[%s6 + $0x4] sm:$0xf]
    %v1748 = vld [vmem:[%s6 + $0x8] sm:$0xf]
    %v1749 = vld [vmem:[%s6 + $0xc] sm:$0xf]
    %v1750 = vld [vmem:[%s6 + $0x10] sm:$0xf]
    %v1751 = vld [vmem:[%s6 + $0x14] sm:$0xf]
    %v1752 = vld [vmem:[%s6 + $0x18] sm:$0xf]
    %v1753 = vld [vmem:[%s6 + $0x1c] sm:$0xf]
    %v1754 = vld [vmem:[%s6 + $0x20] sm:$0xf]
    %v1755 = vld [vmem:[%s6 + $0x24] sm:$0xf]
    %v1756 = vld [vmem:[%s6 + $0x28] sm:$0xf]
    %v1757 = vld [vmem:[%s6 + $0x2c] sm:$0xf]
    %v1758 = vld [vmem:[%s6 + $0x30] sm:$0xf]
    %v1759 = vld [vmem:[%s6 + $0x34] sm:$0xf]
    %v1760 = vld [vmem:[%s6 + $0x38] sm:$0xf]
    %v1761 = vld [vmem:[%s6 + $0x3c] sm:$0xf]
    %v1762 = vpack.c.bf16 %v1745, %v1744
    %v1763 = vld [vmem:[%s7] sm:$0x1]
    %v1765 = vperm.slane %v1763, 0
    %v1783 = vunpack.c.l.b16 %v1746
    %v1784 = vunpack.c.l.b16 %v1747
    %v1785 = vunpack.c.l.b16 %v1748
    %v1786 = vunpack.c.l.b16 %v1749
    %v1787 = vunpack.c.l.b16 %v1750
    %v1788 = vunpack.c.l.b16 %v1751
    %v1789 = vunpack.c.l.b16 %v1752
    %v1790 = vunpack.c.l.b16 %v1753
    %v1791 = vunpack.c.l.b16 %v1754
    %v1792 = vunpack.c.l.b16 %v1755
    %v1793 = vunpack.c.l.b16 %v1756
    %v1794 = vunpack.c.l.b16 %v1757
    %v1795 = vunpack.c.l.b16 %v1758
    %v1796 = vunpack.c.l.b16 %v1759
    %v1797 = vunpack.c.l.b16 %v1760
    %v1798 = vunpack.c.l.b16 %v1761
    %v1799 = vpack.c.b16 %v1784, %v1783
    %v1800 = vpack.c.b16 %v1786, %v1785
    %v1801 = vpack.c.b16 %v1788, %v1787
    %v1802 = vpack.c.b16 %v1790, %v1789
    %v1803 = vpack.c.b16 %v1792, %v1791
    %v1804 = vpack.c.b16 %v1794, %v1793
    %v1805 = vpack.c.b16 %v1796, %v1795
    %v1806 = vpack.c.b16 %v1798, %v1797
    %1815 = vmatpush.bf16.msra.mxu0 %v1806
    %1816 = vmatpush.bf16.msra.mxu0 %v1805
    %1817 = vmatpush.bf16.msra.mxu0 %v1804
    %1818 = vmatpush.bf16.msra.mxu0 %v1803
    %1819 = vmatpush.bf16.msra.mxu0 %v1802
    %1820 = vmatpush.bf16.msra.mxu0 %v1801
    %1821 = vmatpush.bf16.msra.mxu0 %v1800
    %1822 = vmatpush.bf16.msra.mxu0 %v1799
    %1823 = vmatmul.bf16.gmra.mxu0 %v1762
    %v1824 = vpop.f32.mrf.mxu0
    %v1825 = vadd.f32 %v1765, %v1824
    %v1826 = vpop.f32.mrf.mxu0
    %v1827 = vadd.f32 %v1765, %v1826
    %1828 = vdwg.mxu0
    %v1829 = vadd.f32 %v1825, %v206
    %v1830 = vadd.f32 %v1827, %v207
    %v1831 = vld [vmem:[%s8] sm:$0x1]
    %v1832 = vld [vmem:[%s9] sm:$0x1]
    %1833 = vadd.xlane.f32.xlu0 %v1829
    %v1834 = vpop.xlane.xlu0 %1833
    %1835 = vadd.xlane.f32.xlu0 %v1830
    %v1836 = vpop.xlane.xlu0 %1835
    %v1837 = vmul.f32 %v1834, %v161
    %v1838 = vmul.f32 %v1836, %v161
    %v1839 = vsub.f32 %v1829, %v1837
    %v1840 = vsub.f32 %v1830, %v1838
    %v1841 = vmul.f32 %v1839, %v1839
    %v1842 = vmul.f32 %v1840, %v1840
    %1843 = vadd.xlane.f32.xlu0 %v1841
    %v1844 = vpop.xlane.xlu0 %1843
    %1845 = vadd.xlane.f32.xlu0 %v1842
    %v1846 = vpop.xlane.xlu0 %1845
    %v1847 = vmul.f32 %v1844, %v161
    %v1848 = vmul.f32 %v1846, %v161
    %v1849 = vadd.f32 %v1847, 1e-12
    %v1850 = vadd.f32 %v1848, 1e-12
    %v1851 = vrsqrt.pop %v1849
    %v1852 = vmul.f32 %v1851, %v1849
    %v1853 = vmul.f32 %v1852, %v1851
    %v1854 = vmul.f32 0.5, %v1853
    %v1855 = vsub.f32 1.5, %v1854
    %v1856 = vmul.f32 %v1851, %v1855
    %vm1857 = vweird.f32 %v1849
    %vm1858 = vweird.f32 %v1851
    %vm1859 = vmor %vm1857, %vm1858
    %v1860 = vsel %vm1859, %v1851, %v1856
    %v1861 = vrsqrt.pop %v1850
    %v1862 = vmul.f32 %v1861, %v1850
    %v1863 = vmul.f32 %v1862, %v1861
    %v1864 = vmul.f32 0.5, %v1863
    %v1865 = vsub.f32 1.5, %v1864
    %v1866 = vmul.f32 %v1861, %v1865
    %vm1867 = vweird.f32 %v1850
    %vm1868 = vweird.f32 %v1861
    %vm1869 = vmor %vm1867, %vm1868
    %v1870 = vsel %vm1869, %v1861, %v1866
    %v1871 = vmul.f32 %v1839, %v1860
    %v1872 = vmul.f32 %v1840, %v1870
    %v1874 = vperm.slane %v1831, 0
    %v1876 = vmul.f32 %v1871, %v1874
    %v1877 = vmul.f32 %v1872, %v1874
    %v1879 = vperm.slane %v1832, 0
    %v1881 = vadd.f32 %v1876, %v1879
    %v1882 = vadd.f32 %v1877, %v1879
    %v1883 = vld [vmem:[#allocation5] sm:$0xff]
    %v1884 = vld [vmem:[#allocation5 + $0x8] sm:$0xff]
    %v1885 = vld [vmem:[#allocation5 + $0x10] sm:$0xff]
    %v1886 = vld [vmem:[#allocation5 + $0x18] sm:$0xff]
    %v1887 = vld [vmem:[#allocation5 + $0x20] sm:$0xff]
    %v1888 = vld [vmem:[#allocation5 + $0x28] sm:$0xff]
    %v1889 = vld [vmem:[#allocation5 + $0x30] sm:$0xff]
    %v1890 = vld [vmem:[#allocation5 + $0x38] sm:$0xff]
    %v1891 = vld [vmem:[#allocation5 + $0x40] sm:$0xff]
    %v1892 = vld [vmem:[#allocation5 + $0x48] sm:$0xff]
    %v1893 = vld [vmem:[#allocation5 + $0x50] sm:$0xff]
    %v1894 = vld [vmem:[#allocation5 + $0x58] sm:$0xff]
    %v1895 = vld [vmem:[#allocation5 + $0x60] sm:$0xff]
    %v1896 = vld [vmem:[#allocation5 + $0x68] sm:$0xff]
    %v1897 = vld [vmem:[#allocation5 + $0x70] sm:$0xff]
    %v1898 = vld [vmem:[#allocation5 + $0x78] sm:$0xff]
    %v1899 = vpack.c.bf16 %v1882, %v1881
    %v1900 = vld [vmem:[%s11] sm:$0x3]
    %v1902 = vperm.slane %v1900, 0
    %v1903 = vperm.slane %v1900, 1
    %v1922 = vunpack.c.l.b16 %v1883
    %v1923 = vunpack.c.h.b16 %v1883
    %v1924 = vunpack.c.l.b16 %v1884
    %v1925 = vunpack.c.h.b16 %v1884
    %v1926 = vunpack.c.l.b16 %v1885
    %v1927 = vunpack.c.h.b16 %v1885
    %v1928 = vunpack.c.l.b16 %v1886
    %v1929 = vunpack.c.h.b16 %v1886
    %v1930 = vunpack.c.l.b16 %v1887
    %v1931 = vunpack.c.h.b16 %v1887
    %v1932 = vunpack.c.l.b16 %v1888
    %v1933 = vunpack.c.h.b16 %v1888
    %v1934 = vunpack.c.l.b16 %v1889
    %v1935 = vunpack.c.h.b16 %v1889
    %v1936 = vunpack.c.l.b16 %v1890
    %v1937 = vunpack.c.h.b16 %v1890
    %v1938 = vunpack.c.l.b16 %v1891
    %v1939 = vunpack.c.h.b16 %v1891
    %v1940 = vunpack.c.l.b16 %v1892
    %v1941 = vunpack.c.h.b16 %v1892
    %v1942 = vunpack.c.l.b16 %v1893
    %v1943 = vunpack.c.h.b16 %v1893
    %v1944 = vunpack.c.l.b16 %v1894
    %v1945 = vunpack.c.h.b16 %v1894
    %v1946 = vunpack.c.l.b16 %v1895
    %v1947 = vunpack.c.h.b16 %v1895
    %v1948 = vunpack.c.l.b16 %v1896
    %v1949 = vunpack.c.h.b16 %v1896
    %v1950 = vunpack.c.l.b16 %v1897
    %v1951 = vunpack.c.h.b16 %v1897
    %v1952 = vunpack.c.l.b16 %v1898
    %v1953 = vunpack.c.h.b16 %v1898
    %v1954 = vpack.c.b16 %v1924, %v1922
    %v1955 = vpack.c.b16 %v1925, %v1923
    %v1956 = vpack.c.b16 %v1928, %v1926
    %v1957 = vpack.c.b16 %v1929, %v1927
    %v1958 = vpack.c.b16 %v1932, %v1930
    %v1959 = vpack.c.b16 %v1933, %v1931
    %v1960 = vpack.c.b16 %v1936, %v1934
    %v1961 = vpack.c.b16 %v1937, %v1935
    %v1962 = vpack.c.b16 %v1940, %v1938
    %v1963 = vpack.c.b16 %v1941, %v1939
    %v1964 = vpack.c.b16 %v1944, %v1942
    %v1965 = vpack.c.b16 %v1945, %v1943
    %v1966 = vpack.c.b16 %v1948, %v1946
    %v1967 = vpack.c.b16 %v1949, %v1947
    %v1968 = vpack.c.b16 %v1952, %v1950
    %v1969 = vpack.c.b16 %v1953, %v1951
    %1986 = vmatpush.bf16.msra.mxu0 %v1968
    %1987 = vmatpush.bf16.msra.mxu0 %v1966
    %1988 = vmatpush.bf16.msra.mxu0 %v1964
    %1989 = vmatpush.bf16.msra.mxu0 %v1962
    %1990 = vmatpush.bf16.msra.mxu0 %v1960
    %1991 = vmatpush.bf16.msra.mxu0 %v1958
    %1992 = vmatpush.bf16.msra.mxu0 %v1956
    %1993 = vmatpush.bf16.msra.mxu0 %v1954
    %1994 = vmatmul.bf16.gmra.mxu0 %v1899
    %v1995 = vpop.f32.mrf.mxu0
    %v1996 = vadd.f32 %v1902, %v1995
    %v1997 = vpop.f32.mrf.mxu0
    %v1998 = vadd.f32 %v1902, %v1997
    %1999 = vdwg.mxu0
    %2000 = vmatpush.bf16.msra.mxu0 %v1969
    %2001 = vmatpush.bf16.msra.mxu0 %v1967
    %2002 = vmatpush.bf16.msra.mxu0 %v1965
    %2003 = vmatpush.bf16.msra.mxu0 %v1963
    %2004 = vmatpush.bf16.msra.mxu0 %v1961
    %2005 = vmatpush.bf16.msra.mxu0 %v1959
    %2006 = vmatpush.bf16.msra.mxu0 %v1957
    %2007 = vmatpush.bf16.msra.mxu0 %v1955
    %2008 = vmatmul.bf16.gmra.mxu0 %v1899
    %v2009 = vpop.f32.mrf.mxu0
    %v2010 = vadd.f32 %v1903, %v2009
    %v2011 = vpop.f32.mrf.mxu0
    %v2012 = vadd.f32 %v1903, %v2011
    %2013 = vdwg.mxu0
    %v2014 = vmul.f32 %v1996, 0.5
    %v2015 = vmul.f32 %v2010, 0.5
    %v2016 = vmul.f32 %v1998, 0.5
    %v2017 = vmul.f32 %v2012, 0.5
    %v2018 = vmul.f32 %v1996, 0.044715
    %v2019 = vmul.f32 %v2010, 0.044715
    %v2020 = vmul.f32 %v1998, 0.044715
    %v2021 = vmul.f32 %v2012, 0.044715
    %v2022 = vmul.f32 %v2018, %v1996
    %v2023 = vmul.f32 %v2019, %v2010
    %v2024 = vmul.f32 %v2020, %v1998
    %v2025 = vmul.f32 %v2021, %v2012
    %v2026 = vmul.f32 %v2022, %v1996
    %v2027 = vmul.f32 %v2023, %v2010
    %v2028 = vmul.f32 %v2024, %v1998
    %v2029 = vmul.f32 %v2025, %v2012
    %v2030 = vadd.f32 %v1996, %v2026
    %v2031 = vadd.f32 %v2010, %v2027
    %v2032 = vadd.f32 %v1998, %v2028
    %v2033 = vadd.f32 %v2012, %v2029
    %v2034 = vmul.f32 %v2030, 0.7978846
    %v2035 = vmul.f32 %v2031, 0.7978846
    %v2036 = vmul.f32 %v2032, 0.7978846
    %v2037 = vmul.f32 %v2033, 0.7978846
    %v2038 = vtanh.pop %v2034
    %v2039 = vtanh.pop %v2035
    %v2040 = vtanh.pop %v2036
    %v2041 = vtanh.pop %v2037
    %v2042 = vadd.f32 %v2038, 1.0
    %v2043 = vadd.f32 %v2039, 1.0
    %v2044 = vadd.f32 %v2040, 1.0
    %v2045 = vadd.f32 %v2041, 1.0
    %v2046 = vmul.f32 %v2014, %v2042
    %v2047 = vmul.f32 %v2015, %v2043
    %v2048 = vmul.f32 %v2016, %v2044
    %v2049 = vmul.f32 %v2017, %v2045
    %v2050 = vld [vmem:[#allocation7] sm:$0xf]
    %v2051 = vld [vmem:[#allocation7 + $0x4] sm:$0xf]
    %v2052 = vld [vmem:[#allocation7 + $0x8] sm:$0xf]
    %v2053 = vld [vmem:[#allocation7 + $0xc] sm:$0xf]
    %v2054 = vld [vmem:[#allocation7 + $0x10] sm:$0xf]
    %v2055 = vld [vmem:[#allocation7 + $0x14] sm:$0xf]
    %v2056 = vld [vmem:[#allocation7 + $0x18] sm:$0xf]
    %v2057 = vld [vmem:[#allocation7 + $0x1c] sm:$0xf]
    %v2058 = vld [vmem:[#allocation7 + $0x20] sm:$0xf]
    %v2059 = vld [vmem:[#allocation7 + $0x24] sm:$0xf]
    %v2060 = vld [vmem:[#allocation7 + $0x28] sm:$0xf]
    %v2061 = vld [vmem:[#allocation7 + $0x2c] sm:$0xf]
    %v2062 = vld [vmem:[#allocation7 + $0x30] sm:$0xf]
    %v2063 = vld [vmem:[#allocation7 + $0x34] sm:$0xf]
    %v2064 = vld [vmem:[#allocation7 + $0x38] sm:$0xf]
    %v2065 = vld [vmem:[#allocation7 + $0x3c] sm:$0xf]
    %v2066 = vld [vmem:[#allocation7 + $0x40] sm:$0xf]
    %v2067 = vld [vmem:[#allocation7 + $0x44] sm:$0xf]
    %v2068 = vld [vmem:[#allocation7 + $0x48] sm:$0xf]
    %v2069 = vld [vmem:[#allocation7 + $0x4c] sm:$0xf]
    %v2070 = vld [vmem:[#allocation7 + $0x50] sm:$0xf]
    %v2071 = vld [vmem:[#allocation7 + $0x54] sm:$0xf]
    %v2072 = vld [vmem:[#allocation7 + $0x58] sm:$0xf]
    %v2073 = vld [vmem:[#allocation7 + $0x5c] sm:$0xf]
    %v2074 = vld [vmem:[#allocation7 + $0x60] sm:$0xf]
    %v2075 = vld [vmem:[#allocation7 + $0x64] sm:$0xf]
    %v2076 = vld [vmem:[#allocation7 + $0x68] sm:$0xf]
    %v2077 = vld [vmem:[#allocation7 + $0x6c] sm:$0xf]
    %v2078 = vld [vmem:[#allocation7 + $0x70] sm:$0xf]
    %v2079 = vld [vmem:[#allocation7 + $0x74] sm:$0xf]
    %v2080 = vld [vmem:[#allocation7 + $0x78] sm:$0xf]
    %v2081 = vld [vmem:[#allocation7 + $0x7c] sm:$0xf]
    %v2082 = vpack.c.bf16 %v2048, %v2046
    %v2083 = vpack.c.bf16 %v2049, %v2047
    %v2084 = vld [vmem:[%s13] sm:$0x1]
    %v2086 = vperm.slane %v2084, 0
    %v2120 = vunpack.c.l.b16 %v2050
    %v2121 = vunpack.c.l.b16 %v2051
    %v2122 = vunpack.c.l.b16 %v2052
    %v2123 = vunpack.c.l.b16 %v2053
    %v2124 = vunpack.c.l.b16 %v2054
    %v2125 = vunpack.c.l.b16 %v2055
    %v2126 = vunpack.c.l.b16 %v2056
    %v2127 = vunpack.c.l.b16 %v2057
    %v2128 = vunpack.c.l.b16 %v2058
    %v2129 = vunpack.c.l.b16 %v2059
    %v2130 = vunpack.c.l.b16 %v2060
    %v2131 = vunpack.c.l.b16 %v2061
    %v2132 = vunpack.c.l.b16 %v2062
    %v2133 = vunpack.c.l.b16 %v2063
    %v2134 = vunpack.c.l.b16 %v2064
    %v2135 = vunpack.c.l.b16 %v2065
    %v2136 = vunpack.c.l.b16 %v2066
    %v2137 = vunpack.c.l.b16 %v2067
    %v2138 = vunpack.c.l.b16 %v2068
    %v2139 = vunpack.c.l.b16 %v2069
    %v2140 = vunpack.c.l.b16 %v2070
    %v2141 = vunpack.c.l.b16 %v2071
    %v2142 = vunpack.c.l.b16 %v2072
    %v2143 = vunpack.c.l.b16 %v2073
    %v2144 = vunpack.c.l.b16 %v2074
    %v2145 = vunpack.c.l.b16 %v2075
    %v2146 = vunpack.c.l.b16 %v2076
    %v2147 = vunpack.c.l.b16 %v2077
    %v2148 = vunpack.c.l.b16 %v2078
    %v2149 = vunpack.c.l.b16 %v2079
    %v2150 = vunpack.c.l.b16 %v2080
    %v2151 = vunpack.c.l.b16 %v2081
    %v2152 = vpack.c.b16 %v2121, %v2120
    %v2153 = vpack.c.b16 %v2123, %v2122
    %v2154 = vpack.c.b16 %v2125, %v2124
    %v2155 = vpack.c.b16 %v2127, %v2126
    %v2156 = vpack.c.b16 %v2129, %v2128
    %v2157 = vpack.c.b16 %v2131, %v2130
    %v2158 = vpack.c.b16 %v2133, %v2132
    %v2159 = vpack.c.b16 %v2135, %v2134
    %v2160 = vpack.c.b16 %v2137, %v2136
    %v2161 = vpack.c.b16 %v2139, %v2138
    %v2162 = vpack.c.b16 %v2141, %v2140
    %v2163 = vpack.c.b16 %v2143, %v2142
    %v2164 = vpack.c.b16 %v2145, %v2144
    %v2165 = vpack.c.b16 %v2147, %v2146
    %v2166 = vpack.c.b16 %v2149, %v2148
    %v2167 = vpack.c.b16 %v2151, %v2150
    %2184 = vmatpush.bf16.msra.mxu0 %v2159
    %2185 = vmatpush.bf16.msra.mxu0 %v2158
    %2186 = vmatpush.bf16.msra.mxu0 %v2157
    %2187 = vmatpush.bf16.msra.mxu0 %v2156
    %2188 = vmatpush.bf16.msra.mxu0 %v2155
    %2189 = vmatpush.bf16.msra.mxu0 %v2154
    %2190 = vmatpush.bf16.msra.mxu0 %v2153
    %2191 = vmatpush.bf16.msra.mxu0 %v2152
    %2192 = vmatmul.bf16.gmra.mxu0 %v2082
    %v2193 = vpop.f32.mrf.mxu0
    %v2194 = vadd.f32 %v2086, %v2193
    %v2195 = vpop.f32.mrf.mxu0
    %v2196 = vadd.f32 %v2086, %v2195
    %2197 = vdwg.mxu0
    %2198 = vmatpush.bf16.msra.mxu0 %v2167
    %2199 = vmatpush.bf16.msra.mxu0 %v2166
    %2200 = vmatpush.bf16.msra.mxu0 %v2165
    %2201 = vmatpush.bf16.msra.mxu0 %v2164
    %2202 = vmatpush.bf16.msra.mxu0 %v2163
    %2203 = vmatpush.bf16.msra.mxu0 %v2162
    %2204 = vmatpush.bf16.msra.mxu0 %v2161
    %2205 = vmatpush.bf16.msra.mxu0 %v2160
    %2206 = vmatmul.bf16.gmra.mxu0 %v2083
    %v2207 = vpop.f32.mrf.mxu0
    %v2208 = vadd.f32 %v2194, %v2207
    %v2209 = vpop.f32.mrf.mxu0
    %v2210 = vadd.f32 %v2196, %v2209
    %2211 = vdwg.mxu0
    %v2212 = vadd.f32 %v2208, %v1881
    %v2213 = vadd.f32 %v2210, %v1882
    %v2214 = vld [vmem:[%s14] sm:$0x1]
    %v2215 = vld [vmem:[%s15] sm:$0x1]
    %2216 = vadd.xlane.f32.xlu0 %v2212
    %v2217 = vpop.xlane.xlu0 %2216
    %2218 = vadd.xlane.f32.xlu0 %v2213
    %v2219 = vpop.xlane.xlu0 %2218
    %v2220 = vmul.f32 %v2217, %v161
    %v2221 = vmul.f32 %v2219, %v161
    %v2222 = vsub.f32 %v2212, %v2220
    %v2223 = vsub.f32 %v2213, %v2221
    %v2224 = vmul.f32 %v2222, %v2222
    %v2225 = vmul.f32 %v2223, %v2223
    %2226 = vadd.xlane.f32.xlu0 %v2224
    %v2227 = vpop.xlane.xlu0 %2226
    %2228 = vadd.xlane.f32.xlu0 %v2225
    %v2229 = vpop.xlane.xlu0 %2228
    %v2230 = vmul.f32 %v2227, %v161
    %v2231 = vmul.f32 %v2229, %v161
    %v2232 = vadd.f32 %v2230, 1e-12
    %v2233 = vadd.f32 %v2231, 1e-12
    %v2234 = vrsqrt.pop %v2232
    %v2235 = vmul.f32 %v2234, %v2232
    %v2236 = vmul.f32 %v2235, %v2234
    %v2237 = vmul.f32 0.5, %v2236
    %v2238 = vsub.f32 1.5, %v2237
    %v2239 = vmul.f32 %v2234, %v2238
    %vm2240 = vweird.f32 %v2232
    %vm2241 = vweird.f32 %v2234
    %vm2242 = vmor %vm2240, %vm2241
    %v2243 = vsel %vm2242, %v2234, %v2239
    %v2244 = vrsqrt.pop %v2233
    %v2245 = vmul.f32 %v2244, %v2233
    %v2246 = vmul.f32 %v2245, %v2244
    %v2247 = vmul.f32 0.5, %v2246
    %v2248 = vsub.f32 1.5, %v2247
    %v2249 = vmul.f32 %v2244, %v2248
    %vm2250 = vweird.f32 %v2233
    %vm2251 = vweird.f32 %v2244
    %vm2252 = vmor %vm2250, %vm2251
    %v2253 = vsel %vm2252, %v2244, %v2249
    %v2254 = vmul.f32 %v2222, %v2243
    %v2255 = vmul.f32 %v2223, %v2253
    %v2257 = vperm.slane %v2214, 0
    %v2259 = vmul.f32 %v2254, %v2257
    %v2260 = vmul.f32 %v2255, %v2257
    %v2262 = vperm.slane %v2215, 0
    %v2264 = vadd.f32 %v2259, %v2262
    %v2265 = vadd.f32 %v2260, %v2262
    %s2266 = scalar_lea.vmem [#allocation2], 192
    %v2267 = vld [vmem:[%s2266] sm:$0xff]
    %v2268 = vld [vmem:[%s2266 + $0x8] sm:$0xf]
    %v2269 = vld [vmem:[%s2266 + $0xc] sm:$0xff]
    %v2270 = vld [vmem:[%s2266 + $0x14] sm:$0xf]
    %v2271 = vld [vmem:[%s2266 + $0x18] sm:$0xff]
    %v2272 = vld [vmem:[%s2266 + $0x20] sm:$0xf]
    %v2273 = vld [vmem:[%s2266 + $0x24] sm:$0xff]
    %v2274 = vld [vmem:[%s2266 + $0x2c] sm:$0xf]
    %v2275 = vld [vmem:[%s2266 + $0x30] sm:$0xff]
    %v2276 = vld [vmem:[%s2266 + $0x38] sm:$0xf]
    %v2277 = vld [vmem:[%s2266 + $0x3c] sm:$0xff]
    %v2278 = vld [vmem:[%s2266 + $0x44] sm:$0xf]
    %v2279 = vld [vmem:[%s2266 + $0x48] sm:$0xff]
    %v2280 = vld [vmem:[%s2266 + $0x50] sm:$0xf]
    %v2281 = vld [vmem:[%s2266 + $0x54] sm:$0xff]
    %v2282 = vld [vmem:[%s2266 + $0x5c] sm:$0xf]
    %v2283 = vld [vmem:[%s2266 + $0x60] sm:$0xff]
    %v2284 = vld [vmem:[%s2266 + $0x68] sm:$0xf]
    %v2285 = vld [vmem:[%s2266 + $0x6c] sm:$0xff]
    %v2286 = vld [vmem:[%s2266 + $0x74] sm:$0xf]
    %v2287 = vld [vmem:[%s2266 + $0x78] sm:$0xff]
    %v2288 = vld [vmem:[%s2266 + $0x80] sm:$0xf]
    %v2289 = vld [vmem:[%s2266 + $0x84] sm:$0xff]
    %v2290 = vld [vmem:[%s2266 + $0x8c] sm:$0xf]
    %v2291 = vld [vmem:[%s2266 + $0x90] sm:$0xff]
    %v2292 = vld [vmem:[%s2266 + $0x98] sm:$0xf]
    %v2293 = vld [vmem:[%s2266 + $0x9c] sm:$0xff]
    %v2294 = vld [vmem:[%s2266 + $0xa4] sm:$0xf]
    %v2295 = vld [vmem:[%s2266 + $0xa8] sm:$0xff]
    %v2296 = vld [vmem:[%s2266 + $0xb0] sm:$0xf]
    %v2297 = vld [vmem:[%s2266 + $0xb4] sm:$0xff]
    %v2298 = vld [vmem:[%s2266 + $0xbc] sm:$0xf]
    %v2299 = vpack.c.bf16 %v2265, %v2264
    %s2300 = scalar_lea.vmem %s5, 3
    %v2301 = vld [vmem:[%s2300] sm:$0x7]
    %v2303 = vperm.slane %v2301, 0
    %v2304 = vperm.slane %v2301, 1
    %v2305 = vperm.slane %v2301, 2
    %v2341 = vunpack.c.l.b16 %v2267
    %v2342 = vunpack.c.h.b16 %v2267
    %v2343 = vunpack.c.l.b16 %v2268
    %v2344 = vunpack.c.l.b16 %v2269
    %v2345 = vunpack.c.h.b16 %v2269
    %v2346 = vunpack.c.l.b16 %v2270
    %v2347 = vunpack.c.l.b16 %v2271
    %v2348 = vunpack.c.h.b16 %v2271
    %v2349 = vunpack.c.l.b16 %v2272
    %v2350 = vunpack.c.l.b16 %v2273
    %v2351 = vunpack.c.h.b16 %v2273
    %v2352 = vunpack.c.l.b16 %v2274
    %v2353 = vunpack.c.l.b16 %v2275
    %v2354 = vunpack.c.h.b16 %v2275
    %v2355 = vunpack.c.l.b16 %v2276
    %v2356 = vunpack.c.l.b16 %v2277
    %v2357 = vunpack.c.h.b16 %v2277
    %v2358 = vunpack.c.l.b16 %v2278
    %v2359 = vunpack.c.l.b16 %v2279
    %v2360 = vunpack.c.h.b16 %v2279
    %v2361 = vunpack.c.l.b16 %v2280
    %v2362 = vunpack.c.l.b16 %v2281
    %v2363 = vunpack.c.h.b16 %v2281
    %v2364 = vunpack.c.l.b16 %v2282
    %v2365 = vunpack.c.l.b16 %v2283
    %v2366 = vunpack.c.h.b16 %v2283
    %v2367 = vunpack.c.l.b16 %v2284
    %v2368 = vunpack.c.l.b16 %v2285
    %v2369 = vunpack.c.h.b16 %v2285
    %v2370 = vunpack.c.l.b16 %v2286
    %v2371 = vunpack.c.l.b16 %v2287
    %v2372 = vunpack.c.h.b16 %v2287
    %v2373 = vunpack.c.l.b16 %v2288
    %v2374 = vunpack.c.l.b16 %v2289
    %v2375 = vunpack.c.h.b16 %v2289
    %v2376 = vunpack.c.l.b16 %v2290
    %v2377 = vunpack.c.l.b16 %v2291
    %v2378 = vunpack.c.h.b16 %v2291
    %v2379 = vunpack.c.l.b16 %v2292
    %v2380 = vunpack.c.l.b16 %v2293
    %v2381 = vunpack.c.h.b16 %v2293
    %v2382 = vunpack.c.l.b16 %v2294
    %v2383 = vunpack.c.l.b16 %v2295
    %v2384 = vunpack.c.h.b16 %v2295
    %v2385 = vunpack.c.l.b16 %v2296
    %v2386 = vunpack.c.l.b16 %v2297
    %v2387 = vunpack.c.h.b16 %v2297
    %v2388 = vunpack.c.l.b16 %v2298
    %v2389 = vpack.c.b16 %v2344, %v2341
    %v2390 = vpack.c.b16 %v2345, %v2342
    %v2391 = vpack.c.b16 %v2346, %v2343
    %v2392 = vpack.c.b16 %v2350, %v2347
    %v2393 = vpack.c.b16 %v2351, %v2348
    %v2394 = vpack.c.b16 %v2352, %v2349
    %v2395 = vpack.c.b16 %v2356, %v2353
    %v2396 = vpack.c.b16 %v2357, %v2354
    %v2397 = vpack.c.b16 %v2358, %v2355
    %v2398 = vpack.c.b16 %v2362, %v2359
    %v2399 = vpack.c.b16 %v2363, %v2360
    %v2400 = vpack.c.b16 %v2364, %v2361
    %v2401 = vpack.c.b16 %v2368, %v2365
    %v2402 = vpack.c.b16 %v2369, %v2366
    %v2403 = vpack.c.b16 %v2370, %v2367
    %v2404 = vpack.c.b16 %v2374, %v2371
    %v2405 = vpack.c.b16 %v2375, %v2372
    %v2406 = vpack.c.b16 %v2376, %v2373
    %v2407 = vpack.c.b16 %v2380, %v2377
    %v2408 = vpack.c.b16 %v2381, %v2378
    %v2409 = vpack.c.b16 %v2382, %v2379
    %v2410 = vpack.c.b16 %v2386, %v2383
    %v2411 = vpack.c.b16 %v2387, %v2384
    %v2412 = vpack.c.b16 %v2388, %v2385
    %2437 = vmatpush.bf16.msra.mxu0 %v2410
    %2438 = vmatpush.bf16.msra.mxu0 %v2407
    %2439 = vmatpush.bf16.msra.mxu0 %v2404
    %2440 = vmatpush.bf16.msra.mxu0 %v2401
    %2441 = vmatpush.bf16.msra.mxu0 %v2398
    %2442 = vmatpush.bf16.msra.mxu0 %v2395
    %2443 = vmatpush.bf16.msra.mxu0 %v2392
    %2444 = vmatpush.bf16.msra.mxu0 %v2389
    %2445 = vmatmul.bf16.gmra.mxu0 %v2299
    %v2446 = vpop.f32.mrf.mxu0
    %v2447 = vadd.f32 %v2303, %v2446
    %v2448 = vpop.f32.mrf.mxu0
    %v2449 = vadd.f32 %v2303, %v2448
    %2450 = vdwg.mxu0
    %2451 = vmatpush.bf16.msra.mxu0 %v2411
    %2452 = vmatpush.bf16.msra.mxu0 %v2408
    %2453 = vmatpush.bf16.msra.mxu0 %v2405
    %2454 = vmatpush.bf16.msra.mxu0 %v2402
    %2455 = vmatpush.bf16.msra.mxu0 %v2399
    %2456 = vmatpush.bf16.msra.mxu0 %v2396
    %2457 = vmatpush.bf16.msra.mxu0 %v2393
    %2458 = vmatpush.bf16.msra.mxu0 %v2390
    %2459 = vmatmul.bf16.gmra.mxu0 %v2299
    %v2460 = vpop.f32.mrf.mxu0
    %v2461 = vadd.f32 %v2304, %v2460
    %v2462 = vpop.f32.mrf.mxu0
    %v2463 = vadd.f32 %v2304, %v2462
    %2464 = vdwg.mxu0
    %2465 = vmatpush.bf16.msra.mxu0 %v2412
    %2466 = vmatpush.bf16.msra.mxu0 %v2409
    %2467 = vmatpush.bf16.msra.mxu0 %v2406
    %2468 = vmatpush.bf16.msra.mxu0 %v2403
    %2469 = vmatpush.bf16.msra.mxu0 %v2400
    %2470 = vmatpush.bf16.msra.mxu0 %v2397
    %2471 = vmatpush.bf16.msra.mxu0 %v2394
    %2472 = vmatpush.bf16.msra.mxu0 %v2391
    %2473 = vmatmul.bf16.gmra.mxu0 %v2299
    %v2474 = vpop.f32.mrf.mxu0
    %v2475 = vadd.f32 %v2305, %v2474
    %v2476 = vpop.f32.mrf.mxu0
    %v2477 = vadd.f32 %v2305, %v2476
    %2478 = vdwg.mxu0
    %2481 = vrot.lane.b32.xlu0 %v2447, 96
    %v2482 = vpop.permute.xlu0 %2481
    %2483 = vrot.lane.b32.xlu0 %v2449, 96
    %v2484 = vpop.permute.xlu0 %2483
    %2487 = vrot.lane.b32.xlu0 %v2447, 64
    %v2488 = vpop.permute.xlu0 %2487
    %2489 = vrot.lane.b32.xlu0 %v2449, 64
    %v2490 = vpop.permute.xlu0 %2489
    %2493 = vrot.lane.b32.xlu0 %v2447, 32
    %v2494 = vpop.permute.xlu0 %2493
    %2495 = vrot.lane.b32.xlu0 %v2449, 32
    %v2496 = vpop.permute.xlu0 %2495
    %v2499 = vrot.slane %v2488, 4
    %v2500 = vsel %vm440, %v2499, %v2447
    %v2501 = vrot.slane %v2447, 4
    %v2502 = vsel %vm440, %v2488, %v2501
    %v2504 = vunpack.c.l.s4 1983009808
    %v2505 = vunpack.c.0.s8 %v2504
    %v2506 = vperm.slane %v2500, %v2505
    %v2508 = vunpack.c.l.s4 1983009808
    %v2509 = vunpack.c.0.s8 %v2508
    %v2510 = vperm.slane %v2502, %v2509
    %v2511 = vrot.slane %v2494, 4
    %v2512 = vsel %vm440, %v2511, %v2482
    %v2513 = vrot.slane %v2482, 4
    %v2514 = vsel %vm440, %v2494, %v2513
    %v2516 = vunpack.c.l.s4 1983009808
    %v2517 = vunpack.c.0.s8 %v2516
    %v2518 = vperm.slane %v2512, %v2517
    %v2520 = vunpack.c.l.s4 1983009808
    %v2521 = vunpack.c.0.s8 %v2520
    %v2522 = vperm.slane %v2514, %v2521
    %v2523 = vrot.slane %v2518, 4
    %v2524 = vsel %vm440, %v2523, %v2506
    %v2525 = vrot.slane %v2506, 4
    %v2526 = vsel %vm440, %v2518, %v2525
    %v2528 = vunpack.c.l.s4 1934713408
    %v2529 = vunpack.c.0.s8 %v2528
    %v2530 = vperm.slane %v2524, %v2529
    %v2532 = vunpack.c.l.s4 1934713408
    %v2533 = vunpack.c.0.s8 %v2532
    %v2534 = vperm.slane %v2526, %v2533
    %v2535 = vrot.slane %v2522, 4
    %v2536 = vsel %vm440, %v2535, %v2510
    %v2537 = vrot.slane %v2510, 4
    %v2538 = vsel %vm440, %v2522, %v2537
    %v2540 = vunpack.c.l.s4 1934713408
    %v2541 = vunpack.c.0.s8 %v2540
    %v2542 = vperm.slane %v2536, %v2541
    %v2544 = vunpack.c.l.s4 1934713408
    %v2545 = vunpack.c.0.s8 %v2544
    %v2546 = vperm.slane %v2538, %v2545
    %v2547 = vrot.slane %v2530, 4
    %v2548 = vsel %vm440, 0.0, %v2547
    %v2549 = vrot.slane %v2534, 4
    %v2550 = vsel %vm440, 0.0, %v2549
    %v2551 = vrot.slane %v2542, 4
    %v2552 = vsel %vm440, 0.0, %v2551
    %v2553 = vrot.slane %v2546, 4
    %v2554 = vsel %vm440, 0.0, %v2553
    %v2555 = vrot.slane %v2490, 4
    %v2556 = vsel %vm440, %v2555, %v2449
    %v2557 = vrot.slane %v2449, 4
    %v2558 = vsel %vm440, %v2490, %v2557
    %v2560 = vunpack.c.l.s4 1983009808
    %v2561 = vunpack.c.0.s8 %v2560
    %v2562 = vperm.slane %v2556, %v2561
    %v2564 = vunpack.c.l.s4 1983009808
    %v2565 = vunpack.c.0.s8 %v2564
    %v2566 = vperm.slane %v2558, %v2565
    %v2567 = vrot.slane %v2496, 4
    %v2568 = vsel %vm440, %v2567, %v2484
    %v2569 = vrot.slane %v2484, 4
    %v2570 = vsel %vm440, %v2496, %v2569
    %v2572 = vunpack.c.l.s4 1983009808
    %v2573 = vunpack.c.0.s8 %v2572
    %v2574 = vperm.slane %v2568, %v2573
    %v2576 = vunpack.c.l.s4 1983009808
    %v2577 = vunpack.c.0.s8 %v2576
    %v2578 = vperm.slane %v2570, %v2577
    %v2579 = vrot.slane %v2574, 4
    %v2580 = vsel %vm440, %v2579, %v2562
    %v2581 = vrot.slane %v2562, 4
    %v2582 = vsel %vm440, %v2574, %v2581
    %v2584 = vunpack.c.l.s4 1934713408
    %v2585 = vunpack.c.0.s8 %v2584
    %v2586 = vperm.slane %v2580, %v2585
    %v2588 = vunpack.c.l.s4 1934713408
    %v2589 = vunpack.c.0.s8 %v2588
    %v2590 = vperm.slane %v2582, %v2589
    %v2591 = vrot.slane %v2578, 4
    %v2592 = vsel %vm440, %v2591, %v2566
    %v2593 = vrot.slane %v2566, 4
    %v2594 = vsel %vm440, %v2578, %v2593
    %v2596 = vunpack.c.l.s4 1934713408
    %v2597 = vunpack.c.0.s8 %v2596
    %v2598 = vperm.slane %v2592, %v2597
    %v2600 = vunpack.c.l.s4 1934713408
    %v2601 = vunpack.c.0.s8 %v2600
    %v2602 = vperm.slane %v2594, %v2601
    %v2603 = vrot.slane %v2586, 4
    %v2604 = vsel %vm440, 0.0, %v2603
    %v2605 = vrot.slane %v2590, 4
    %v2606 = vsel %vm440, 0.0, %v2605
    %v2607 = vrot.slane %v2598, 4
    %v2608 = vsel %vm440, 0.0, %v2607
    %v2609 = vrot.slane %v2602, 4
    %v2610 = vsel %vm440, 0.0, %v2609
    %v2611 = vsel %vm440, %v2549, %v2530
    %v2613 = vunpack.c.l.s4 1983009808
    %v2614 = vunpack.c.0.s8 %v2613
    %v2615 = vperm.slane %v2611, %v2614
    %v2616 = vrot.slane %v2550, 4
    %v2617 = vsel %vm440, %v2616, %v2548
    %v2619 = vunpack.c.l.s4 1983009808
    %v2620 = vunpack.c.0.s8 %v2619
    %v2621 = vperm.slane %v2617, %v2620
    %v2622 = vsel %vm440, %v2553, %v2542
    %v2624 = vunpack.c.l.s4 1983009808
    %v2625 = vunpack.c.0.s8 %v2624
    %v2626 = vperm.slane %v2622, %v2625
    %v2627 = vrot.slane %v2554, 4
    %v2628 = vsel %vm440, %v2627, %v2552
    %v2630 = vunpack.c.l.s4 1983009808
    %v2631 = vunpack.c.0.s8 %v2630
    %v2632 = vperm.slane %v2628, %v2631
    %v2633 = vrot.slane %v2621, 4
    %v2634 = vsel %vm440, %v2633, %v2615
    %v2635 = vrot.slane %v2615, 4
    %v2636 = vsel %vm440, %v2621, %v2635
    %v2638 = vunpack.c.l.s4 1934713408
    %v2639 = vunpack.c.0.s8 %v2638
    %v2640 = vperm.slane %v2634, %v2639
    %v2642 = vunpack.c.l.s4 1934713408
    %v2643 = vunpack.c.0.s8 %v2642
    %v2644 = vperm.slane %v2636, %v2643
    %v2645 = vrot.slane %v2632, 4
    %v2646 = vsel %vm440, %v2645, %v2626
    %v2647 = vrot.slane %v2626, 4
    %v2648 = vsel %vm440, %v2632, %v2647
    %v2650 = vunpack.c.l.s4 1934713408
    %v2651 = vunpack.c.0.s8 %v2650
    %v2652 = vperm.slane %v2646, %v2651
    %v2654 = vunpack.c.l.s4 1934713408
    %v2655 = vunpack.c.0.s8 %v2654
    %v2656 = vperm.slane %v2648, %v2655
    %v2657 = vrot.slane %v2652, 4
    %v2658 = vsel %vm440, %v2657, %v2640
    %v2659 = vrot.slane %v2640, 4
    %v2660 = vsel %vm440, %v2652, %v2659
    %v2661 = vrot.slane %v2656, 4
    %v2662 = vsel %vm440, %v2661, %v2644
    %v2663 = vrot.slane %v2644, 4
    %v2664 = vsel %vm440, %v2656, %v2663
    %v2665 = vsel %vm440, %v2605, %v2586
    %v2667 = vunpack.c.l.s4 1983009808
    %v2668 = vunpack.c.0.s8 %v2667
    %v2669 = vperm.slane %v2665, %v2668
    %v2670 = vrot.slane %v2606, 4
    %v2671 = vsel %vm440, %v2670, %v2604
    %v2673 = vunpack.c.l.s4 1983009808
    %v2674 = vunpack.c.0.s8 %v2673
    %v2675 = vperm.slane %v2671, %v2674
    %v2676 = vsel %vm440, %v2609, %v2598
    %v2678 = vunpack.c.l.s4 1983009808
    %v2679 = vunpack.c.0.s8 %v2678
    %v2680 = vperm.slane %v2676, %v2679
    %v2681 = vrot.slane %v2610, 4
    %v2682 = vsel %vm440, %v2681, %v2608
    %v2684 = vunpack.c.l.s4 1983009808
    %v2685 = vunpack.c.0.s8 %v2684
    %v2686 = vperm.slane %v2682, %v2685
    %v2687 = vrot.slane %v2675, 4
    %v2688 = vsel %vm440, %v2687, %v2669
    %v2689 = vrot.slane %v2669, 4
    %v2690 = vsel %vm440, %v2675, %v2689
    %v2692 = vunpack.c.l.s4 1934713408
    %v2693 = vunpack.c.0.s8 %v2692
    %v2694 = vperm.slane %v2688, %v2693
    %v2696 = vunpack.c.l.s4 1934713408
    %v2697 = vunpack.c.0.s8 %v2696
    %v2698 = vperm.slane %v2690, %v2697
    %v2699 = vrot.slane %v2686, 4
    %v2700 = vsel %vm440, %v2699, %v2680
    %v2701 = vrot.slane %v2680, 4
    %v2702 = vsel %vm440, %v2686, %v2701
    %v2704 = vunpack.c.l.s4 1934713408
    %v2705 = vunpack.c.0.s8 %v2704
    %v2706 = vperm.slane %v2700, %v2705
    %v2708 = vunpack.c.l.s4 1934713408
    %v2709 = vunpack.c.0.s8 %v2708
    %v2710 = vperm.slane %v2702, %v2709
    %v2711 = vrot.slane %v2706, 4
    %v2712 = vsel %vm440, %v2711, %v2694
    %v2713 = vrot.slane %v2694, 4
    %v2714 = vsel %vm440, %v2706, %v2713
    %v2715 = vrot.slane %v2710, 4
    %v2716 = vsel %vm440, %v2715, %v2698
    %v2717 = vrot.slane %v2698, 4
    %v2718 = vsel %vm440, %v2710, %v2717
    %v2719 = vpack.c.bf16 %v2658, %v2658
    %v2720 = vpack.c.bf16 %v2712, %v2712
    %v2721 = vpack.c.bf16 %v2660, %v2660
    %v2722 = vpack.c.bf16 %v2714, %v2714
    %v2723 = vpack.c.bf16 %v2662, %v2662
    %v2724 = vpack.c.bf16 %v2716, %v2716
    %v2725 = vpack.c.bf16 %v2664, %v2664
    %v2726 = vpack.c.bf16 %v2718, %v2718
    %2729 = vrot.lane.b32.xlu0 %v2461, 96
    %v2730 = vpop.permute.xlu0 %2729
    %2731 = vrot.lane.b32.xlu0 %v2463, 96
    %v2732 = vpop.permute.xlu0 %2731
    %2735 = vrot.lane.b32.xlu0 %v2461, 64
    %v2736 = vpop.permute.xlu0 %2735
    %2737 = vrot.lane.b32.xlu0 %v2463, 64
    %v2738 = vpop.permute.xlu0 %2737
    %2741 = vrot.lane.b32.xlu0 %v2461, 32
    %v2742 = vpop.permute.xlu0 %2741
    %2743 = vrot.lane.b32.xlu0 %v2463, 32
    %v2744 = vpop.permute.xlu0 %2743
    %v2747 = vrot.slane %v2736, 4
    %v2748 = vsel %vm440, %v2747, %v2461
    %v2749 = vrot.slane %v2461, 4
    %v2750 = vsel %vm440, %v2736, %v2749
    %v2752 = vunpack.c.l.s4 1983009808
    %v2753 = vunpack.c.0.s8 %v2752
    %v2754 = vperm.slane %v2748, %v2753
    %v2756 = vunpack.c.l.s4 1983009808
    %v2757 = vunpack.c.0.s8 %v2756
    %v2758 = vperm.slane %v2750, %v2757
    %v2759 = vrot.slane %v2742, 4
    %v2760 = vsel %vm440, %v2759, %v2730
    %v2761 = vrot.slane %v2730, 4
    %v2762 = vsel %vm440, %v2742, %v2761
    %v2764 = vunpack.c.l.s4 1983009808
    %v2765 = vunpack.c.0.s8 %v2764
    %v2766 = vperm.slane %v2760, %v2765
    %v2768 = vunpack.c.l.s4 1983009808
    %v2769 = vunpack.c.0.s8 %v2768
    %v2770 = vperm.slane %v2762, %v2769
    %v2771 = vrot.slane %v2766, 4
    %v2772 = vsel %vm440, %v2771, %v2754
    %v2773 = vrot.slane %v2754, 4
    %v2774 = vsel %vm440, %v2766, %v2773
    %v2776 = vunpack.c.l.s4 1934713408
    %v2777 = vunpack.c.0.s8 %v2776
    %v2778 = vperm.slane %v2772, %v2777
    %v2780 = vunpack.c.l.s4 1934713408
    %v2781 = vunpack.c.0.s8 %v2780
    %v2782 = vperm.slane %v2774, %v2781
    %v2783 = vrot.slane %v2770, 4
    %v2784 = vsel %vm440, %v2783, %v2758
    %v2785 = vrot.slane %v2758, 4
    %v2786 = vsel %vm440, %v2770, %v2785
    %v2788 = vunpack.c.l.s4 1934713408
    %v2789 = vunpack.c.0.s8 %v2788
    %v2790 = vperm.slane %v2784, %v2789
    %v2792 = vunpack.c.l.s4 1934713408
    %v2793 = vunpack.c.0.s8 %v2792
    %v2794 = vperm.slane %v2786, %v2793
    %v2795 = vrot.slane %v2778, 4
    %v2796 = vsel %vm440, 0.0, %v2795
    %v2797 = vrot.slane %v2782, 4
    %v2798 = vsel %vm440, 0.0, %v2797
    %v2799 = vrot.slane %v2790, 4
    %v2800 = vsel %vm440, 0.0, %v2799
    %v2801 = vrot.slane %v2794, 4
    %v2802 = vsel %vm440, 0.0, %v2801
    %v2803 = vrot.slane %v2738, 4
    %v2804 = vsel %vm440, %v2803, %v2463
    %v2805 = vrot.slane %v2463, 4
    %v2806 = vsel %vm440, %v2738, %v2805
    %v2808 = vunpack.c.l.s4 1983009808
    %v2809 = vunpack.c.0.s8 %v2808
    %v2810 = vperm.slane %v2804, %v2809
    %v2812 = vunpack.c.l.s4 1983009808
    %v2813 = vunpack.c.0.s8 %v2812
    %v2814 = vperm.slane %v2806, %v2813
    %v2815 = vrot.slane %v2744, 4
    %v2816 = vsel %vm440, %v2815, %v2732
    %v2817 = vrot.slane %v2732, 4
    %v2818 = vsel %vm440, %v2744, %v2817
    %v2820 = vunpack.c.l.s4 1983009808
    %v2821 = vunpack.c.0.s8 %v2820
    %v2822 = vperm.slane %v2816, %v2821
    %v2824 = vunpack.c.l.s4 1983009808
    %v2825 = vunpack.c.0.s8 %v2824
    %v2826 = vperm.slane %v2818, %v2825
    %v2827 = vrot.slane %v2822, 4
    %v2828 = vsel %vm440, %v2827, %v2810
    %v2829 = vrot.slane %v2810, 4
    %v2830 = vsel %vm440, %v2822, %v2829
    %v2832 = vunpack.c.l.s4 1934713408
    %v2833 = vunpack.c.0.s8 %v2832
    %v2834 = vperm.slane %v2828, %v2833
    %v2836 = vunpack.c.l.s4 1934713408
    %v2837 = vunpack.c.0.s8 %v2836
    %v2838 = vperm.slane %v2830, %v2837
    %v2839 = vrot.slane %v2826, 4
    %v2840 = vsel %vm440, %v2839, %v2814
    %v2841 = vrot.slane %v2814, 4
    %v2842 = vsel %vm440, %v2826, %v2841
    %v2844 = vunpack.c.l.s4 1934713408
    %v2845 = vunpack.c.0.s8 %v2844
    %v2846 = vperm.slane %v2840, %v2845
    %v2848 = vunpack.c.l.s4 1934713408
    %v2849 = vunpack.c.0.s8 %v2848
    %v2850 = vperm.slane %v2842, %v2849
    %v2851 = vrot.slane %v2834, 4
    %v2852 = vsel %vm440, 0.0, %v2851
    %v2853 = vrot.slane %v2838, 4
    %v2854 = vsel %vm440, 0.0, %v2853
    %v2855 = vrot.slane %v2846, 4
    %v2856 = vsel %vm440, 0.0, %v2855
    %v2857 = vrot.slane %v2850, 4
    %v2858 = vsel %vm440, 0.0, %v2857
    %v2859 = vsel %vm440, %v2797, %v2778
    %v2861 = vunpack.c.l.s4 1983009808
    %v2862 = vunpack.c.0.s8 %v2861
    %v2863 = vperm.slane %v2859, %v2862
    %v2864 = vrot.slane %v2798, 4
    %v2865 = vsel %vm440, %v2864, %v2796
    %v2867 = vunpack.c.l.s4 1983009808
    %v2868 = vunpack.c.0.s8 %v2867
    %v2869 = vperm.slane %v2865, %v2868
    %v2870 = vsel %vm440, %v2801, %v2790
    %v2872 = vunpack.c.l.s4 1983009808
    %v2873 = vunpack.c.0.s8 %v2872
    %v2874 = vperm.slane %v2870, %v2873
    %v2875 = vrot.slane %v2802, 4
    %v2876 = vsel %vm440, %v2875, %v2800
    %v2878 = vunpack.c.l.s4 1983009808
    %v2879 = vunpack.c.0.s8 %v2878
    %v2880 = vperm.slane %v2876, %v2879
    %v2881 = vrot.slane %v2869, 4
    %v2882 = vsel %vm440, %v2881, %v2863
    %v2883 = vrot.slane %v2863, 4
    %v2884 = vsel %vm440, %v2869, %v2883
    %v2886 = vunpack.c.l.s4 1934713408
    %v2887 = vunpack.c.0.s8 %v2886
    %v2888 = vperm.slane %v2882, %v2887
    %v2890 = vunpack.c.l.s4 1934713408
    %v2891 = vunpack.c.0.s8 %v2890
    %v2892 = vperm.slane %v2884, %v2891
    %v2893 = vrot.slane %v2880, 4
    %v2894 = vsel %vm440, %v2893, %v2874
    %v2895 = vrot.slane %v2874, 4
    %v2896 = vsel %vm440, %v2880, %v2895
    %v2898 = vunpack.c.l.s4 1934713408
    %v2899 = vunpack.c.0.s8 %v2898
    %v2900 = vperm.slane %v2894, %v2899
    %v2902 = vunpack.c.l.s4 1934713408
    %v2903 = vunpack.c.0.s8 %v2902
    %v2904 = vperm.slane %v2896, %v2903
    %v2905 = vrot.slane %v2900, 4
    %v2906 = vsel %vm440, %v2905, %v2888
    %v2907 = vrot.slane %v2888, 4
    %v2908 = vsel %vm440, %v2900, %v2907
    %v2909 = vrot.slane %v2904, 4
    %v2910 = vsel %vm440, %v2909, %v2892
    %v2911 = vrot.slane %v2892, 4
    %v2912 = vsel %vm440, %v2904, %v2911
    %v2913 = vsel %vm440, %v2853, %v2834
    %v2915 = vunpack.c.l.s4 1983009808
    %v2916 = vunpack.c.0.s8 %v2915
    %v2917 = vperm.slane %v2913, %v2916
    %v2918 = vrot.slane %v2854, 4
    %v2919 = vsel %vm440, %v2918, %v2852
    %v2921 = vunpack.c.l.s4 1983009808
    %v2922 = vunpack.c.0.s8 %v2921
    %v2923 = vperm.slane %v2919, %v2922
    %v2924 = vsel %vm440, %v2857, %v2846
    %v2926 = vunpack.c.l.s4 1983009808
    %v2927 = vunpack.c.0.s8 %v2926
    %v2928 = vperm.slane %v2924, %v2927
    %v2929 = vrot.slane %v2858, 4
    %v2930 = vsel %vm440, %v2929, %v2856
    %v2932 = vunpack.c.l.s4 1983009808
    %v2933 = vunpack.c.0.s8 %v2932
    %v2934 = vperm.slane %v2930, %v2933
    %v2935 = vrot.slane %v2923, 4
    %v2936 = vsel %vm440, %v2935, %v2917
    %v2937 = vrot.slane %v2917, 4
    %v2938 = vsel %vm440, %v2923, %v2937
    %v2940 = vunpack.c.l.s4 1934713408
    %v2941 = vunpack.c.0.s8 %v2940
    %v2942 = vperm.slane %v2936, %v2941
    %v2944 = vunpack.c.l.s4 1934713408
    %v2945 = vunpack.c.0.s8 %v2944
    %v2946 = vperm.slane %v2938, %v2945
    %v2947 = vrot.slane %v2934, 4
    %v2948 = vsel %vm440, %v2947, %v2928
    %v2949 = vrot.slane %v2928, 4
    %v2950 = vsel %vm440, %v2934, %v2949
    %v2952 = vunpack.c.l.s4 1934713408
    %v2953 = vunpack.c.0.s8 %v2952
    %v2954 = vperm.slane %v2948, %v2953
    %v2956 = vunpack.c.l.s4 1934713408
    %v2957 = vunpack.c.0.s8 %v2956
    %v2958 = vperm.slane %v2950, %v2957
    %v2959 = vrot.slane %v2954, 4
    %v2960 = vsel %vm440, %v2959, %v2942
    %v2961 = vrot.slane %v2942, 4
    %v2962 = vsel %vm440, %v2954, %v2961
    %v2963 = vrot.slane %v2958, 4
    %v2964 = vsel %vm440, %v2963, %v2946
    %v2965 = vrot.slane %v2946, 4
    %v2966 = vsel %vm440, %v2958, %v2965
    %v2967 = vpack.c.bf16 %v2906, %v2906
    %v2968 = vpack.c.bf16 %v2960, %v2960
    %v2969 = vpack.c.bf16 %v2908, %v2908
    %v2970 = vpack.c.bf16 %v2962, %v2962
    %v2971 = vpack.c.bf16 %v2910, %v2910
    %v2972 = vpack.c.bf16 %v2964, %v2964
    %v2973 = vpack.c.bf16 %v2912, %v2912
    %v2974 = vpack.c.bf16 %v2966, %v2966
    %2977 = vrot.lane.b32.xlu0 %v2475, 96
    %v2978 = vpop.permute.xlu0 %2977
    %2979 = vrot.lane.b32.xlu0 %v2477, 96
    %v2980 = vpop.permute.xlu0 %2979
    %2983 = vrot.lane.b32.xlu0 %v2475, 64
    %v2984 = vpop.permute.xlu0 %2983
    %2985 = vrot.lane.b32.xlu0 %v2477, 64
    %v2986 = vpop.permute.xlu0 %2985
    %2989 = vrot.lane.b32.xlu0 %v2475, 32
    %v2990 = vpop.permute.xlu0 %2989
    %2991 = vrot.lane.b32.xlu0 %v2477, 32
    %v2992 = vpop.permute.xlu0 %2991
    %v2995 = vrot.slane %v2984, 4
    %v2996 = vsel %vm440, %v2995, %v2475
    %v2997 = vrot.slane %v2475, 4
    %v2998 = vsel %vm440, %v2984, %v2997
    %v3000 = vunpack.c.l.s4 1983009808
    %v3001 = vunpack.c.0.s8 %v3000
    %v3002 = vperm.slane %v2996, %v3001
    %v3004 = vunpack.c.l.s4 1983009808
    %v3005 = vunpack.c.0.s8 %v3004
    %v3006 = vperm.slane %v2998, %v3005
    %v3007 = vrot.slane %v2990, 4
    %v3008 = vsel %vm440, %v3007, %v2978
    %v3009 = vrot.slane %v2978, 4
    %v3010 = vsel %vm440, %v2990, %v3009
    %v3012 = vunpack.c.l.s4 1983009808
    %v3013 = vunpack.c.0.s8 %v3012
    %v3014 = vperm.slane %v3008, %v3013
    %v3016 = vunpack.c.l.s4 1983009808
    %v3017 = vunpack.c.0.s8 %v3016
    %v3018 = vperm.slane %v3010, %v3017
    %v3019 = vrot.slane %v3014, 4
    %v3020 = vsel %vm440, %v3019, %v3002
    %v3021 = vrot.slane %v3002, 4
    %v3022 = vsel %vm440, %v3014, %v3021
    %v3024 = vunpack.c.l.s4 1934713408
    %v3025 = vunpack.c.0.s8 %v3024
    %v3026 = vperm.slane %v3020, %v3025
    %v3028 = vunpack.c.l.s4 1934713408
    %v3029 = vunpack.c.0.s8 %v3028
    %v3030 = vperm.slane %v3022, %v3029
    %v3031 = vrot.slane %v3018, 4
    %v3032 = vsel %vm440, %v3031, %v3006
    %v3033 = vrot.slane %v3006, 4
    %v3034 = vsel %vm440, %v3018, %v3033
    %v3036 = vunpack.c.l.s4 1934713408
    %v3037 = vunpack.c.0.s8 %v3036
    %v3038 = vperm.slane %v3032, %v3037
    %v3040 = vunpack.c.l.s4 1934713408
    %v3041 = vunpack.c.0.s8 %v3040
    %v3042 = vperm.slane %v3034, %v3041
    %v3043 = vrot.slane %v3026, 4
    %v3044 = vsel %vm440, 0.0, %v3043
    %v3045 = vrot.slane %v3030, 4
    %v3046 = vsel %vm440, 0.0, %v3045
    %v3047 = vrot.slane %v3038, 4
    %v3048 = vsel %vm440, 0.0, %v3047
    %v3049 = vrot.slane %v3042, 4
    %v3050 = vsel %vm440, 0.0, %v3049
    %v3051 = vrot.slane %v2986, 4
    %v3052 = vsel %vm440, %v3051, %v2477
    %v3053 = vrot.slane %v2477, 4
    %v3054 = vsel %vm440, %v2986, %v3053
    %v3056 = vunpack.c.l.s4 1983009808
    %v3057 = vunpack.c.0.s8 %v3056
    %v3058 = vperm.slane %v3052, %v3057
    %v3060 = vunpack.c.l.s4 1983009808
    %v3061 = vunpack.c.0.s8 %v3060
    %v3062 = vperm.slane %v3054, %v3061
    %v3063 = vrot.slane %v2992, 4
    %v3064 = vsel %vm440, %v3063, %v2980
    %v3065 = vrot.slane %v2980, 4
    %v3066 = vsel %vm440, %v2992, %v3065
    %v3068 = vunpack.c.l.s4 1983009808
    %v3069 = vunpack.c.0.s8 %v3068
    %v3070 = vperm.slane %v3064, %v3069
    %v3072 = vunpack.c.l.s4 1983009808
    %v3073 = vunpack.c.0.s8 %v3072
    %v3074 = vperm.slane %v3066, %v3073
    %v3075 = vrot.slane %v3070, 4
    %v3076 = vsel %vm440, %v3075, %v3058
    %v3077 = vrot.slane %v3058, 4
    %v3078 = vsel %vm440, %v3070, %v3077
    %v3080 = vunpack.c.l.s4 1934713408
    %v3081 = vunpack.c.0.s8 %v3080
    %v3082 = vperm.slane %v3076, %v3081
    %v3084 = vunpack.c.l.s4 1934713408
    %v3085 = vunpack.c.0.s8 %v3084
    %v3086 = vperm.slane %v3078, %v3085
    %v3087 = vrot.slane %v3074, 4
    %v3088 = vsel %vm440, %v3087, %v3062
    %v3089 = vrot.slane %v3062, 4
    %v3090 = vsel %vm440, %v3074, %v3089
    %v3092 = vunpack.c.l.s4 1934713408
    %v3093 = vunpack.c.0.s8 %v3092
    %v3094 = vperm.slane %v3088, %v3093
    %v3096 = vunpack.c.l.s4 1934713408
    %v3097 = vunpack.c.0.s8 %v3096
    %v3098 = vperm.slane %v3090, %v3097
    %v3099 = vrot.slane %v3082, 4
    %v3100 = vsel %vm440, 0.0, %v3099
    %v3101 = vrot.slane %v3086, 4
    %v3102 = vsel %vm440, 0.0, %v3101
    %v3103 = vrot.slane %v3094, 4
    %v3104 = vsel %vm440, 0.0, %v3103
    %v3105 = vrot.slane %v3098, 4
    %v3106 = vsel %vm440, 0.0, %v3105
    %v3107 = vsel %vm440, %v3045, %v3026
    %v3109 = vunpack.c.l.s4 1983009808
    %v3110 = vunpack.c.0.s8 %v3109
    %v3111 = vperm.slane %v3107, %v3110
    %v3112 = vrot.slane %v3046, 4
    %v3113 = vsel %vm440, %v3112, %v3044
    %v3115 = vunpack.c.l.s4 1983009808
    %v3116 = vunpack.c.0.s8 %v3115
    %v3117 = vperm.slane %v3113, %v3116
    %v3118 = vsel %vm440, %v3049, %v3038
    %v3120 = vunpack.c.l.s4 1983009808
    %v3121 = vunpack.c.0.s8 %v3120
    %v3122 = vperm.slane %v3118, %v3121
    %v3123 = vrot.slane %v3050, 4
    %v3124 = vsel %vm440, %v3123, %v3048
    %v3126 = vunpack.c.l.s4 1983009808
    %v3127 = vunpack.c.0.s8 %v3126
    %v3128 = vperm.slane %v3124, %v3127
    %v3129 = vrot.slane %v3117, 4
    %v3130 = vsel %vm440, %v3129, %v3111
    %v3131 = vrot.slane %v3111, 4
    %v3132 = vsel %vm440, %v3117, %v3131
    %v3134 = vunpack.c.l.s4 1934713408
    %v3135 = vunpack.c.0.s8 %v3134
    %v3136 = vperm.slane %v3130, %v3135
    %v3138 = vunpack.c.l.s4 1934713408
    %v3139 = vunpack.c.0.s8 %v3138
    %v3140 = vperm.slane %v3132, %v3139
    %v3141 = vrot.slane %v3128, 4
    %v3142 = vsel %vm440, %v3141, %v3122
    %v3143 = vrot.slane %v3122, 4
    %v3144 = vsel %vm440, %v3128, %v3143
    %v3146 = vunpack.c.l.s4 1934713408
    %v3147 = vunpack.c.0.s8 %v3146
    %v3148 = vperm.slane %v3142, %v3147
    %v3150 = vunpack.c.l.s4 1934713408
    %v3151 = vunpack.c.0.s8 %v3150
    %v3152 = vperm.slane %v3144, %v3151
    %v3153 = vrot.slane %v3148, 4
    %v3154 = vsel %vm440, %v3153, %v3136
    %v3155 = vrot.slane %v3136, 4
    %v3156 = vsel %vm440, %v3148, %v3155
    %v3157 = vrot.slane %v3152, 4
    %v3158 = vsel %vm440, %v3157, %v3140
    %v3159 = vrot.slane %v3140, 4
    %v3160 = vsel %vm440, %v3152, %v3159
    %v3161 = vsel %vm440, %v3101, %v3082
    %v3163 = vunpack.c.l.s4 1983009808
    %v3164 = vunpack.c.0.s8 %v3163
    %v3165 = vperm.slane %v3161, %v3164
    %v3166 = vrot.slane %v3102, 4
    %v3167 = vsel %vm440, %v3166, %v3100
    %v3169 = vunpack.c.l.s4 1983009808
    %v3170 = vunpack.c.0.s8 %v3169
    %v3171 = vperm.slane %v3167, %v3170
    %v3172 = vsel %vm440, %v3105, %v3094
    %v3174 = vunpack.c.l.s4 1983009808
    %v3175 = vunpack.c.0.s8 %v3174
    %v3176 = vperm.slane %v3172, %v3175
    %v3177 = vrot.slane %v3106, 4
    %v3178 = vsel %vm440, %v3177, %v3104
    %v3180 = vunpack.c.l.s4 1983009808
    %v3181 = vunpack.c.0.s8 %v3180
    %v3182 = vperm.slane %v3178, %v3181
    %v3183 = vrot.slane %v3171, 4
    %v3184 = vsel %vm440, %v3183, %v3165
    %v3185 = vrot.slane %v3165, 4
    %v3186 = vsel %vm440, %v3171, %v3185
    %v3188 = vunpack.c.l.s4 1934713408
    %v3189 = vunpack.c.0.s8 %v3188
    %v3190 = vperm.slane %v3184, %v3189
    %v3192 = vunpack.c.l.s4 1934713408
    %v3193 = vunpack.c.0.s8 %v3192
    %v3194 = vperm.slane %v3186, %v3193
    %v3195 = vrot.slane %v3182, 4
    %v3196 = vsel %vm440, %v3195, %v3176
    %v3197 = vrot.slane %v3176, 4
    %v3198 = vsel %vm440, %v3182, %v3197
    %v3200 = vunpack.c.l.s4 1934713408
    %v3201 = vunpack.c.0.s8 %v3200
    %v3202 = vperm.slane %v3196, %v3201
    %v3204 = vunpack.c.l.s4 1934713408
    %v3205 = vunpack.c.0.s8 %v3204
    %v3206 = vperm.slane %v3198, %v3205
    %v3207 = vrot.slane %v3202, 4
    %v3208 = vsel %vm440, %v3207, %v3190
    %v3209 = vrot.slane %v3190, 4
    %v3210 = vsel %vm440, %v3202, %v3209
    %v3211 = vrot.slane %v3206, 4
    %v3212 = vsel %vm440, %v3211, %v3194
    %v3213 = vrot.slane %v3194, 4
    %v3214 = vsel %vm440, %v3206, %v3213
    %v3215 = vpack.c.bf16 %v3154, %v3154
    %v3216 = vpack.c.bf16 %v3208, %v3208
    %v3217 = vpack.c.bf16 %v3156, %v3156
    %v3218 = vpack.c.bf16 %v3210, %v3210
    %v3219 = vpack.c.bf16 %v3158, %v3158
    %v3220 = vpack.c.bf16 %v3212, %v3212
    %v3221 = vpack.c.bf16 %v3160, %v3160
    %v3222 = vpack.c.bf16 %v3214, %v3214
    %v3225 = vunpack.c.l.b16 %v2719
    %v3226 = vunpack.c.l.b16 %v2720
    %v3227 = vpack.c.b16 %v3226, %v3225
    %v3230 = vunpack.c.l.b16 %v2967
    %v3231 = vunpack.c.l.b16 %v2968
    %v3232 = vpack.c.b16 %v3231, %v3230
    %v3234 = vsel %vm1174, %v3227, 0
    %v3237 = vsel %vm1174, %v3232, 0
    %3239 = vmatpush.bf16.xpose.msra.mxu0 0
    %3240 = vmatpush.bf16.xpose.msra.mxu0 0
    %3241 = vmatpush.bf16.xpose.msra.mxu0 0
    %3242 = vmatpush.bf16.xpose.msra.mxu0 0
    %3243 = vmatpush.bf16.xpose.msra.mxu0 0
    %3244 = vmatpush.bf16.xpose.msra.mxu0 0
    %3245 = vmatpush.bf16.xpose.msra.mxu0 0
    %3246 = vmatpush.bf16.xpose.msra.mxu0 %v3237
    %3247 = vmatmul.bf16.gmra.mxu0 %v3234
    %v3248 = vpop.f32.mrf.mxu0
    %v3249 = vadd.f32 %v147, %v3248
    %v3250 = vpop.f32.mrf.mxu0
    %v3251 = vadd.f32 %v148, %v3250
    %3252 = vdwg.mxu0
    %v3255 = vunpack.c.l.b16 %v2721
    %v3256 = vunpack.c.l.b16 %v2722
    %v3257 = vpack.c.b16 %v3256, %v3255
    %v3260 = vunpack.c.l.b16 %v2969
    %v3261 = vunpack.c.l.b16 %v2970
    %v3262 = vpack.c.b16 %v3261, %v3260
    %v3264 = vsel %vm1174, %v3257, 0
    %v3267 = vsel %vm1174, %v3262, 0
    %3269 = vmatpush.bf16.xpose.msra.mxu0 0
    %3270 = vmatpush.bf16.xpose.msra.mxu0 0
    %3271 = vmatpush.bf16.xpose.msra.mxu0 0
    %3272 = vmatpush.bf16.xpose.msra.mxu0 0
    %3273 = vmatpush.bf16.xpose.msra.mxu0 0
    %3274 = vmatpush.bf16.xpose.msra.mxu0 0
    %3275 = vmatpush.bf16.xpose.msra.mxu0 0
    %3276 = vmatpush.bf16.xpose.msra.mxu0 %v3267
    %3277 = vmatmul.bf16.gmra.mxu0 %v3264
    %v3278 = vpop.f32.mrf.mxu0
    %v3279 = vadd.f32 %v147, %v3278
    %v3280 = vpop.f32.mrf.mxu0
    %v3281 = vadd.f32 %v148, %v3280
    %3282 = vdwg.mxu0
    %v3285 = vunpack.c.l.b16 %v2723
    %v3286 = vunpack.c.l.b16 %v2724
    %v3287 = vpack.c.b16 %v3286, %v3285
    %v3290 = vunpack.c.l.b16 %v2971
    %v3291 = vunpack.c.l.b16 %v2972
    %v3292 = vpack.c.b16 %v3291, %v3290
    %v3294 = vsel %vm1174, %v3287, 0
    %v3297 = vsel %vm1174, %v3292, 0
    %3299 = vmatpush.bf16.xpose.msra.mxu0 0
    %3300 = vmatpush.bf16.xpose.msra.mxu0 0
    %3301 = vmatpush.bf16.xpose.msra.mxu0 0
    %3302 = vmatpush.bf16.xpose.msra.mxu0 0
    %3303 = vmatpush.bf16.xpose.msra.mxu0 0
    %3304 = vmatpush.bf16.xpose.msra.mxu0 0
    %3305 = vmatpush.bf16.xpose.msra.mxu0 0
    %3306 = vmatpush.bf16.xpose.msra.mxu0 %v3297
    %3307 = vmatmul.bf16.gmra.mxu0 %v3294
    %v3308 = vpop.f32.mrf.mxu0
    %v3309 = vadd.f32 %v147, %v3308
    %v3310 = vpop.f32.mrf.mxu0
    %v3311 = vadd.f32 %v148, %v3310
    %3312 = vdwg.mxu0
    %v3315 = vunpack.c.l.b16 %v2725
    %v3316 = vunpack.c.l.b16 %v2726
    %v3317 = vpack.c.b16 %v3316, %v3315
    %v3320 = vunpack.c.l.b16 %v2973
    %v3321 = vunpack.c.l.b16 %v2974
    %v3322 = vpack.c.b16 %v3321, %v3320
    %v3324 = vsel %vm1174, %v3317, 0
    %v3327 = vsel %vm1174, %v3322, 0
    %3329 = vmatpush.bf16.xpose.msra.mxu0 0
    %3330 = vmatpush.bf16.xpose.msra.mxu0 0
    %3331 = vmatpush.bf16.xpose.msra.mxu0 0
    %3332 = vmatpush.bf16.xpose.msra.mxu0 0
    %3333 = vmatpush.bf16.xpose.msra.mxu0 0
    %3334 = vmatpush.bf16.xpose.msra.mxu0 0
    %3335 = vmatpush.bf16.xpose.msra.mxu0 0
    %3336 = vmatpush.bf16.xpose.msra.mxu0 %v3327
    %3337 = vmatmul.bf16.gmra.mxu0 %v3324
    %v3338 = vpop.f32.mrf.mxu0
    %v3339 = vadd.f32 %v147, %v3338
    %v3340 = vpop.f32.mrf.mxu0
    %v3341 = vadd.f32 %v148, %v3340
    %3342 = vdwg.mxu0
    %v3343 = vsel %vm1285, %v3249, -inf
    %3344 = vmax.xlane.f32.xlu0 %v3343
    %v3345 = vpop.xlane.xlu0 %3344
    %v3346 = vsel %vm1285, %v3251, -inf
    %3347 = vmax.xlane.f32.xlu0 %v3346
    %v3348 = vpop.xlane.xlu0 %3347
    %v3349 = vsel %vm1285, %v3279, -inf
    %3350 = vmax.xlane.f32.xlu0 %v3349
    %v3351 = vpop.xlane.xlu0 %3350
    %v3352 = vsel %vm1285, %v3281, -inf
    %3353 = vmax.xlane.f32.xlu0 %v3352
    %v3354 = vpop.xlane.xlu0 %3353
    %v3355 = vsel %vm1285, %v3309, -inf
    %3356 = vmax.xlane.f32.xlu0 %v3355
    %v3357 = vpop.xlane.xlu0 %3356
    %v3358 = vsel %vm1285, %v3311, -inf
    %3359 = vmax.xlane.f32.xlu0 %v3358
    %v3360 = vpop.xlane.xlu0 %3359
    %v3361 = vsel %vm1285, %v3339, -inf
    %3362 = vmax.xlane.f32.xlu0 %v3361
    %v3363 = vpop.xlane.xlu0 %3362
    %v3364 = vsel %vm1285, %v3341, -inf
    %3365 = vmax.xlane.f32.xlu0 %v3364
    %v3366 = vpop.xlane.xlu0 %3365
    %v3367 = vsub.f32 %v3249, %v3345
    %v3368 = vsub.f32 %v3251, %v3348
    %v3369 = vsub.f32 %v3279, %v3351
    %v3370 = vsub.f32 %v3281, %v3354
    %v3371 = vsub.f32 %v3309, %v3357
    %v3372 = vsub.f32 %v3311, %v3360
    %v3373 = vsub.f32 %v3339, %v3363
    %v3374 = vsub.f32 %v3341, %v3366
    %v3375 = vmul.f32 %v3367, 1.442695
    %v3376 = vpow.pop %v3375
    %v3377 = vmul.f32 %v3368, 1.442695
    %v3378 = vpow.pop %v3377
    %v3379 = vmul.f32 %v3369, 1.442695
    %v3380 = vpow.pop %v3379
    %v3381 = vmul.f32 %v3370, 1.442695
    %v3382 = vpow.pop %v3381
    %v3383 = vmul.f32 %v3371, 1.442695
    %v3384 = vpow.pop %v3383
    %v3385 = vmul.f32 %v3372, 1.442695
    %v3386 = vpow.pop %v3385
    %v3387 = vmul.f32 %v3373, 1.442695
    %v3388 = vpow.pop %v3387
    %v3389 = vmul.f32 %v3374, 1.442695
    %v3390 = vpow.pop %v3389
    %v3391 = vsel %vm1285, %v3376, 0.0
    %3392 = vadd.xlane.f32.xlu0 %v3391
    %v3393 = vpop.xlane.xlu0 %3392
    %v3394 = vsel %vm1285, %v3378, 0.0
    %3395 = vadd.xlane.f32.xlu0 %v3394
    %v3396 = vpop.xlane.xlu0 %3395
    %v3397 = vsel %vm1285, %v3380, 0.0
    %3398 = vadd.xlane.f32.xlu0 %v3397
    %v3399 = vpop.xlane.xlu0 %3398
    %v3400 = vsel %vm1285, %v3382, 0.0
    %3401 = vadd.xlane.f32.xlu0 %v3400
    %v3402 = vpop.xlane.xlu0 %3401
    %v3403 = vsel %vm1285, %v3384, 0.0
    %3404 = vadd.xlane.f32.xlu0 %v3403
    %v3405 = vpop.xlane.xlu0 %3404
    %v3406 = vsel %vm1285, %v3386, 0.0
    %3407 = vadd.xlane.f32.xlu0 %v3406
    %v3408 = vpop.xlane.xlu0 %3407
    %v3409 = vsel %vm1285, %v3388, 0.0
    %3410 = vadd.xlane.f32.xlu0 %v3409
    %v3411 = vpop.xlane.xlu0 %3410
    %v3412 = vsel %vm1285, %v3390, 0.0
    %3413 = vadd.xlane.f32.xlu0 %v3412
    %v3414 = vpop.xlane.xlu0 %3413
    %v3415 = vrcp.pop %v3393
    %v3416 = vrcp.pop %v3396
    %v3417 = vrcp.pop %v3399
    %v3418 = vrcp.pop %v3402
    %v3419 = vrcp.pop %v3405
    %v3420 = vrcp.pop %v3408
    %v3421 = vrcp.pop %v3411
    %v3422 = vrcp.pop %v3414
    %v3423 = vmul.f32 %v3376, %v3415
    %v3424 = vmul.f32 %v3378, %v3416
    %v3425 = vmul.f32 %v3380, %v3417
    %v3426 = vmul.f32 %v3382, %v3418
    %v3427 = vmul.f32 %v3384, %v3419
    %v3428 = vmul.f32 %v3386, %v3420
    %v3429 = vmul.f32 %v3388, %v3421
    %v3430 = vmul.f32 %v3390, %v3422
    %v3431 = vpack.c.bf16 %v3423, %v3423
    %v3432 = vpack.c.bf16 %v3424, %v3424
    %v3433 = vpack.c.bf16 %v3425, %v3425
    %v3434 = vpack.c.bf16 %v3426, %v3426
    %v3435 = vpack.c.bf16 %v3427, %v3427
    %v3436 = vpack.c.bf16 %v3428, %v3428
    %v3437 = vpack.c.bf16 %v3429, %v3429
    %v3438 = vpack.c.bf16 %v3430, %v3430
    %v3441 = vunpack.c.l.b16 %v3431
    %v3442 = vunpack.c.l.b16 %v3432
    %v3443 = vpack.c.b16 %v3442, %v3441
    %v3446 = vunpack.c.l.b16 %v3215
    %v3447 = vunpack.c.l.b16 %v3216
    %v3448 = vpack.c.b16 %v3447, %v3446
    %v3451 = vsel %vm1285, %v3443, 0
    %3453 = vmatpush.bf16.msra.mxu0 0
    %3454 = vmatpush.bf16.msra.mxu0 0
    %3455 = vmatpush.bf16.msra.mxu0 0
    %3456 = vmatpush.bf16.msra.mxu0 0
    %3457 = vmatpush.bf16.msra.mxu0 0
    %3458 = vmatpush.bf16.msra.mxu0 0
    %3459 = vmatpush.bf16.msra.mxu0 0
    %3460 = vmatpush.bf16.msra.mxu0 %v3448
    %3461 = vmatmul.bf16.gmra.mxu0 %v3451
    %v3462 = vpop.f32.mrf.mxu0
    %v3463 = vadd.f32 0.0, %v3462
    %v3464 = vpop.f32.mrf.mxu0
    %v3465 = vadd.f32 0.0, %v3464
    %3466 = vdwg.mxu0
    %v3469 = vunpack.c.l.b16 %v3433
    %v3470 = vunpack.c.l.b16 %v3434
    %v3471 = vpack.c.b16 %v3470, %v3469
    %v3474 = vunpack.c.l.b16 %v3217
    %v3475 = vunpack.c.l.b16 %v3218
    %v3476 = vpack.c.b16 %v3475, %v3474
    %v3479 = vsel %vm1285, %v3471, 0
    %3481 = vmatpush.bf16.msra.mxu0 0
    %3482 = vmatpush.bf16.msra.mxu0 0
    %3483 = vmatpush.bf16.msra.mxu0 0
    %3484 = vmatpush.bf16.msra.mxu0 0
    %3485 = vmatpush.bf16.msra.mxu0 0
    %3486 = vmatpush.bf16.msra.mxu0 0
    %3487 = vmatpush.bf16.msra.mxu0 0
    %3488 = vmatpush.bf16.msra.mxu0 %v3476
    %3489 = vmatmul.bf16.gmra.mxu0 %v3479
    %v3490 = vpop.f32.mrf.mxu0
    %v3491 = vadd.f32 0.0, %v3490
    %v3492 = vpop.f32.mrf.mxu0
    %v3493 = vadd.f32 0.0, %v3492
    %3494 = vdwg.mxu0
    %v3497 = vunpack.c.l.b16 %v3435
    %v3498 = vunpack.c.l.b16 %v3436
    %v3499 = vpack.c.b16 %v3498, %v3497
    %v3502 = vunpack.c.l.b16 %v3219
    %v3503 = vunpack.c.l.b16 %v3220
    %v3504 = vpack.c.b16 %v3503, %v3502
    %v3507 = vsel %vm1285, %v3499, 0
    %3509 = vmatpush.bf16.msra.mxu0 0
    %3510 = vmatpush.bf16.msra.mxu0 0
    %3511 = vmatpush.bf16.msra.mxu0 0
    %3512 = vmatpush.bf16.msra.mxu0 0
    %3513 = vmatpush.bf16.msra.mxu0 0
    %3514 = vmatpush.bf16.msra.mxu0 0
    %3515 = vmatpush.bf16.msra.mxu0 0
    %3516 = vmatpush.bf16.msra.mxu0 %v3504
    %3517 = vmatmul.bf16.gmra.mxu0 %v3507
    %v3518 = vpop.f32.mrf.mxu0
    %v3519 = vadd.f32 0.0, %v3518
    %v3520 = vpop.f32.mrf.mxu0
    %v3521 = vadd.f32 0.0, %v3520
    %3522 = vdwg.mxu0
    %v3525 = vunpack.c.l.b16 %v3437
    %v3526 = vunpack.c.l.b16 %v3438
    %v3527 = vpack.c.b16 %v3526, %v3525
    %v3530 = vunpack.c.l.b16 %v3221
    %v3531 = vunpack.c.l.b16 %v3222
    %v3532 = vpack.c.b16 %v3531, %v3530
    %v3535 = vsel %vm1285, %v3527, 0
    %3537 = vmatpush.bf16.msra.mxu0 0
    %3538 = vmatpush.bf16.msra.mxu0 0
    %3539 = vmatpush.bf16.msra.mxu0 0
    %3540 = vmatpush.bf16.msra.mxu0 0
    %3541 = vmatpush.bf16.msra.mxu0 0
    %3542 = vmatpush.bf16.msra.mxu0 0
    %3543 = vmatpush.bf16.msra.mxu0 0
    %3544 = vmatpush.bf16.msra.mxu0 %v3532
    %3545 = vmatmul.bf16.gmra.mxu0 %v3535
    %v3546 = vpop.f32.mrf.mxu0
    %v3547 = vadd.f32 0.0, %v3546
    %v3548 = vpop.f32.mrf.mxu0
    %v3549 = vadd.f32 0.0, %v3548
    %3550 = vdwg.mxu0
    %v3551 = vrot.slane %v3519, 4
    %v3552 = vsel %vm440, %v3551, %v3463
    %v3553 = vrot.slane %v3463, 4
    %v3554 = vsel %vm440, %v3519, %v3553
    %v3556 = vunpack.c.l.s4 1983009808
    %v3557 = vunpack.c.0.s8 %v3556
    %v3558 = vperm.slane %v3552, %v3557
    %v3560 = vunpack.c.l.s4 1983009808
    %v3561 = vunpack.c.0.s8 %v3560
    %v3562 = vperm.slane %v3554, %v3561
    %v3563 = vrot.slane %v3547, 4
    %v3564 = vsel %vm440, %v3563, %v3491
    %v3565 = vrot.slane %v3491, 4
    %v3566 = vsel %vm440, %v3547, %v3565
    %v3568 = vunpack.c.l.s4 1983009808
    %v3569 = vunpack.c.0.s8 %v3568
    %v3570 = vperm.slane %v3564, %v3569
    %v3572 = vunpack.c.l.s4 1983009808
    %v3573 = vunpack.c.0.s8 %v3572
    %v3574 = vperm.slane %v3566, %v3573
    %v3575 = vrot.slane %v3570, 4
    %v3576 = vsel %vm440, %v3575, %v3558
    %v3577 = vrot.slane %v3558, 4
    %v3578 = vsel %vm440, %v3570, %v3577
    %v3580 = vunpack.c.l.s4 1934713408
    %v3581 = vunpack.c.0.s8 %v3580
    %v3582 = vperm.slane %v3576, %v3581
    %v3584 = vunpack.c.l.s4 1934713408
    %v3585 = vunpack.c.0.s8 %v3584
    %v3586 = vperm.slane %v3578, %v3585
    %v3587 = vrot.slane %v3574, 4
    %v3588 = vsel %vm440, %v3587, %v3562
    %v3589 = vrot.slane %v3562, 4
    %v3590 = vsel %vm440, %v3574, %v3589
    %v3592 = vunpack.c.l.s4 1934713408
    %v3593 = vunpack.c.0.s8 %v3592
    %v3594 = vperm.slane %v3588, %v3593
    %v3596 = vunpack.c.l.s4 1934713408
    %v3597 = vunpack.c.0.s8 %v3596
    %v3598 = vperm.slane %v3590, %v3597
    %v3599 = vrot.slane %v3582, 4
    %v3600 = vsel %vm440, 0.0, %v3599
    %v3601 = vrot.slane %v3586, 4
    %v3602 = vsel %vm440, 0.0, %v3601
    %v3603 = vrot.slane %v3594, 4
    %v3604 = vsel %vm440, 0.0, %v3603
    %v3605 = vrot.slane %v3598, 4
    %v3606 = vsel %vm440, 0.0, %v3605
    %v3607 = vrot.slane %v3521, 4
    %v3608 = vsel %vm440, %v3607, %v3465
    %v3609 = vrot.slane %v3465, 4
    %v3610 = vsel %vm440, %v3521, %v3609
    %v3612 = vunpack.c.l.s4 1983009808
    %v3613 = vunpack.c.0.s8 %v3612
    %v3614 = vperm.slane %v3608, %v3613
    %v3616 = vunpack.c.l.s4 1983009808
    %v3617 = vunpack.c.0.s8 %v3616
    %v3618 = vperm.slane %v3610, %v3617
    %v3619 = vrot.slane %v3549, 4
    %v3620 = vsel %vm440, %v3619, %v3493
    %v3621 = vrot.slane %v3493, 4
    %v3622 = vsel %vm440, %v3549, %v3621
    %v3624 = vunpack.c.l.s4 1983009808
    %v3625 = vunpack.c.0.s8 %v3624
    %v3626 = vperm.slane %v3620, %v3625
    %v3628 = vunpack.c.l.s4 1983009808
    %v3629 = vunpack.c.0.s8 %v3628
    %v3630 = vperm.slane %v3622, %v3629
    %v3631 = vrot.slane %v3626, 4
    %v3632 = vsel %vm440, %v3631, %v3614
    %v3633 = vrot.slane %v3614, 4
    %v3634 = vsel %vm440, %v3626, %v3633
    %v3636 = vunpack.c.l.s4 1934713408
    %v3637 = vunpack.c.0.s8 %v3636
    %v3638 = vperm.slane %v3632, %v3637
    %v3640 = vunpack.c.l.s4 1934713408
    %v3641 = vunpack.c.0.s8 %v3640
    %v3642 = vperm.slane %v3634, %v3641
    %v3643 = vrot.slane %v3630, 4
    %v3644 = vsel %vm440, %v3643, %v3618
    %v3645 = vrot.slane %v3618, 4
    %v3646 = vsel %vm440, %v3630, %v3645
    %v3648 = vunpack.c.l.s4 1934713408
    %v3649 = vunpack.c.0.s8 %v3648
    %v3650 = vperm.slane %v3644, %v3649
    %v3652 = vunpack.c.l.s4 1934713408
    %v3653 = vunpack.c.0.s8 %v3652
    %v3654 = vperm.slane %v3646, %v3653
    %v3655 = vrot.slane %v3638, 4
    %v3656 = vsel %vm440, 0.0, %v3655
    %v3657 = vrot.slane %v3642, 4
    %v3658 = vsel %vm440, 0.0, %v3657
    %v3659 = vrot.slane %v3650, 4
    %v3660 = vsel %vm440, 0.0, %v3659
    %v3661 = vrot.slane %v3654, 4
    %v3662 = vsel %vm440, 0.0, %v3661
    %v3663 = vsel %vm440, %v3601, %v3582
    %v3665 = vunpack.c.l.s4 1983009808
    %v3666 = vunpack.c.0.s8 %v3665
    %v3667 = vperm.slane %v3663, %v3666
    %v3668 = vrot.slane %v3602, 4
    %v3669 = vsel %vm440, %v3668, %v3600
    %v3671 = vunpack.c.l.s4 1983009808
    %v3672 = vunpack.c.0.s8 %v3671
    %v3673 = vperm.slane %v3669, %v3672
    %v3674 = vsel %vm440, %v3605, %v3594
    %v3676 = vunpack.c.l.s4 1983009808
    %v3677 = vunpack.c.0.s8 %v3676
    %v3678 = vperm.slane %v3674, %v3677
    %v3679 = vrot.slane %v3606, 4
    %v3680 = vsel %vm440, %v3679, %v3604
    %v3682 = vunpack.c.l.s4 1983009808
    %v3683 = vunpack.c.0.s8 %v3682
    %v3684 = vperm.slane %v3680, %v3683
    %v3685 = vrot.slane %v3673, 4
    %v3686 = vsel %vm440, %v3685, %v3667
    %v3687 = vrot.slane %v3667, 4
    %v3688 = vsel %vm440, %v3673, %v3687
    %v3690 = vunpack.c.l.s4 1934713408
    %v3691 = vunpack.c.0.s8 %v3690
    %v3692 = vperm.slane %v3686, %v3691
    %v3694 = vunpack.c.l.s4 1934713408
    %v3695 = vunpack.c.0.s8 %v3694
    %v3696 = vperm.slane %v3688, %v3695
    %v3697 = vrot.slane %v3684, 4
    %v3698 = vsel %vm440, %v3697, %v3678
    %v3699 = vrot.slane %v3678, 4
    %v3700 = vsel %vm440, %v3684, %v3699
    %v3702 = vunpack.c.l.s4 1934713408
    %v3703 = vunpack.c.0.s8 %v3702
    %v3704 = vperm.slane %v3698, %v3703
    %v3706 = vunpack.c.l.s4 1934713408
    %v3707 = vunpack.c.0.s8 %v3706
    %v3708 = vperm.slane %v3700, %v3707
    %v3709 = vrot.slane %v3704, 4
    %v3710 = vsel %vm440, %v3709, %v3692
    %v3711 = vrot.slane %v3692, 4
    %v3712 = vsel %vm440, %v3704, %v3711
    %v3713 = vrot.slane %v3708, 4
    %v3714 = vsel %vm440, %v3713, %v3696
    %v3715 = vrot.slane %v3696, 4
    %v3716 = vsel %vm440, %v3708, %v3715
    %v3717 = vsel %vm440, %v3657, %v3638
    %v3719 = vunpack.c.l.s4 1983009808
    %v3720 = vunpack.c.0.s8 %v3719
    %v3721 = vperm.slane %v3717, %v3720
    %v3722 = vrot.slane %v3658, 4
    %v3723 = vsel %vm440, %v3722, %v3656
    %v3725 = vunpack.c.l.s4 1983009808
    %v3726 = vunpack.c.0.s8 %v3725
    %v3727 = vperm.slane %v3723, %v3726
    %v3728 = vsel %vm440, %v3661, %v3650
    %v3730 = vunpack.c.l.s4 1983009808
    %v3731 = vunpack.c.0.s8 %v3730
    %v3732 = vperm.slane %v3728, %v3731
    %v3733 = vrot.slane %v3662, 4
    %v3734 = vsel %vm440, %v3733, %v3660
    %v3736 = vunpack.c.l.s4 1983009808
    %v3737 = vunpack.c.0.s8 %v3736
    %v3738 = vperm.slane %v3734, %v3737
    %v3739 = vrot.slane %v3727, 4
    %v3740 = vsel %vm440, %v3739, %v3721
    %v3741 = vrot.slane %v3721, 4
    %v3742 = vsel %vm440, %v3727, %v3741
    %v3744 = vunpack.c.l.s4 1934713408
    %v3745 = vunpack.c.0.s8 %v3744
    %v3746 = vperm.slane %v3740, %v3745
    %v3748 = vunpack.c.l.s4 1934713408
    %v3749 = vunpack.c.0.s8 %v3748
    %v3750 = vperm.slane %v3742, %v3749
    %v3751 = vrot.slane %v3738, 4
    %v3752 = vsel %vm440, %v3751, %v3732
    %v3753 = vrot.slane %v3732, 4
    %v3754 = vsel %vm440, %v3738, %v3753
    %v3756 = vunpack.c.l.s4 1934713408
    %v3757 = vunpack.c.0.s8 %v3756
    %v3758 = vperm.slane %v3752, %v3757
    %v3760 = vunpack.c.l.s4 1934713408
    %v3761 = vunpack.c.0.s8 %v3760
    %v3762 = vperm.slane %v3754, %v3761
    %v3763 = vrot.slane %v3758, 4
    %v3764 = vsel %vm440, %v3763, %v3746
    %v3765 = vrot.slane %v3746, 4
    %v3766 = vsel %vm440, %v3758, %v3765
    %v3767 = vrot.slane %v3762, 4
    %v3768 = vsel %vm440, %v3767, %v3750
    %v3769 = vrot.slane %v3750, 4
    %v3770 = vsel %vm440, %v3762, %v3769
    %3773 = vrot.lane.b32.xlu0 %v3712, 32
    %v3774 = vpop.permute.xlu0 %3773
    %3775 = vrot.lane.b32.xlu0 %v3766, 32
    %v3776 = vpop.permute.xlu0 %3775
    %3781 = vrot.lane.b32.xlu0 %v3714, 64
    %v3782 = vpop.permute.xlu0 %3781
    %3783 = vrot.lane.b32.xlu0 %v3768, 64
    %v3784 = vpop.permute.xlu0 %3783
    %3789 = vrot.lane.b32.xlu0 %v3716, 96
    %v3790 = vpop.permute.xlu0 %3789
    %3791 = vrot.lane.b32.xlu0 %v3770, 96
    %v3792 = vpop.permute.xlu0 %3791
    %v3795 = vsel %vm1174, %v3710, %v3774
    %v3796 = vsel %vm1174, %v3764, %v3776
    %v3797 = vsel %vm1740, %v3795, %v3782
    %v3798 = vsel %vm1740, %v3796, %v3784
    %v3799 = vsel %vm1743, %v3797, %v3790
    %v3800 = vsel %vm1743, %v3798, %v3792
    %s3801 = scalar_lea.vmem %s6, 64
    %v3802 = vld [vmem:[%s3801] sm:$0xf]
    %v3803 = vld [vmem:[%s3801 + $0x4] sm:$0xf]
    %v3804 = vld [vmem:[%s3801 + $0x8] sm:$0xf]
    %v3805 = vld [vmem:[%s3801 + $0xc] sm:$0xf]
    %v3806 = vld [vmem:[%s3801 + $0x10] sm:$0xf]
    %v3807 = vld [vmem:[%s3801 + $0x14] sm:$0xf]
    %v3808 = vld [vmem:[%s3801 + $0x18] sm:$0xf]
    %v3809 = vld [vmem:[%s3801 + $0x1c] sm:$0xf]
    %v3810 = vld [vmem:[%s3801 + $0x20] sm:$0xf]
    %v3811 = vld [vmem:[%s3801 + $0x24] sm:$0xf]
    %v3812 = vld [vmem:[%s3801 + $0x28] sm:$0xf]
    %v3813 = vld [vmem:[%s3801 + $0x2c] sm:$0xf]
    %v3814 = vld [vmem:[%s3801 + $0x30] sm:$0xf]
    %v3815 = vld [vmem:[%s3801 + $0x34] sm:$0xf]
    %v3816 = vld [vmem:[%s3801 + $0x38] sm:$0xf]
    %v3817 = vld [vmem:[%s3801 + $0x3c] sm:$0xf]
    %v3818 = vpack.c.bf16 %v3800, %v3799
    %s3819 = scalar_lea.vmem %s7, 1
    %v3820 = vld [vmem:[%s3819] sm:$0x1]
    %v3822 = vperm.slane %v3820, 0
    %v3840 = vunpack.c.l.b16 %v3802
    %v3841 = vunpack.c.l.b16 %v3803
    %v3842 = vunpack.c.l.b16 %v3804
    %v3843 = vunpack.c.l.b16 %v3805
    %v3844 = vunpack.c.l.b16 %v3806
    %v3845 = vunpack.c.l.b16 %v3807
    %v3846 = vunpack.c.l.b16 %v3808
    %v3847 = vunpack.c.l.b16 %v3809
    %v3848 = vunpack.c.l.b16 %v3810
    %v3849 = vunpack.c.l.b16 %v3811
    %v3850 = vunpack.c.l.b16 %v3812
    %v3851 = vunpack.c.l.b16 %v3813
    %v3852 = vunpack.c.l.b16 %v3814
    %v3853 = vunpack.c.l.b16 %v3815
    %v3854 = vunpack.c.l.b16 %v3816
    %v3855 = vunpack.c.l.b16 %v3817
    %v3856 = vpack.c.b16 %v3841, %v3840
    %v3857 = vpack.c.b16 %v3843, %v3842
    %v3858 = vpack.c.b16 %v3845, %v3844
    %v3859 = vpack.c.b16 %v3847, %v3846
    %v3860 = vpack.c.b16 %v3849, %v3848
    %v3861 = vpack.c.b16 %v3851, %v3850
    %v3862 = vpack.c.b16 %v3853, %v3852
    %v3863 = vpack.c.b16 %v3855, %v3854
    %3872 = vmatpush.bf16.msra.mxu0 %v3863
    %3873 = vmatpush.bf16.msra.mxu0 %v3862
    %3874 = vmatpush.bf16.msra.mxu0 %v3861
    %3875 = vmatpush.bf16.msra.mxu0 %v3860
    %3876 = vmatpush.bf16.msra.mxu0 %v3859
    %3877 = vmatpush.bf16.msra.mxu0 %v3858
    %3878 = vmatpush.bf16.msra.mxu0 %v3857
    %3879 = vmatpush.bf16.msra.mxu0 %v3856
    %3880 = vmatmul.bf16.gmra.mxu0 %v3818
    %v3881 = vpop.f32.mrf.mxu0
    %v3882 = vadd.f32 %v3822, %v3881
    %v3883 = vpop.f32.mrf.mxu0
    %v3884 = vadd.f32 %v3822, %v3883
    %3885 = vdwg.mxu0
    %v3886 = vadd.f32 %v3882, %v2264
    %v3887 = vadd.f32 %v3884, %v2265
    %s3888 = scalar_lea.vmem %s8, 1
    %v3889 = vld [vmem:[%s3888] sm:$0x1]
    %s3890 = scalar_lea.vmem %s9, 1
    %v3891 = vld [vmem:[%s3890] sm:$0x1]
    %3892 = vadd.xlane.f32.xlu0 %v3886
    %v3893 = vpop.xlane.xlu0 %3892
    %3894 = vadd.xlane.f32.xlu0 %v3887
    %v3895 = vpop.xlane.xlu0 %3894
    %v3896 = vmul.f32 %v3893, %v161
    %v3897 = vmul.f32 %v3895, %v161
    %v3898 = vsub.f32 %v3886, %v3896
    %v3899 = vsub.f32 %v3887, %v3897
    %v3900 = vmul.f32 %v3898, %v3898
    %v3901 = vmul.f32 %v3899, %v3899
    %3902 = vadd.xlane.f32.xlu0 %v3900
    %v3903 = vpop.xlane.xlu0 %3902
    %3904 = vadd.xlane.f32.xlu0 %v3901
    %v3905 = vpop.xlane.xlu0 %3904
    %v3906 = vmul.f32 %v3903, %v161
    %v3907 = vmul.f32 %v3905, %v161
    %v3908 = vadd.f32 %v3906, 1e-12
    %v3909 = vadd.f32 %v3907, 1e-12
    %v3910 = vrsqrt.pop %v3908
    %v3911 = vmul.f32 %v3910, %v3908
    %v3912 = vmul.f32 %v3911, %v3910
    %v3913 = vmul.f32 0.5, %v3912
    %v3914 = vsub.f32 1.5, %v3913
    %v3915 = vmul.f32 %v3910, %v3914
    %vm3916 = vweird.f32 %v3908
    %vm3917 = vweird.f32 %v3910
    %vm3918 = vmor %vm3916, %vm3917
    %v3919 = vsel %vm3918, %v3910, %v3915
    %v3920 = vrsqrt.pop %v3909
    %v3921 = vmul.f32 %v3920, %v3909
    %v3922 = vmul.f32 %v3921, %v3920
    %v3923 = vmul.f32 0.5, %v3922
    %v3924 = vsub.f32 1.5, %v3923
    %v3925 = vmul.f32 %v3920, %v3924
    %vm3926 = vweird.f32 %v3909
    %vm3927 = vweird.f32 %v3920
    %vm3928 = vmor %vm3926, %vm3927
    %v3929 = vsel %vm3928, %v3920, %v3925
    %v3930 = vmul.f32 %v3898, %v3919
    %v3931 = vmul.f32 %v3899, %v3929
    %v3933 = vperm.slane %v3889, 0
    %v3935 = vmul.f32 %v3930, %v3933
    %v3936 = vmul.f32 %v3931, %v3933
    %v3938 = vperm.slane %v3891, 0
    %v3940 = vadd.f32 %v3935, %v3938
    %v3941 = vadd.f32 %v3936, %v3938
    %s3942 = scalar_lea.vmem [#allocation5], 128
    %v3943 = vld [vmem:[%s3942] sm:$0xff]
    %v3944 = vld [vmem:[%s3942 + $0x8] sm:$0xff]
    %v3945 = vld [vmem:[%s3942 + $0x10] sm:$0xff]
    %v3946 = vld [vmem:[%s3942 + $0x18] sm:$0xff]
    %v3947 = vld [vmem:[%s3942 + $0x20] sm:$0xff]
    %v3948 = vld [vmem:[%s3942 + $0x28] sm:$0xff]
    %v3949 = vld [vmem:[%s3942 + $0x30] sm:$0xff]
    %v3950 = vld [vmem:[%s3942 + $0x38] sm:$0xff]
    %v3951 = vld [vmem:[%s3942 + $0x40] sm:$0xff]
    %v3952 = vld [vmem:[%s3942 + $0x48] sm:$0xff]
    %v3953 = vld [vmem:[%s3942 + $0x50] sm:$0xff]
    %v3954 = vld [vmem:[%s3942 + $0x58] sm:$0xff]
    %v3955 = vld [vmem:[%s3942 + $0x60] sm:$0xff]
    %v3956 = vld [vmem:[%s3942 + $0x68] sm:$0xff]
    %v3957 = vld [vmem:[%s3942 + $0x70] sm:$0xff]
    %v3958 = vld [vmem:[%s3942 + $0x78] sm:$0xff]
    %v3959 = vpack.c.bf16 %v3941, %v3940
    %s3960 = scalar_lea.vmem %s11, 2
    %v3961 = vld [vmem:[%s3960] sm:$0x3]
    %v3963 = vperm.slane %v3961, 0
    %v3964 = vperm.slane %v3961, 1
    %v3983 = vunpack.c.l.b16 %v3943
    %v3984 = vunpack.c.h.b16 %v3943
    %v3985 = vunpack.c.l.b16 %v3944
    %v3986 = vunpack.c.h.b16 %v3944
    %v3987 = vunpack.c.l.b16 %v3945
    %v3988 = vunpack.c.h.b16 %v3945
    %v3989 = vunpack.c.l.b16 %v3946
    %v3990 = vunpack.c.h.b16 %v3946
    %v3991 = vunpack.c.l.b16 %v3947
    %v3992 = vunpack.c.h.b16 %v3947
    %v3993 = vunpack.c.l.b16 %v3948
    %v3994 = vunpack.c.h.b16 %v3948
    %v3995 = vunpack.c.l.b16 %v3949
    %v3996 = vunpack.c.h.b16 %v3949
    %v3997 = vunpack.c.l.b16 %v3950
    %v3998 = vunpack.c.h.b16 %v3950
    %v3999 = vunpack.c.l.b16 %v3951
    %v4000 = vunpack.c.h.b16 %v3951
    %v4001 = vunpack.c.l.b16 %v3952
    %v4002 = vunpack.c.h.b16 %v3952
    %v4003 = vunpack.c.l.b16 %v3953
    %v4004 = vunpack.c.h.b16 %v3953
    %v4005 = vunpack.c.l.b16 %v3954
    %v4006 = vunpack.c.h.b16 %v3954
    %v4007 = vunpack.c.l.b16 %v3955
    %v4008 = vunpack.c.h.b16 %v3955
    %v4009 = vunpack.c.l.b16 %v3956
    %v4010 = vunpack.c.h.b16 %v3956
    %v4011 = vunpack.c.l.b16 %v3957
    %v4012 = vunpack.c.h.b16 %v3957
    %v4013 = vunpack.c.l.b16 %v3958
    %v4014 = vunpack.c.h.b16 %v3958
    %v4015 = vpack.c.b16 %v3985, %v3983
    %v4016 = vpack.c.b16 %v3986, %v3984
    %v4017 = vpack.c.b16 %v3989, %v3987
    %v4018 = vpack.c.b16 %v3990, %v3988
    %v4019 = vpack.c.b16 %v3993, %v3991
    %v4020 = vpack.c.b16 %v3994, %v3992
    %v4021 = vpack.c.b16 %v3997, %v3995
    %v4022 = vpack.c.b16 %v3998, %v3996
    %v4023 = vpack.c.b16 %v4001, %v3999
    %v4024 = vpack.c.b16 %v4002, %v4000
    %v4025 = vpack.c.b16 %v4005, %v4003
    %v4026 = vpack.c.b16 %v4006, %v4004
    %v4027 = vpack.c.b16 %v4009, %v4007
    %v4028 = vpack.c.b16 %v4010, %v4008
    %v4029 = vpack.c.b16 %v4013, %v4011
    %v4030 = vpack.c.b16 %v4014, %v4012
    %4047 = vmatpush.bf16.msra.mxu0 %v4029
    %4048 = vmatpush.bf16.msra.mxu0 %v4027
    %4049 = vmatpush.bf16.msra.mxu0 %v4025
    %4050 = vmatpush.bf16.msra.mxu0 %v4023
    %4051 = vmatpush.bf16.msra.mxu0 %v4021
    %4052 = vmatpush.bf16.msra.mxu0 %v4019
    %4053 = vmatpush.bf16.msra.mxu0 %v4017
    %4054 = vmatpush.bf16.msra.mxu0 %v4015
    %4055 = vmatmul.bf16.gmra.mxu0 %v3959
    %v4056 = vpop.f32.mrf.mxu0
    %v4057 = vadd.f32 %v3963, %v4056
    %v4058 = vpop.f32.mrf.mxu0
    %v4059 = vadd.f32 %v3963, %v4058
    %4060 = vdwg.mxu0
    %4061 = vmatpush.bf16.msra.mxu0 %v4030
    %4062 = vmatpush.bf16.msra.mxu0 %v4028
    %4063 = vmatpush.bf16.msra.mxu0 %v4026
    %4064 = vmatpush.bf16.msra.mxu0 %v4024
    %4065 = vmatpush.bf16.msra.mxu0 %v4022
    %4066 = vmatpush.bf16.msra.mxu0 %v4020
    %4067 = vmatpush.bf16.msra.mxu0 %v4018
    %4068 = vmatpush.bf16.msra.mxu0 %v4016
    %4069 = vmatmul.bf16.gmra.mxu0 %v3959
    %v4070 = vpop.f32.mrf.mxu0
    %v4071 = vadd.f32 %v3964, %v4070
    %v4072 = vpop.f32.mrf.mxu0
    %v4073 = vadd.f32 %v3964, %v4072
    %4074 = vdwg.mxu0
    %v4075 = vmul.f32 %v4057, 0.5
    %v4076 = vmul.f32 %v4071, 0.5
    %v4077 = vmul.f32 %v4059, 0.5
    %v4078 = vmul.f32 %v4073, 0.5
    %v4079 = vmul.f32 %v4057, 0.044715
    %v4080 = vmul.f32 %v4071, 0.044715
    %v4081 = vmul.f32 %v4059, 0.044715
    %v4082 = vmul.f32 %v4073, 0.044715
    %v4083 = vmul.f32 %v4079, %v4057
    %v4084 = vmul.f32 %v4080, %v4071
    %v4085 = vmul.f32 %v4081, %v4059
    %v4086 = vmul.f32 %v4082, %v4073
    %v4087 = vmul.f32 %v4083, %v4057
    %v4088 = vmul.f32 %v4084, %v4071
    %v4089 = vmul.f32 %v4085, %v4059
    %v4090 = vmul.f32 %v4086, %v4073
    %v4091 = vadd.f32 %v4057, %v4087
    %v4092 = vadd.f32 %v4071, %v4088
    %v4093 = vadd.f32 %v4059, %v4089
    %v4094 = vadd.f32 %v4073, %v4090
    %v4095 = vmul.f32 %v4091, 0.7978846
    %v4096 = vmul.f32 %v4092, 0.7978846
    %v4097 = vmul.f32 %v4093, 0.7978846
    %v4098 = vmul.f32 %v4094, 0.7978846
    %v4099 = vtanh.pop %v4095
    %v4100 = vtanh.pop %v4096
    %v4101 = vtanh.pop %v4097
    %v4102 = vtanh.pop %v4098
    %v4103 = vadd.f32 %v4099, 1.0
    %v4104 = vadd.f32 %v4100, 1.0
    %v4105 = vadd.f32 %v4101, 1.0
    %v4106 = vadd.f32 %v4102, 1.0
    %v4107 = vmul.f32 %v4075, %v4103
    %v4108 = vmul.f32 %v4076, %v4104
    %v4109 = vmul.f32 %v4077, %v4105
    %v4110 = vmul.f32 %v4078, %v4106
    %s4111 = scalar_lea.vmem [#allocation7], 128
    %v4112 = vld [vmem:[%s4111] sm:$0xf]
    %v4113 = vld [vmem:[%s4111 + $0x4] sm:$0xf]
    %v4114 = vld [vmem:[%s4111 + $0x8] sm:$0xf]
    %v4115 = vld [vmem:[%s4111 + $0xc] sm:$0xf]
    %v4116 = vld [vmem:[%s4111 + $0x10] sm:$0xf]
    %v4117 = vld [vmem:[%s4111 + $0x14] sm:$0xf]
    %v4118 = vld [vmem:[%s4111 + $0x18] sm:$0xf]
    %v4119 = vld [vmem:[%s4111 + $0x1c] sm:$0xf]
    %v4120 = vld [vmem:[%s4111 + $0x20] sm:$0xf]
    %v4121 = vld [vmem:[%s4111 + $0x24] sm:$0xf]
    %v4122 = vld [vmem:[%s4111 + $0x28] sm:$0xf]
    %v4123 = vld [vmem:[%s4111 + $0x2c] sm:$0xf]
    %v4124 = vld [vmem:[%s4111 + $0x30] sm:$0xf]
    %v4125 = vld [vmem:[%s4111 + $0x34] sm:$0xf]
    %v4126 = vld [vmem:[%s4111 + $0x38] sm:$0xf]
    %v4127 = vld [vmem:[%s4111 + $0x3c] sm:$0xf]
    %v4128 = vld [vmem:[%s4111 + $0x40] sm:$0xf]
    %v4129 = vld [vmem:[%s4111 + $0x44] sm:$0xf]
    %v4130 = vld [vmem:[%s4111 + $0x48] sm:$0xf]
    %v4131 = vld [vmem:[%s4111 + $0x4c] sm:$0xf]
    %v4132 = vld [vmem:[%s4111 + $0x50] sm:$0xf]
    %v4133 = vld [vmem:[%s4111 + $0x54] sm:$0xf]
    %v4134 = vld [vmem:[%s4111 + $0x58] sm:$0xf]
    %v4135 = vld [vmem:[%s4111 + $0x5c] sm:$0xf]
    %v4136 = vld [vmem:[%s4111 + $0x60] sm:$0xf]
    %v4137 = vld [vmem:[%s4111 + $0x64] sm:$0xf]
    %v4138 = vld [vmem:[%s4111 + $0x68] sm:$0xf]
    %v4139 = vld [vmem:[%s4111 + $0x6c] sm:$0xf]
    %v4140 = vld [vmem:[%s4111 + $0x70] sm:$0xf]
    %v4141 = vld [vmem:[%s4111 + $0x74] sm:$0xf]
    %v4142 = vld [vmem:[%s4111 + $0x78] sm:$0xf]
    %v4143 = vld [vmem:[%s4111 + $0x7c] sm:$0xf]
    %v4144 = vpack.c.bf16 %v4109, %v4107
    %v4145 = vpack.c.bf16 %v4110, %v4108
    %s4146 = scalar_lea.vmem %s13, 1
    %v4147 = vld [vmem:[%s4146] sm:$0x1]
    %v4149 = vperm.slane %v4147, 0
    %v4183 = vunpack.c.l.b16 %v4112
    %v4184 = vunpack.c.l.b16 %v4113
    %v4185 = vunpack.c.l.b16 %v4114
    %v4186 = vunpack.c.l.b16 %v4115
    %v4187 = vunpack.c.l.b16 %v4116
    %v4188 = vunpack.c.l.b16 %v4117
    %v4189 = vunpack.c.l.b16 %v4118
    %v4190 = vunpack.c.l.b16 %v4119
    %v4191 = vunpack.c.l.b16 %v4120
    %v4192 = vunpack.c.l.b16 %v4121
    %v4193 = vunpack.c.l.b16 %v4122
    %v4194 = vunpack.c.l.b16 %v4123
    %v4195 = vunpack.c.l.b16 %v4124
    %v4196 = vunpack.c.l.b16 %v4125
    %v4197 = vunpack.c.l.b16 %v4126
    %v4198 = vunpack.c.l.b16 %v4127
    %v4199 = vunpack.c.l.b16 %v4128
    %v4200 = vunpack.c.l.b16 %v4129
    %v4201 = vunpack.c.l.b16 %v4130
    %v4202 = vunpack.c.l.b16 %v4131
    %v4203 = vunpack.c.l.b16 %v4132
    %v4204 = vunpack.c.l.b16 %v4133
    %v4205 = vunpack.c.l.b16 %v4134
    %v4206 = vunpack.c.l.b16 %v4135
    %v4207 = vunpack.c.l.b16 %v4136
    %v4208 = vunpack.c.l.b16 %v4137
    %v4209 = vunpack.c.l.b16 %v4138
    %v4210 = vunpack.c.l.b16 %v4139
    %v4211 = vunpack.c.l.b16 %v4140
    %v4212 = vunpack.c.l.b16 %v4141
    %v4213 = vunpack.c.l.b16 %v4142
    %v4214 = vunpack.c.l.b16 %v4143
    %v4215 = vpack.c.b16 %v4184, %v4183
    %v4216 = vpack.c.b16 %v4186, %v4185
    %v4217 = vpack.c.b16 %v4188, %v4187
    %v4218 = vpack.c.b16 %v4190, %v4189
    %v4219 = vpack.c.b16 %v4192, %v4191
    %v4220 = vpack.c.b16 %v4194, %v4193
    %v4221 = vpack.c.b16 %v4196, %v4195
    %v4222 = vpack.c.b16 %v4198, %v4197
    %v4223 = vpack.c.b16 %v4200, %v4199
    %v4224 = vpack.c.b16 %v4202, %v4201
    %v4225 = vpack.c.b16 %v4204, %v4203
    %v4226 = vpack.c.b16 %v4206, %v4205
    %v4227 = vpack.c.b16 %v4208, %v4207
    %v4228 = vpack.c.b16 %v4210, %v4209
    %v4229 = vpack.c.b16 %v4212, %v4211
    %v4230 = vpack.c.b16 %v4214, %v4213
    %4247 = vmatpush.bf16.msra.mxu0 %v4222
    %4248 = vmatpush.bf16.msra.mxu0 %v4221
    %4249 = vmatpush.bf16.msra.mxu0 %v4220
    %4250 = vmatpush.bf16.msra.mxu0 %v4219
    %4251 = vmatpush.bf16.msra.mxu0 %v4218
    %4252 = vmatpush.bf16.msra.mxu0 %v4217
    %4253 = vmatpush.bf16.msra.mxu0 %v4216
    %4254 = vmatpush.bf16.msra.mxu0 %v4215
    %4255 = vmatmul.bf16.gmra.mxu0 %v4144
    %v4256 = vpop.f32.mrf.mxu0
    %v4257 = vadd.f32 %v4149, %v4256
    %v4258 = vpop.f32.mrf.mxu0
    %v4259 = vadd.f32 %v4149, %v4258
    %4260 = vdwg.mxu0
    %4261 = vmatpush.bf16.msra.mxu0 %v4230
    %4262 = vmatpush.bf16.msra.mxu0 %v4229
    %4263 = vmatpush.bf16.msra.mxu0 %v4228
    %4264 = vmatpush.bf16.msra.mxu0 %v4227
    %4265 = vmatpush.bf16.msra.mxu0 %v4226
    %4266 = vmatpush.bf16.msra.mxu0 %v4225
    %4267 = vmatpush.bf16.msra.mxu0 %v4224
    %4268 = vmatpush.bf16.msra.mxu0 %v4223
    %4269 = vmatmul.bf16.gmra.mxu0 %v4145
    %v4270 = vpop.f32.mrf.mxu0
    %v4271 = vadd.f32 %v4257, %v4270
    %v4272 = vpop.f32.mrf.mxu0
    %v4273 = vadd.f32 %v4259, %v4272
    %4274 = vdwg.mxu0
    %v4275 = vadd.f32 %v4271, %v3940
    %v4276 = vadd.f32 %v4273, %v3941
    %s4277 = scalar_lea.vmem %s14, 1
    %v4278 = vld [vmem:[%s4277] sm:$0x1]
    %s4279 = scalar_lea.vmem %s15, 1
    %v4280 = vld [vmem:[%s4279] sm:$0x1]
    %4281 = vadd.xlane.f32.xlu0 %v4275
    %v4282 = vpop.xlane.xlu0 %4281
    %4283 = vadd.xlane.f32.xlu0 %v4276
    %v4284 = vpop.xlane.xlu0 %4283
    %v4285 = vmul.f32 %v4282, %v161
    %v4286 = vmul.f32 %v4284, %v161
    %v4287 = vsub.f32 %v4275, %v4285
    %v4288 = vsub.f32 %v4276, %v4286
    %v4289 = vmul.f32 %v4287, %v4287
    %v4290 = vmul.f32 %v4288, %v4288
    %4291 = vadd.xlane.f32.xlu0 %v4289
    %v4292 = vpop.xlane.xlu0 %4291
    %4293 = vadd.xlane.f32.xlu0 %v4290
    %v4294 = vpop.xlane.xlu0 %4293
    %v4295 = vmul.f32 %v4292, %v161
    %v4296 = vmul.f32 %v4294, %v161
    %v4297 = vadd.f32 %v4295, 1e-12
    %v4298 = vadd.f32 %v4296, 1e-12
    %v4299 = vrsqrt.pop %v4297
    %v4300 = vmul.f32 %v4299, %v4297
    %v4301 = vmul.f32 %v4300, %v4299
    %v4302 = vmul.f32 0.5, %v4301
    %v4303 = vsub.f32 1.5, %v4302
    %v4304 = vmul.f32 %v4299, %v4303
    %vm4305 = vweird.f32 %v4297
    %vm4306 = vweird.f32 %v4299
    %vm4307 = vmor %vm4305, %vm4306
    %v4308 = vsel %vm4307, %v4299, %v4304
    %v4309 = vrsqrt.pop %v4298
    %v4310 = vmul.f32 %v4309, %v4298
    %v4311 = vmul.f32 %v4310, %v4309
    %v4312 = vmul.f32 0.5, %v4311
    %v4313 = vsub.f32 1.5, %v4312
    %v4314 = vmul.f32 %v4309, %v4313
    %vm4315 = vweird.f32 %v4298
    %vm4316 = vweird.f32 %v4309
    %vm4317 = vmor %vm4315, %vm4316
    %v4318 = vsel %vm4317, %v4309, %v4314
    %v4319 = vmul.f32 %v4287, %v4308
    %v4320 = vmul.f32 %v4288, %v4318
    %v4322 = vperm.slane %v4278, 0
    %v4324 = vmul.f32 %v4319, %v4322
    %v4325 = vmul.f32 %v4320, %v4322
    %v4327 = vperm.slane %v4280, 0
    %v4329 = vadd.f32 %v4324, %v4327
    %v4330 = vadd.f32 %v4325, %v4327
    %v4331 = vld [vmem:[#allocation8] sm:$0xff]
    %v4332 = vld [vmem:[#allocation8 + $0x8] sm:$0xff]
    %v4333 = vld [vmem:[#allocation8 + $0x10] sm:$0xff]
    %v4334 = vld [vmem:[#allocation8 + $0x18] sm:$0xff]
    %v4335 = vld [vmem:[#allocation8 + $0x20] sm:$0xff]
    %v4336 = vld [vmem:[#allocation8 + $0x28] sm:$0xff]
    %v4337 = vld [vmem:[#allocation8 + $0x30] sm:$0xff]
    %v4338 = vld [vmem:[#allocation8 + $0x38] sm:$0xff]
    %v4339 = vld [vmem:[#allocation8 + $0x40] sm:$0xff]
    %v4340 = vld [vmem:[#allocation8 + $0x48] sm:$0xff]
    %v4341 = vld [vmem:[#allocation8 + $0x50] sm:$0xff]
    %v4342 = vld [vmem:[#allocation8 + $0x58] sm:$0xff]
    %v4343 = vld [vmem:[#allocation8 + $0x60] sm:$0xff]
    %v4344 = vld [vmem:[#allocation8 + $0x68] sm:$0xff]
    %v4345 = vld [vmem:[#allocation8 + $0x70] sm:$0xff]
    %v4346 = vld [vmem:[#allocation8 + $0x78] sm:$0xff]
    %v4347 = vpack.c.bf16 %v4329, %v4329
    %v4348 = vpack.c.bf16 %v4330, %v4330
    %v4349 = vld [vmem:[%s17] sm:$0x3]
    %v4351 = vperm.slane %v4349, 0
    %v4352 = vperm.slane %v4349, 1
    %v4357 = vunpack.c.l.b16 %v4347
    %v4358 = vunpack.c.l.b16 %v4348
    %v4359 = vrot.slane %v4358, 7
    %vm4360 = vcmask 1041409
    %v4361 = vsel %vm4360, %v4359, %v4357
    %v4362 = vpack.c.b16 %v4361, %v4361
    %v4380 = vunpack.c.l.b16 %v4331
    %v4381 = vunpack.c.h.b16 %v4331
    %v4382 = vunpack.c.l.b16 %v4332
    %v4383 = vunpack.c.h.b16 %v4332
    %v4384 = vunpack.c.l.b16 %v4333
    %v4385 = vunpack.c.h.b16 %v4333
    %v4386 = vunpack.c.l.b16 %v4334
    %v4387 = vunpack.c.h.b16 %v4334
    %v4388 = vunpack.c.l.b16 %v4335
    %v4389 = vunpack.c.h.b16 %v4335
    %v4390 = vunpack.c.l.b16 %v4336
    %v4391 = vunpack.c.h.b16 %v4336
    %v4392 = vunpack.c.l.b16 %v4337
    %v4393 = vunpack.c.h.b16 %v4337
    %v4394 = vunpack.c.l.b16 %v4338
    %v4395 = vunpack.c.h.b16 %v4338
    %v4396 = vunpack.c.l.b16 %v4339
    %v4397 = vunpack.c.h.b16 %v4339
    %v4398 = vunpack.c.l.b16 %v4340
    %v4399 = vunpack.c.h.b16 %v4340
    %v4400 = vunpack.c.l.b16 %v4341
    %v4401 = vunpack.c.h.b16 %v4341
    %v4402 = vunpack.c.l.b16 %v4342
    %v4403 = vunpack.c.h.b16 %v4342
    %v4404 = vunpack.c.l.b16 %v4343
    %v4405 = vunpack.c.h.b16 %v4343
    %v4406 = vunpack.c.l.b16 %v4344
    %v4407 = vunpack.c.h.b16 %v4344
    %v4408 = vunpack.c.l.b16 %v4345
    %v4409 = vunpack.c.h.b16 %v4345
    %v4410 = vunpack.c.l.b16 %v4346
    %v4411 = vunpack.c.h.b16 %v4346
    %v4412 = vpack.c.b16 %v4382, %v4380
    %v4413 = vpack.c.b16 %v4383, %v4381
    %v4414 = vpack.c.b16 %v4386, %v4384
    %v4415 = vpack.c.b16 %v4387, %v4385
    %v4416 = vpack.c.b16 %v4390, %v4388
    %v4417 = vpack.c.b16 %v4391, %v4389
    %v4418 = vpack.c.b16 %v4394, %v4392
    %v4419 = vpack.c.b16 %v4395, %v4393
    %v4420 = vpack.c.b16 %v4398, %v4396
    %v4421 = vpack.c.b16 %v4399, %v4397
    %v4422 = vpack.c.b16 %v4402, %v4400
    %v4423 = vpack.c.b16 %v4403, %v4401
    %v4424 = vpack.c.b16 %v4406, %v4404
    %v4425 = vpack.c.b16 %v4407, %v4405
    %v4426 = vpack.c.b16 %v4410, %v4408
    %v4427 = vpack.c.b16 %v4411, %v4409
    %4444 = vmatpush.bf16.msra.mxu0 %v4426
    %4445 = vmatpush.bf16.msra.mxu0 %v4424
    %4446 = vmatpush.bf16.msra.mxu0 %v4422
    %4447 = vmatpush.bf16.msra.mxu0 %v4420
    %4448 = vmatpush.bf16.msra.mxu0 %v4418
    %4449 = vmatpush.bf16.msra.mxu0 %v4416
    %4450 = vmatpush.bf16.msra.mxu0 %v4414
    %4451 = vmatpush.bf16.msra.mxu0 %v4412
    %4452 = vmatmul.bf16.gmra.mxu0 %v4362
    %v4453 = vpop.f32.mrf.mxu0
    %v4454 = vadd.f32 %v4351, %v4453
    %v4455 = vpop.f32.mrf.mxu0
    %4456 = vdwg.mxu0
    %4457 = vmatpush.bf16.msra.mxu0 %v4427
    %4458 = vmatpush.bf16.msra.mxu0 %v4425
    %4459 = vmatpush.bf16.msra.mxu0 %v4423
    %4460 = vmatpush.bf16.msra.mxu0 %v4421
    %4461 = vmatpush.bf16.msra.mxu0 %v4419
    %4462 = vmatpush.bf16.msra.mxu0 %v4417
    %4463 = vmatpush.bf16.msra.mxu0 %v4415
    %4464 = vmatpush.bf16.msra.mxu0 %v4413
    %4465 = vmatmul.bf16.gmra.mxu0 %v4362
    %v4466 = vpop.f32.mrf.mxu0
    %v4467 = vadd.f32 %v4352, %v4466
    %v4468 = vpop.f32.mrf.mxu0
    %4469 = vdwg.mxu0
    %v4470 = vmax.f32 %v4454, 0.0
    %v4471 = vmax.f32 %v4467, 0.0
    %v4472 = vld [vmem:[#allocation10] sm:$0xf]
    %v4473 = vld [vmem:[#allocation10 + $0x4] sm:$0xf]
    %v4474 = vld [vmem:[#allocation10 + $0x8] sm:$0xf]
    %v4475 = vld [vmem:[#allocation10 + $0xc] sm:$0xf]
    %v4476 = vld [vmem:[#allocation10 + $0x10] sm:$0xf]
    %v4477 = vld [vmem:[#allocation10 + $0x14] sm:$0xf]
    %v4478 = vld [vmem:[#allocation10 + $0x18] sm:$0xf]
    %v4479 = vld [vmem:[#allocation10 + $0x1c] sm:$0xf]
    %v4480 = vld [vmem:[#allocation10 + $0x20] sm:$0xf]
    %v4481 = vld [vmem:[#allocation10 + $0x24] sm:$0xf]
    %v4482 = vld [vmem:[#allocation10 + $0x28] sm:$0xf]
    %v4483 = vld [vmem:[#allocation10 + $0x2c] sm:$0xf]
    %v4484 = vld [vmem:[#allocation10 + $0x30] sm:$0xf]
    %v4485 = vld [vmem:[#allocation10 + $0x34] sm:$0xf]
    %v4486 = vld [vmem:[#allocation10 + $0x38] sm:$0xf]
    %v4487 = vld [vmem:[#allocation10 + $0x3c] sm:$0xf]
    %v4488 = vld [vmem:[#allocation10 + $0x40] sm:$0xf]
    %v4489 = vld [vmem:[#allocation10 + $0x44] sm:$0xf]
    %v4490 = vld [vmem:[#allocation10 + $0x48] sm:$0xf]
    %v4491 = vld [vmem:[#allocation10 + $0x4c] sm:$0xf]
    %v4492 = vld [vmem:[#allocation10 + $0x50] sm:$0xf]
    %v4493 = vld [vmem:[#allocation10 + $0x54] sm:$0xf]
    %v4494 = vld [vmem:[#allocation10 + $0x58] sm:$0xf]
    %v4495 = vld [vmem:[#allocation10 + $0x5c] sm:$0xf]
    %v4496 = vld [vmem:[#allocation10 + $0x60] sm:$0xf]
    %v4497 = vld [vmem:[#allocation10 + $0x64] sm:$0xf]
    %v4498 = vld [vmem:[#allocation10 + $0x68] sm:$0xf]
    %v4499 = vld [vmem:[#allocation10 + $0x6c] sm:$0xf]
    %v4500 = vld [vmem:[#allocation10 + $0x70] sm:$0xf]
    %v4501 = vld [vmem:[#allocation10 + $0x74] sm:$0xf]
    %v4502 = vld [vmem:[#allocation10 + $0x78] sm:$0xf]
    %v4503 = vld [vmem:[#allocation10 + $0x7c] sm:$0xf]
    %v4504 = vpack.c.bf16 %v4470, %v4470
    %v4505 = vpack.c.bf16 %v4471, %v4471
    %v4506 = vld [vmem:[%s19] sm:$0x1]
    %v4508 = vperm.slane %v4506, 0
    %v4542 = vunpack.c.l.b16 %v4472
    %v4543 = vunpack.c.l.b16 %v4473
    %v4544 = vunpack.c.l.b16 %v4474
    %v4545 = vunpack.c.l.b16 %v4475
    %v4546 = vunpack.c.l.b16 %v4476
    %v4547 = vunpack.c.l.b16 %v4477
    %v4548 = vunpack.c.l.b16 %v4478
    %v4549 = vunpack.c.l.b16 %v4479
    %v4550 = vunpack.c.l.b16 %v4480
    %v4551 = vunpack.c.l.b16 %v4481
    %v4552 = vunpack.c.l.b16 %v4482
    %v4553 = vunpack.c.l.b16 %v4483
    %v4554 = vunpack.c.l.b16 %v4484
    %v4555 = vunpack.c.l.b16 %v4485
    %v4556 = vunpack.c.l.b16 %v4486
    %v4557 = vunpack.c.l.b16 %v4487
    %v4558 = vunpack.c.l.b16 %v4488
    %v4559 = vunpack.c.l.b16 %v4489
    %v4560 = vunpack.c.l.b16 %v4490
    %v4561 = vunpack.c.l.b16 %v4491
    %v4562 = vunpack.c.l.b16 %v4492
    %v4563 = vunpack.c.l.b16 %v4493
    %v4564 = vunpack.c.l.b16 %v4494
    %v4565 = vunpack.c.l.b16 %v4495
    %v4566 = vunpack.c.l.b16 %v4496
    %v4567 = vunpack.c.l.b16 %v4497
    %v4568 = vunpack.c.l.b16 %v4498
    %v4569 = vunpack.c.l.b16 %v4499
    %v4570 = vunpack.c.l.b16 %v4500
    %v4571 = vunpack.c.l.b16 %v4501
    %v4572 = vunpack.c.l.b16 %v4502
    %v4573 = vunpack.c.l.b16 %v4503
    %v4574 = vpack.c.b16 %v4543, %v4542
    %v4575 = vpack.c.b16 %v4545, %v4544
    %v4576 = vpack.c.b16 %v4547, %v4546
    %v4577 = vpack.c.b16 %v4549, %v4548
    %v4578 = vpack.c.b16 %v4551, %v4550
    %v4579 = vpack.c.b16 %v4553, %v4552
    %v4580 = vpack.c.b16 %v4555, %v4554
    %v4581 = vpack.c.b16 %v4557, %v4556
    %v4582 = vpack.c.b16 %v4559, %v4558
    %v4583 = vpack.c.b16 %v4561, %v4560
    %v4584 = vpack.c.b16 %v4563, %v4562
    %v4585 = vpack.c.b16 %v4565, %v4564
    %v4586 = vpack.c.b16 %v4567, %v4566
    %v4587 = vpack.c.b16 %v4569, %v4568
    %v4588 = vpack.c.b16 %v4571, %v4570
    %v4589 = vpack.c.b16 %v4573, %v4572
    %4606 = vmatpush.bf16.msra.mxu0 %v4581
    %4607 = vmatpush.bf16.msra.mxu0 %v4580
    %4608 = vmatpush.bf16.msra.mxu0 %v4579
    %4609 = vmatpush.bf16.msra.mxu0 %v4578
    %4610 = vmatpush.bf16.msra.mxu0 %v4577
    %4611 = vmatpush.bf16.msra.mxu0 %v4576
    %4612 = vmatpush.bf16.msra.mxu0 %v4575
    %4613 = vmatpush.bf16.msra.mxu0 %v4574
    %4614 = vmatmul.bf16.gmra.mxu0 %v4504
    %v4615 = vpop.f32.mrf.mxu0
    %v4616 = vadd.f32 %v4508, %v4615
    %v4617 = vpop.f32.mrf.mxu0
    %4618 = vdwg.mxu0
    %4619 = vmatpush.bf16.msra.mxu0 %v4589
    %4620 = vmatpush.bf16.msra.mxu0 %v4588
    %4621 = vmatpush.bf16.msra.mxu0 %v4587
    %4622 = vmatpush.bf16.msra.mxu0 %v4586
    %4623 = vmatpush.bf16.msra.mxu0 %v4585
    %4624 = vmatpush.bf16.msra.mxu0 %v4584
    %4625 = vmatpush.bf16.msra.mxu0 %v4583
    %4626 = vmatpush.bf16.msra.mxu0 %v4582
    %4627 = vmatmul.bf16.gmra.mxu0 %v4505
    %v4628 = vpop.f32.mrf.mxu0
    %v4629 = vadd.f32 %v4616, %v4628
    %v4630 = vpop.f32.mrf.mxu0
    %4631 = vdwg.mxu0
    %4632 = vst [vmem:[#allocation11] sm:$0x3] %v4629
    // Predicated region
    $region102: #{hint_forward.1} parent=1 // pred_check
      _
    $region103: #{hint_forward.1} parent=1 // pred_check_branch
      %4634 = sbr.rel (0) target = $region105
    $region104: #{hint_forward.1} parent=1 // pred_region
      %4636 = vsyncadd [#allocation4], 0
      %s4638 = sshll.u32 [#allocation11], 4
      %s4639 = int_to_ptr.vmem [resolvable:$true] %s4638
      %s4640 = sshll.u32 %s20, 4
      %s4641 = int_to_ptr.hbm [resolvable:$true] %s4640
      %4643 = dma.vmem_to_hbm [thread:$0]  %s4639, 32, %s4641, [#allocation4]
    $region105: #{hint_forward.1} parent=1 // pred_fallthru
      _
    // Predicated region
    $region106: #{hint_forward.1} parent=1 // pred_check
      _
    $region107: #{hint_forward.1} parent=1 // pred_check_branch
      %4645 = sbr.rel (0) target = $region109
    $region108: #{hint_forward.1} parent=1 // pred_region
      %4647 = dma.done [#allocation4], 32
    $region109: #{hint_forward.1} parent=1 // pred_fallthru
      _
    %4648 = vsyncpa [#allocation3], 1
    %4649 = vsyncpa [#allocation6], 1
    %4650 = vsyncpa [#allocation9], 1
    %4651 = vsyncpa [#allocation4], 1

</llo_original>
